<compile_context>
chip_gen: v7x
topology: tpu7x:2x2x1
jax: 0.10.0
libtpu: 0.0.40
codegen_flags: <defaults>
</compile_context>

<pallas_src>
import jax
import jax.numpy as jnp
from jax.experimental import pallas as pl
from jax.experimental.pallas import tpu as pltpu

LANE = 128        # f32/bf16 lane width
SUBLANE = 8       # f32 sublane count
ALIGN_K = 16      # bf16 sublane packing (weight-slab row alignment)


# ---------------------------------------------------------------------------
# Small helpers
# ---------------------------------------------------------------------------
def _rup(n, m):
    return ((n + m - 1) // m) * m


def _pad2d(x, rows, cols):
    return jnp.pad(x, ((0, rows - x.shape[0]), (0, cols - x.shape[1])))


# ---------------------------------------------------------------------------
# Kernel factory: one fused forward step per grid iteration.
# ---------------------------------------------------------------------------
def make_gcnmol_kernel(layout):
    w128_off = layout["w128_off"]      # name -> (row offset, padded K) in slab
    wcat_off = layout["wcat_off"]      # "cll"/"drug" -> (row offset, padded K)
    bias_row = layout["bias_row"]      # name -> (row, padded N)

    def kernel(a_ref, pool_ref, x_ref, cll_ref,
               w128_ref, wcat_ref, wc2_ref, wc3_ref, bias_ref, o_ref):
        def dot(lhs, rhs):
            # bf16 MXU matmul, f32 accumulation.
            return jnp.dot(lhs.astype(jnp.bfloat16), rhs.astype(jnp.bfloat16),
                           preferred_element_type=jnp.float32)

        def w(name):
            off, k = w128_off[name]
            return w128_ref[off:off + k, :]

        def b(name):
            row, n = bias_row[name]
            return bias_ref[row:row + 1, :n]

        def lin128(act, name, relu):
            _, k = w128_off[name]
            out = dot(act[:, :k], w(name)) + b(name)
            return jnp.maximum(out, 0.0) if relu else out

        # ---- drug branch: GCNConv1+ReLU -> GCNConv2 -> mean-pool -> linear --
        a = a_ref[...]                       # block-diagonal A_norm tile (f32)
        xk = w128_off["conv1_drug"][1]
        h = dot(a, dot(x_ref[:, :xk], w("conv1_drug"))) + b("conv1_drug")
        h = jnp.maximum(h, 0.0)
        k2 = w128_off["conv2_drug"][1]
        h = dot(a, dot(h[:, :k2], w("conv2_drug"))) + b("conv2_drug")
        g = dot(pool_ref[...], h)            # global_mean_pool
        g = lin128(g, "linear_drug", relu=False)

        # ---- cell-line branch: 4 x (linear + ReLU) --------------------------
        c = cll_ref[...]
        c = lin128(c, "linear1_ccl", relu=True)
        c = lin128(c, "linear2_ccl", relu=True)
        c = lin128(c, "linear3_ccl", relu=True)
        c = lin128(c, "linear4_ccl", relu=True)

        # ---- concat branch: torch.cat fused into a split first matmul -------
        oc, kc = wcat_off["cll"]
        od, kd = wcat_off["drug"]
        t = (dot(c[:, :kc], wcat_ref[oc:oc + kc, :])
             + dot(g[:, :kd], wcat_ref[od:od + kd, :])
             + b("linear1_concat"))
        t = jnp.maximum(t, 0.0)
        t = jnp.maximum(dot(t, wc2_ref[...]) + b("linear2_concat"), 0.0)
        t = jnp.maximum(dot(t, wc3_ref[...]) + b("linear3_concat"), 0.0)
        t = lin128(t, "linear4_concat", relu=False)
        o_ref[...] = t.astype(o_ref.dtype)

    return kernel


# ---------------------------------------------------------------------------
# Pad / pack parameters and activations; record the static slab layout.
# ---------------------------------------------------------------------------
def build_layout_and_operands(params, a_norm, pool, drug_x, train_cll,
                              cll_split, graph_tile, nodes_per_graph):
    num_graphs, num_nodes = pool.shape
    assert num_nodes == num_graphs * nodes_per_graph, "uniform graphs required"
    assert graph_tile % SUBLANE == 0

    node_tile = graph_tile * nodes_per_graph
    graphs_pad = _rup(num_graphs, graph_tile)
    nodes_pad = graphs_pad * nodes_per_graph
    n_tiles = graphs_pad // graph_tile
    assert n_tiles == 1 or node_tile % LANE == 0, (
        "node tile must be a multiple of 128 when the grid has >1 step")

    x_pad = _rup(drug_x.shape[1], LANE)
    cll_pad = _rup(train_cll.shape[1], LANE)

    a_p = _pad2d(a_norm.astype(jnp.float32), nodes_pad, nodes_pad)
    pool_p = _pad2d(pool.astype(jnp.float32), graphs_pad, nodes_pad)
    x_p = _pad2d(drug_x.astype(jnp.float32), nodes_pad, x_pad)
    cll_p = _pad2d(train_cll.astype(jnp.float32), graphs_pad, cll_pad)

    # ---- bf16 slab of every weight whose output pads to 128 lanes ----------
    w128_names = ("conv1_drug", "conv2_drug", "linear_drug",
                  "linear1_ccl", "linear2_ccl", "linear3_ccl", "linear4_ccl",
                  "linear4_concat")
    w128_off, pieces, off = {}, [], 0
    for name in w128_names:
        wmat, _ = params[name]
        kp = _rup(wmat.shape[0], ALIGN_K)
        w128_off[name] = (off, kp)
        pieces.append(_pad2d(wmat, kp, LANE))
        off += kp
    w128_slab = jnp.concatenate(pieces, axis=0).astype(jnp.bfloat16)

    # ---- linear1_concat split into cll-rows / drug-rows (fuses torch.cat) --
    w1cat, _ = params["linear1_concat"]
    cat_n_pad = _rup(w1cat.shape[1], LANE)
    kc = _rup(cll_split, ALIGN_K)
    kd = _rup(w1cat.shape[0] - cll_split, ALIGN_K)
    wcat_off = {"cll": (0, kc), "drug": (kc, kd)}
    wcat_slab = jnp.concatenate(
        [_pad2d(w1cat[:cll_split], kc, cat_n_pad),
         _pad2d(w1cat[cll_split:], kd, cat_n_pad)],
        axis=0).astype(jnp.bfloat16)

    # ---- big concat weights: K = previous padded lane width (cheap zeros) --
    w2cat, _ = params["linear2_concat"]
    w3cat, _ = params["linear3_concat"]
    n2_pad = _rup(w2cat.shape[1], LANE)
    n3_pad = _rup(w3cat.shape[1], LANE)
    wc2 = _pad2d(w2cat, cat_n_pad, n2_pad).astype(jnp.bfloat16)
    wc3 = _pad2d(w3cat, n2_pad, n3_pad).astype(jnp.bfloat16)

    # ---- all eleven biases in one f32 slab ----------------------------------
    bias_names = ("conv1_drug", "conv2_drug", "linear_drug",
                  "linear1_ccl", "linear2_ccl", "linear3_ccl", "linear4_ccl",
                  "linear1_concat", "linear2_concat", "linear3_concat",
                  "linear4_concat")
    bias_lanes = max(_rup(params[n][1].shape[0], LANE) for n in bias_names)
    bias_rows = _rup(len(bias_names), SUBLANE)
    bias_slab = jnp.zeros((bias_rows, bias_lanes), jnp.float32)
    bias_row = {}
    for r, name in enumerate(bias_names):
        bvec = params[name][1]
        bias_row[name] = (r, _rup(bvec.shape[0], LANE))
        bias_slab = bias_slab.at[r, :bvec.shape[0]].set(bvec)

    operands = [a_p, pool_p, x_p, cll_p,
                w128_slab, wcat_slab, wc2, wc3, bias_slab]

    # ---- advisory cost estimate ---------------------------------------------
    mm = lambda m, k, n: 2 * m * k * n
    flops = 0
    for name in ("conv1_drug", "conv2_drug"):
        flops += mm(nodes_pad, w128_off[name][1], LANE)    # X @ W
        flops += mm(nodes_pad, node_tile, LANE)            # block-diag A @ H
    flops += mm(graphs_pad, node_tile, LANE)               # mean pool
    for name in ("linear_drug", "linear1_ccl", "linear2_ccl", "linear3_ccl",
                 "linear4_ccl", "linear4_concat"):
        flops += mm(graphs_pad, w128_off[name][1], LANE)
    flops += mm(graphs_pad, kc, cat_n_pad) + mm(graphs_pad, kd, cat_n_pad)
    flops += mm(graphs_pad, wc2.shape[0], wc2.shape[1])
    flops += mm(graphs_pad, wc3.shape[0], wc3.shape[1])

    layout = dict(
        w128_off=w128_off, wcat_off=wcat_off, bias_row=bias_row,
        graph_tile=graph_tile, node_tile=node_tile,
        graphs_pad=graphs_pad, nodes_pad=nodes_pad, n_tiles=n_tiles,
        x_pad=x_pad, cll_pad=cll_pad, num_graphs=num_graphs,
        flops=int(flops))
    return operands, layout


# ---------------------------------------------------------------------------
# Build the fused, jitted forward function.
# ---------------------------------------------------------------------------
def make_gcnmol_fn(layout, operands):
    kernel = make_gcnmol_kernel(layout)
    gt, nt = layout["graph_tile"], layout["node_tile"]
    grid = (layout["n_tiles"],)
    out_shape = (layout["graphs_pad"], LANE)

    def const_spec(op):
        # Constant block index: weights/biases DMA'd once, VMEM-resident.
        # TODO(synk): pipeline_mode=pl.Buffered(1) here would also drop the
        # second (unused) buffer for these resident operands.
        return pl.BlockSpec(tuple(op.shape), lambda i: (0, 0))

    in_specs = [
        pl.BlockSpec((nt, nt), lambda i: (i, i)),               # A_norm block
        pl.BlockSpec((gt, nt), lambda i: (i, i)),                # pool block
        pl.BlockSpec((nt, layout["x_pad"]), lambda i: (i, 0)),   # node feats
        pl.BlockSpec((gt, layout["cll_pad"]), lambda i: (i, 0)), # cell lines
    ] + [const_spec(op) for op in operands[4:]]
    out_specs = pl.BlockSpec((gt, LANE), lambda i: (i, 0))

    operand_bytes = sum(op.size * op.dtype.itemsize for op in operands)
    out_bytes = out_shape[0] * out_shape[1] * 4
    vmem_limit = int(min(48 << 20,
                         max(16 << 20,
                             2 * (operand_bytes + out_bytes) + (8 << 20))))

    fused = pl.pallas_call(
        kernel,
        out_shape=jax.ShapeDtypeStruct(out_shape, jnp.float32),
        grid=grid,
        in_specs=in_specs,
        out_specs=out_specs,
        compiler_params=pltpu.CompilerParams(
            dimension_semantics=("parallel",),
            vmem_limit_bytes=vmem_limit),
        cost_estimate=pl.CostEstimate(
            flops=layout["flops"], transcendentals=0,
            bytes_accessed=int(operand_bytes + out_bytes)),
    )

    num_graphs = layout["num_graphs"]

    @jax.jit
    def run(*ops):
        return fused(*ops)[:num_graphs, :1]   # strip row/lane padding

    return run


# ---------------------------------------------------------------------------
# Plain-JAX glue: dense normalized adjacency + mean-pool matrix (per batch).
# ---------------------------------------------------------------------------
def build_gcn_adjacency(edge_index, num_nodes):
    src, dst = edge_index[0], edge_index[1]
    a = jnp.zeros((num_nodes, num_nodes), jnp.float32)
    a = a.at[dst, src].set(1.0)
    a_hat = a + jnp.eye(num_nodes, dtype=jnp.float32)
    deg = a_hat.sum(axis=1)
    d_inv_sqrt = jnp.where(deg > 0, 1.0 / jnp.sqrt(deg), 0.0)
    return d_inv_sqrt[:, None] * a_hat * d_inv_sqrt[None, :]


def build_mean_pool_matrix(batch, num_graphs):
    onehot = (batch[None, :] == jnp.arange(num_graphs)[:, None]).astype(jnp.float32)
    counts = jnp.maximum(onehot.sum(axis=1, keepdims=True), 1.0)
    return onehot / counts


# ---------------------------------------------------------------------------
# Parameter init (deterministic, synthetic — NOT a checkpoint load)
# ---------------------------------------------------------------------------
def init_linear_params(key, in_dim, out_dim):
    kw, kb = jax.random.split(key)
    scale = 1.0 / jnp.sqrt(jnp.float32(in_dim))
    w = jax.random.uniform(kw, (in_dim, out_dim), jnp.float32, -scale, scale)
    b = jax.random.uniform(kb, (out_dim,), jnp.float32, -scale, scale)
    return w, b


def init_gcnmol_params(key, cll_input_layer_size, drug_input_layer_size, last_layer):
    keys = jax.random.split(key, 11)
    c = cll_input_layer_size
    p = {}
    p["conv1_drug"] = init_linear_params(keys[0], drug_input_layer_size, 20)
    p["conv2_drug"] = init_linear_params(keys[1], 20, 25)
    p["linear_drug"] = init_linear_params(keys[2], 25, last_layer)
    p["linear1_ccl"] = init_linear_params(keys[3], c, int(c * 0.5))
    p["linear2_ccl"] = init_linear_params(keys[4], int(c * 0.5), int(c * 0.25))
    p["linear3_ccl"] = init_linear_params(keys[5], int(c * 0.25), int(c * 0.125))
    p["linear4_ccl"] = init_linear_params(keys[6], int(c * 0.125), int(c * 0.0625))
    p["linear1_concat"] = init_linear_params(keys[7], int(c * 0.0625) + last_layer, 1000)
    p["linear2_concat"] = init_linear_params(keys[8], 1000, 500)
    p["linear3_concat"] = init_linear_params(keys[9], 500, 250)
    p["linear4_concat"] = init_linear_params(keys[10], 250, 1)
    return p


# ---------------------------------------------------------------------------
# Pure-JAX reference (matches GCNMol.forward) for a correctness check
# ---------------------------------------------------------------------------
def gcnmol_reference(params, train_cll, drug_x, a_norm, pool):
    hp = jax.lax.Precision.HIGHEST
    dot = lambda a, b: jnp.dot(a, b, precision=hp)
    w1, b1 = params["conv1_drug"]
    x = jnp.maximum(dot(a_norm, dot(drug_x, w1)) + b1, 0.0)
    w2, b2 = params["conv2_drug"]
    x = dot(a_norm, dot(x, w2)) + b2
    x = dot(pool, x)
    wd, bd = params["linear_drug"]
    x = dot(x, wd) + bd
    c = train_cll
    for name in ("linear1_ccl", "linear2_ccl", "linear3_ccl", "linear4_ccl"):
        w, b = params[name]
        c = jnp.maximum(dot(c, w) + b, 0.0)
    h = jnp.concatenate((c, x), axis=1)
    for name, relu in (("linear1_concat", True), ("linear2_concat", True),
                       ("linear3_concat", True), ("linear4_concat", False)):
        w, b = params[name]
        h = dot(h, w) + b
        if relu:
            h = jnp.maximum(h, 0.0)
    return h


# ---------------------------------------------------------------------------
# Main
# ---------------------------------------------------------------------------
if __name__ == "__main__":
    # TODO(synk): config.json -> last_layer is hardcoded here (synthetic config).
    CLL_INPUT = 256          # -> 128 -> 64 -> 32 -> 16
    DRUG_FEAT = 32
    LAST_LAYER = 64
    NODES_PER_GRAPH = 8
    GRAPH_TILE = 16          # graphs per grid step -> node tile = 128 lanes
    NUM_GRAPHS = 32          # grid of 2 steps; weights stay VMEM-resident
    NUM_NODES = NUM_GRAPHS * NODES_PER_GRAPH

    key = jax.random.PRNGKey(0)
    k_params, k_cll, k_drug = jax.random.split(key, 3)

    params = init_gcnmol_params(k_params, CLL_INPUT, DRUG_FEAT, LAST_LAYER)
    train_cll = jax.random.normal(k_cll, (NUM_GRAPHS, CLL_INPUT), jnp.float32)
    drug_x = jax.random.normal(k_drug, (NUM_NODES, DRUG_FEAT), jnp.float32)

    # chain graph within each molecule, undirected edges
    src, dst = [], []
    for g in range(NUM_GRAPHS):
        base = g * NODES_PER_GRAPH
        for i in range(NODES_PER_GRAPH - 1):
            src += [base + i, base + i + 1]
            dst += [base + i + 1, base + i]
    edge_index = jnp.array([src, dst], dtype=jnp.int32)
    batch = jnp.repeat(jnp.arange(NUM_GRAPHS, dtype=jnp.int32), NODES_PER_GRAPH)

    # Precompute dense A_norm and the mean-pool matrix once per graph batch.
    a_norm = build_gcn_adjacency(edge_index, NUM_NODES)
    pool = build_mean_pool_matrix(batch, NUM_GRAPHS)

    cll_split = int(CLL_INPUT * 0.0625)
    operands, layout = build_layout_and_operands(
        params, a_norm, pool, drug_x, train_cll, cll_split,
        GRAPH_TILE, NODES_PER_GRAPH)

    run = make_gcnmol_fn(layout, operands)
    out = jax.block_until_ready(run(*operands))
    assert out.shape == (NUM_GRAPHS, 1), out.shape

    ref = gcnmol_reference(params, train_cll, drug_x, a_norm, pool)
    max_diff = float(jnp.max(jnp.abs(out - ref)))
    assert jnp.allclose(out, ref, rtol=5e-2, atol=5e-2), (
        "max abs diff vs reference: %f" % max_diff)
    print("KERNEL_OK")
</pallas_src>

<mosaic_0001>
module attributes {stable_mosaic.version = 11 : i64} {
  func.func @kernel(%arg0: i32, %arg1: memref<128x128xf32, #tpu.memory_space<vmem>>, %arg2: memref<16x128xf32, #tpu.memory_space<vmem>>, %arg3: memref<128x128xf32, #tpu.memory_space<vmem>>, %arg4: memref<16x256xf32, #tpu.memory_space<vmem>>, %arg5: memref<832x128xbf16, #tpu.memory_space<vmem>>, %arg6: memref<80x1024xbf16, #tpu.memory_space<vmem>>, %arg7: memref<1024x512xbf16, #tpu.memory_space<vmem>>, %arg8: memref<512x256xbf16, #tpu.memory_space<vmem>>, %arg9: memref<16x1024xf32, #tpu.memory_space<vmem>>, %arg10: memref<16x128xf32, #tpu.memory_space<vmem>>) attributes {dimension_semantics = [#tpu.dimension_semantics<parallel>], iteration_bounds = array<i64: 2>, scalar_prefetch = 0 : i64, scratch_operands = 0 : i64, tpu.core_type = #tpu.core_type<tc>, window_params = [{transform_indices = @transform_0, window_bounds = array<i64: 128, 128>}, {transform_indices = @transform_1, window_bounds = array<i64: 16, 128>}, {transform_indices = @transform_2, window_bounds = array<i64: 128, 128>}, {transform_indices = @transform_3, window_bounds = array<i64: 16, 256>}, {pipeline_mode = #tpu.pipeline_mode<synchronous>, transform_indices = @transform_4, window_bounds = array<i64: 832, 128>}, {pipeline_mode = #tpu.pipeline_mode<synchronous>, transform_indices = @transform_5, window_bounds = array<i64: 80, 1024>}, {pipeline_mode = #tpu.pipeline_mode<synchronous>, transform_indices = @transform_6, window_bounds = array<i64: 1024, 512>}, {pipeline_mode = #tpu.pipeline_mode<synchronous>, transform_indices = @transform_7, window_bounds = array<i64: 512, 256>}, {pipeline_mode = #tpu.pipeline_mode<synchronous>, transform_indices = @transform_8, window_bounds = array<i64: 16, 1024>}, {transform_indices = @transform_9, window_bounds = array<i64: 16, 128>}]} {
    %c0 = arith.constant 0 : index
    %c0_0 = arith.constant 0 : index
    %0 = vector.load %arg1[%c0, %c0_0] : memref<128x128xf32, #tpu.memory_space<vmem>>, vector<128x128xf32>
    %c0_1 = arith.constant 0 : index
    %c0_2 = arith.constant 0 : index
    %1 = vector.load %arg3[%c0_1, %c0_2] : memref<128x128xf32, #tpu.memory_space<vmem>>, vector<128x32xf32>
    %c0_3 = arith.constant 0 : index
    %c0_4 = arith.constant 0 : index
    %2 = vector.load %arg5[%c0_3, %c0_4] : memref<832x128xbf16, #tpu.memory_space<vmem>>, vector<32x128xbf16>
    %3 = arith.truncf %1 : vector<128x32xf32> to vector<128x32xbf16>
    %cst = arith.constant dense<0.000000e+00> : vector<128x128xf32>
    %4 = tpu.matmul %3, %2, %cst {dimension_numbers = #tpu.dot_dimension_numbers<[1], [0], [0], [1], [0, 0, 1, 1], [], []>} : vector<128x32xbf16>, vector<32x128xbf16>, vector<128x128xf32> -> vector<128x128xf32>
    %5 = arith.truncf %0 : vector<128x128xf32> to vector<128x128xbf16>
    %6 = arith.truncf %4 : vector<128x128xf32> to vector<128x128xbf16>
    %cst_5 = arith.constant dense<0.000000e+00> : vector<128x128xf32>
    %7 = tpu.matmul %5, %6, %cst_5 {dimension_numbers = #tpu.dot_dimension_numbers<[1], [0], [0], [1], [0, 0, 1, 1], [], []>} : vector<128x128xbf16>, vector<128x128xbf16>, vector<128x128xf32> -> vector<128x128xf32>
    %c0_6 = arith.constant 0 : index
    %c0_7 = arith.constant 0 : index
    %8 = vector.load %arg9[%c0_6, %c0_7] : memref<16x1024xf32, #tpu.memory_space<vmem>>, vector<1x128xf32>
    %9 = vector.broadcast %8 : vector<1x128xf32> to vector<128x128xf32>
    %10 = arith.addf %7, %9 : vector<128x128xf32>
    %cst_8 = arith.constant 0.000000e+00 : f32
    %11 = vector.broadcast %cst_8 : f32 to vector<128x128xf32>
    %12 = arith.maximumf %10, %11 : vector<128x128xf32>
    %13 = vector.extract_strided_slice %12 {offsets = [0, 0], sizes = [128, 32], strides = [1, 1]} : vector<128x128xf32> to vector<128x32xf32>
    %c32 = arith.constant 32 : index
    %c0_9 = arith.constant 0 : index
    %14 = vector.load %arg5[%c32, %c0_9] : memref<832x128xbf16, #tpu.memory_space<vmem>>, vector<32x128xbf16>
    %15 = arith.truncf %13 : vector<128x32xf32> to vector<128x32xbf16>
    %cst_10 = arith.constant dense<0.000000e+00> : vector<128x128xf32>
    %16 = tpu.matmul %15, %14, %cst_10 {dimension_numbers = #tpu.dot_dimension_numbers<[1], [0], [0], [1], [0, 0, 1, 1], [], []>} : vector<128x32xbf16>, vector<32x128xbf16>, vector<128x128xf32> -> vector<128x128xf32>
    %17 = arith.truncf %0 : vector<128x128xf32> to vector<128x128xbf16>
    %18 = arith.truncf %16 : vector<128x128xf32> to vector<128x128xbf16>
    %cst_11 = arith.constant dense<0.000000e+00> : vector<128x128xf32>
    %19 = tpu.matmul %17, %18, %cst_11 {dimension_numbers = #tpu.dot_dimension_numbers<[1], [0], [0], [1], [0, 0, 1, 1], [], []>} : vector<128x128xbf16>, vector<128x128xbf16>, vector<128x128xf32> -> vector<128x128xf32>
    %c1 = arith.constant 1 : index
    %c0_12 = arith.constant 0 : index
    %20 = vector.load %arg9[%c1, %c0_12] : memref<16x1024xf32, #tpu.memory_space<vmem>>, vector<1x128xf32>
    %21 = vector.broadcast %20 : vector<1x128xf32> to vector<128x128xf32>
    %22 = arith.addf %19, %21 : vector<128x128xf32>
    %c0_13 = arith.constant 0 : index
    %c0_14 = arith.constant 0 : index
    %23 = vector.load %arg2[%c0_13, %c0_14] : memref<16x128xf32, #tpu.memory_space<vmem>>, vector<16x128xf32>
    %24 = arith.truncf %23 : vector<16x128xf32> to vector<16x128xbf16>
    %25 = arith.truncf %22 : vector<128x128xf32> to vector<128x128xbf16>
    %cst_15 = arith.constant dense<0.000000e+00> : vector<16x128xf32>
    %26 = tpu.matmul %24, %25, %cst_15 {dimension_numbers = #tpu.dot_dimension_numbers<[1], [0], [0], [1], [0, 0, 1, 1], [], []>} : vector<16x128xbf16>, vector<128x128xbf16>, vector<16x128xf32> -> vector<16x128xf32>
    %27 = vector.extract_strided_slice %26 {offsets = [0, 0], sizes = [16, 32], strides = [1, 1]} : vector<16x128xf32> to vector<16x32xf32>
    %c64 = arith.constant 64 : index
    %c0_16 = arith.constant 0 : index
    %28 = vector.load %arg5[%c64, %c0_16] : memref<832x128xbf16, #tpu.memory_space<vmem>>, vector<32x128xbf16>
    %29 = arith.truncf %27 : vector<16x32xf32> to vector<16x32xbf16>
    %cst_17 = arith.constant dense<0.000000e+00> : vector<16x128xf32>
    %30 = tpu.matmul %29, %28, %cst_17 {dimension_numbers = #tpu.dot_dimension_numbers<[1], [0], [0], [1], [0, 0, 1, 1], [], []>} : vector<16x32xbf16>, vector<32x128xbf16>, vector<16x128xf32> -> vector<16x128xf32>
    %c2 = arith.constant 2 : index
    %c0_18 = arith.constant 0 : index
    %31 = vector.load %arg9[%c2, %c0_18] : memref<16x1024xf32, #tpu.memory_space<vmem>>, vector<1x128xf32>
    %32 = vector.broadcast %31 : vector<1x128xf32> to vector<16x128xf32>
    %33 = arith.addf %30, %32 : vector<16x128xf32>
    %c0_19 = arith.constant 0 : index
    %c0_20 = arith.constant 0 : index
    %34 = vector.load %arg4[%c0_19, %c0_20] : memref<16x256xf32, #tpu.memory_space<vmem>>, vector<16x256xf32>
    %c96 = arith.constant 96 : index
    %c0_21 = arith.constant 0 : index
    %35 = vector.load %arg5[%c96, %c0_21] : memref<832x128xbf16, #tpu.memory_space<vmem>>, vector<256x128xbf16>
    %36 = arith.truncf %34 : vector<16x256xf32> to vector<16x256xbf16>
    %cst_22 = arith.constant dense<0.000000e+00> : vector<16x128xf32>
    %37 = tpu.matmul %36, %35, %cst_22 {dimension_numbers = #tpu.dot_dimension_numbers<[1], [0], [0], [1], [0, 0, 1, 1], [], []>} : vector<16x256xbf16>, vector<256x128xbf16>, vector<16x128xf32> -> vector<16x128xf32>
    %c3 = arith.constant 3 : index
    %c0_23 = arith.constant 0 : index
    %38 = vector.load %arg9[%c3, %c0_23] : memref<16x1024xf32, #tpu.memory_space<vmem>>, vector<1x128xf32>
    %39 = vector.broadcast %38 : vector<1x128xf32> to vector<16x128xf32>
    %40 = arith.addf %37, %39 : vector<16x128xf32>
    %cst_24 = arith.constant 0.000000e+00 : f32
    %41 = vector.broadcast %cst_24 : f32 to vector<16x128xf32>
    %42 = arith.maximumf %40, %41 : vector<16x128xf32>
    %c352 = arith.constant 352 : index
    %c0_25 = arith.constant 0 : index
    %43 = vector.load %arg5[%c352, %c0_25] : memref<832x128xbf16, #tpu.memory_space<vmem>>, vector<128x128xbf16>
    %44 = arith.truncf %42 : vector<16x128xf32> to vector<16x128xbf16>
    %cst_26 = arith.constant dense<0.000000e+00> : vector<16x128xf32>
    %45 = tpu.matmul %44, %43, %cst_26 {dimension_numbers = #tpu.dot_dimension_numbers<[1], [0], [0], [1], [0, 0, 1, 1], [], []>} : vector<16x128xbf16>, vector<128x128xbf16>, vector<16x128xf32> -> vector<16x128xf32>
    %c4 = arith.constant 4 : index
    %c0_27 = arith.constant 0 : index
    %46 = vector.load %arg9[%c4, %c0_27] : memref<16x1024xf32, #tpu.memory_space<vmem>>, vector<1x128xf32>
    %47 = vector.broadcast %46 : vector<1x128xf32> to vector<16x128xf32>
    %48 = arith.addf %45, %47 : vector<16x128xf32>
    %cst_28 = arith.constant 0.000000e+00 : f32
    %49 = vector.broadcast %cst_28 : f32 to vector<16x128xf32>
    %50 = arith.maximumf %48, %49 : vector<16x128xf32>
    %51 = vector.extract_strided_slice %50 {offsets = [0, 0], sizes = [16, 64], strides = [1, 1]} : vector<16x128xf32> to vector<16x64xf32>
    %c480 = arith.constant 480 : index
    %c0_29 = arith.constant 0 : index
    %52 = vector.load %arg5[%c480, %c0_29] : memref<832x128xbf16, #tpu.memory_space<vmem>>, vector<64x128xbf16>
    %53 = arith.truncf %51 : vector<16x64xf32> to vector<16x64xbf16>
    %cst_30 = arith.constant dense<0.000000e+00> : vector<16x128xf32>
    %54 = tpu.matmul %53, %52, %cst_30 {dimension_numbers = #tpu.dot_dimension_numbers<[1], [0], [0], [1], [0, 0, 1, 1], [], []>} : vector<16x64xbf16>, vector<64x128xbf16>, vector<16x128xf32> -> vector<16x128xf32>
    %c5 = arith.constant 5 : index
    %c0_31 = arith.constant 0 : index
    %55 = vector.load %arg9[%c5, %c0_31] : memref<16x1024xf32, #tpu.memory_space<vmem>>, vector<1x128xf32>
    %56 = vector.broadcast %55 : vector<1x128xf32> to vector<16x128xf32>
    %57 = arith.addf %54, %56 : vector<16x128xf32>
    %cst_32 = arith.constant 0.000000e+00 : f32
    %58 = vector.broadcast %cst_32 : f32 to vector<16x128xf32>
    %59 = arith.maximumf %57, %58 : vector<16x128xf32>
    %60 = vector.extract_strided_slice %59 {offsets = [0, 0], sizes = [16, 32], strides = [1, 1]} : vector<16x128xf32> to vector<16x32xf32>
    %c544 = arith.constant 544 : index
    %c0_33 = arith.constant 0 : index
    %61 = vector.load %arg5[%c544, %c0_33] : memref<832x128xbf16, #tpu.memory_space<vmem>>, vector<32x128xbf16>
    %62 = arith.truncf %60 : vector<16x32xf32> to vector<16x32xbf16>
    %cst_34 = arith.constant dense<0.000000e+00> : vector<16x128xf32>
    %63 = tpu.matmul %62, %61, %cst_34 {dimension_numbers = #tpu.dot_dimension_numbers<[1], [0], [0], [1], [0, 0, 1, 1], [], []>} : vector<16x32xbf16>, vector<32x128xbf16>, vector<16x128xf32> -> vector<16x128xf32>
    %c6 = arith.constant 6 : index
    %c0_35 = arith.constant 0 : index
    %64 = vector.load %arg9[%c6, %c0_35] : memref<16x1024xf32, #tpu.memory_space<vmem>>, vector<1x128xf32>
    %65 = vector.broadcast %64 : vector<1x128xf32> to vector<16x128xf32>
    %66 = arith.addf %63, %65 : vector<16x128xf32>
    %cst_36 = arith.constant 0.000000e+00 : f32
    %67 = vector.broadcast %cst_36 : f32 to vector<16x128xf32>
    %68 = arith.maximumf %66, %67 : vector<16x128xf32>
    %69 = vector.extract_strided_slice %68 {offsets = [0, 0], sizes = [16, 16], strides = [1, 1]} : vector<16x128xf32> to vector<16x16xf32>
    %c0_37 = arith.constant 0 : index
    %c0_38 = arith.constant 0 : index
    %70 = vector.load %arg6[%c0_37, %c0_38] : memref<80x1024xbf16, #tpu.memory_space<vmem>>, vector<16x1024xbf16>
    %71 = arith.truncf %69 : vector<16x16xf32> to vector<16x16xbf16>
    %cst_39 = arith.constant dense<0.000000e+00> : vector<16x1024xf32>
    %72 = tpu.matmul %71, %70, %cst_39 {dimension_numbers = #tpu.dot_dimension_numbers<[1], [0], [0], [1], [0, 0, 1, 1], [], []>} : vector<16x16xbf16>, vector<16x1024xbf16>, vector<16x1024xf32> -> vector<16x1024xf32>
    %73 = vector.extract_strided_slice %33 {offsets = [0, 0], sizes = [16, 64], strides = [1, 1]} : vector<16x128xf32> to vector<16x64xf32>
    %c16 = arith.constant 16 : index
    %c0_40 = arith.constant 0 : index
    %74 = vector.load %arg6[%c16, %c0_40] : memref<80x1024xbf16, #tpu.memory_space<vmem>>, vector<64x1024xbf16>
    %75 = arith.truncf %73 : vector<16x64xf32> to vector<16x64xbf16>
    %cst_41 = arith.constant dense<0.000000e+00> : vector<16x1024xf32>
    %76 = tpu.matmul %75, %74, %cst_41 {dimension_numbers = #tpu.dot_dimension_numbers<[1], [0], [0], [1], [0, 0, 1, 1], [], []>} : vector<16x64xbf16>, vector<64x1024xbf16>, vector<16x1024xf32> -> vector<16x1024xf32>
    %77 = arith.addf %72, %76 : vector<16x1024xf32>
    %c7 = arith.constant 7 : index
    %c0_42 = arith.constant 0 : index
    %78 = vector.load %arg9[%c7, %c0_42] : memref<16x1024xf32, #tpu.memory_space<vmem>>, vector<1x1024xf32>
    %79 = vector.broadcast %78 : vector<1x1024xf32> to vector<16x1024xf32>
    %80 = arith.addf %77, %79 : vector<16x1024xf32>
    %cst_43 = arith.constant 0.000000e+00 : f32
    %81 = vector.broadcast %cst_43 : f32 to vector<16x1024xf32>
    %82 = arith.maximumf %80, %81 : vector<16x1024xf32>
    %c0_44 = arith.constant 0 : index
    %c0_45 = arith.constant 0 : index
    %83 = vector.load %arg7[%c0_44, %c0_45] : memref<1024x512xbf16, #tpu.memory_space<vmem>>, vector<1024x512xbf16>
    %84 = arith.truncf %82 : vector<16x1024xf32> to vector<16x1024xbf16>
    %cst_46 = arith.constant dense<0.000000e+00> : vector<16x512xf32>
    %85 = tpu.matmul %84, %83, %cst_46 {dimension_numbers = #tpu.dot_dimension_numbers<[1], [0], [0], [1], [0, 0, 1, 1], [], []>} : vector<16x1024xbf16>, vector<1024x512xbf16>, vector<16x512xf32> -> vector<16x512xf32>
    %c8 = arith.constant 8 : index
    %c0_47 = arith.constant 0 : index
    %86 = vector.load %arg9[%c8, %c0_47] : memref<16x1024xf32, #tpu.memory_space<vmem>>, vector<1x512xf32>
    %87 = vector.broadcast %86 : vector<1x512xf32> to vector<16x512xf32>
    %88 = arith.addf %85, %87 : vector<16x512xf32>
    %cst_48 = arith.constant 0.000000e+00 : f32
    %89 = vector.broadcast %cst_48 : f32 to vector<16x512xf32>
    %90 = arith.maximumf %88, %89 : vector<16x512xf32>
    %c0_49 = arith.constant 0 : index
    %c0_50 = arith.constant 0 : index
    %91 = vector.load %arg8[%c0_49, %c0_50] : memref<512x256xbf16, #tpu.memory_space<vmem>>, vector<512x256xbf16>
    %92 = arith.truncf %90 : vector<16x512xf32> to vector<16x512xbf16>
    %cst_51 = arith.constant dense<0.000000e+00> : vector<16x256xf32>
    %93 = tpu.matmul %92, %91, %cst_51 {dimension_numbers = #tpu.dot_dimension_numbers<[1], [0], [0], [1], [0, 0, 1, 1], [], []>} : vector<16x512xbf16>, vector<512x256xbf16>, vector<16x256xf32> -> vector<16x256xf32>
    %c9 = arith.constant 9 : index
    %c0_52 = arith.constant 0 : index
    %94 = vector.load %arg9[%c9, %c0_52] : memref<16x1024xf32, #tpu.memory_space<vmem>>, vector<1x256xf32>
    %95 = vector.broadcast %94 : vector<1x256xf32> to vector<16x256xf32>
    %96 = arith.addf %93, %95 : vector<16x256xf32>
    %cst_53 = arith.constant 0.000000e+00 : f32
    %97 = vector.broadcast %cst_53 : f32 to vector<16x256xf32>
    %98 = arith.maximumf %96, %97 : vector<16x256xf32>
    %c576 = arith.constant 576 : index
    %c0_54 = arith.constant 0 : index
    %99 = vector.load %arg5[%c576, %c0_54] : memref<832x128xbf16, #tpu.memory_space<vmem>>, vector<256x128xbf16>
    %100 = arith.truncf %98 : vector<16x256xf32> to vector<16x256xbf16>
    %cst_55 = arith.constant dense<0.000000e+00> : vector<16x128xf32>
    %101 = tpu.matmul %100, %99, %cst_55 {dimension_numbers = #tpu.dot_dimension_numbers<[1], [0], [0], [1], [0, 0, 1, 1], [], []>} : vector<16x256xbf16>, vector<256x128xbf16>, vector<16x128xf32> -> vector<16x128xf32>
    %c10 = arith.constant 10 : index
    %c0_56 = arith.constant 0 : index
    %102 = vector.load %arg9[%c10, %c0_56] : memref<16x1024xf32, #tpu.memory_space<vmem>>, vector<1x128xf32>
    %103 = vector.broadcast %102 : vector<1x128xf32> to vector<16x128xf32>
    %104 = arith.addf %101, %103 : vector<16x128xf32>
    %c0_57 = arith.constant 0 : index
    %c0_58 = arith.constant 0 : index
    %105 = vector.load %arg10[%c0_57, %c0_58] : memref<16x128xf32, #tpu.memory_space<vmem>>, vector<16x128xf32>
    tpu.vector_store %arg10[%c0_57, %c0_58], %104 {strides = array<i32>} : memref<16x128xf32, #tpu.memory_space<vmem>>, vector<16x128xf32>,
    return
  }
  func.func @transform_0(%arg0: i32) -> (i32, i32) {
    %c0_i32 = arith.constant 0 : i32
    return %arg0, %arg0 : i32, i32
  }
  func.func @transform_1(%arg0: i32) -> (i32, i32) {
    %c0_i32 = arith.constant 0 : i32
    return %arg0, %arg0 : i32, i32
  }
  func.func @transform_2(%arg0: i32) -> (i32, i32) {
    %c0_i32 = arith.constant 0 : i32
    %c0_i32_0 = arith.constant 0 : i32
    return %arg0, %c0_i32 : i32, i32
  }
  func.func @transform_3(%arg0: i32) -> (i32, i32) {
    %c0_i32 = arith.constant 0 : i32
    %c0_i32_0 = arith.constant 0 : i32
    return %arg0, %c0_i32 : i32, i32
  }
  func.func @transform_4(%arg0: i32) -> (i32, i32) {
    %c0_i32 = arith.constant 0 : i32
    %c0_i32_0 = arith.constant 0 : i32
    %c0_i32_1 = arith.constant 0 : i32
    return %c0_i32, %c0_i32_0 : i32, i32
  }
  func.func @transform_5(%arg0: i32) -> (i32, i32) {
    %c0_i32 = arith.constant 0 : i32
    %c0_i32_0 = arith.constant 0 : i32
    %c0_i32_1 = arith.constant 0 : i32
    return %c0_i32, %c0_i32_0 : i32, i32
  }
  func.func @transform_6(%arg0: i32) -> (i32, i32) {
    %c0_i32 = arith.constant 0 : i32
    %c0_i32_0 = arith.constant 0 : i32
    %c0_i32_1 = arith.constant 0 : i32
    return %c0_i32, %c0_i32_0 : i32, i32
  }
  func.func @transform_7(%arg0: i32) -> (i32, i32) {
    %c0_i32 = arith.constant 0 : i32
    %c0_i32_0 = arith.constant 0 : i32
    %c0_i32_1 = arith.constant 0 : i32
    return %c0_i32, %c0_i32_0 : i32, i32
  }
  func.func @transform_8(%arg0: i32) -> (i32, i32) {
    %c0_i32 = arith.constant 0 : i32
    %c0_i32_0 = arith.constant 0 : i32
    %c0_i32_1 = arith.constant 0 : i32
    return %c0_i32, %c0_i32_0 : i32, i32
  }
  func.func @transform_9(%arg0: i32) -> (i32, i32) {
    %c0_i32 = arith.constant 0 : i32
    %c0_i32_0 = arith.constant 0 : i32
    return %arg0, %c0_i32 : i32, i32
  }
}

</mosaic_0001>

<llo_original>
// kernel: run.1
$region0: #{run.1}
  #allocation0 [shape = 'u32[]', space=smem, size = 0x4, offset = 0x4, fixed_abs, tag = 'smem constant byte address 0x4 - core index']
  #allocation1 [shape = 'u32[144,128]{1,0:T(1,128)}', space=vmem, size = 0x12000, scoped, tag = 'internal scratch']
  %s0 = inlined_call_operand.hbm [shape: f32[256,256], index: 0, kind: input, shape index: {}]
  %s1 = inlined_call_operand.hbm [shape: f32[32,256], index: 1, kind: input, shape index: {}]
  %s2 = inlined_call_operand.hbm [shape: f32[256,128], index: 2, kind: input, shape index: {}]
  %s3 = inlined_call_operand.hbm [shape: f32[32,256], index: 3, kind: input, shape index: {}]
  %s4 = inlined_call_operand.hbm [shape: bf16[832,128], index: 4, kind: input, shape index: {}]
  %s5 = inlined_call_operand.hbm [shape: bf16[80,1024], index: 5, kind: input, shape index: {}]
  %s6 = inlined_call_operand.hbm [shape: bf16[1024,512], index: 6, kind: input, shape index: {}]
  %s7 = inlined_call_operand.hbm [shape: bf16[512,256], index: 7, kind: input, shape index: {}]
  %s8 = inlined_call_operand.hbm [shape: f32[16,1024], index: 8, kind: input, shape index: {}]
  %s9 = inlined_call_operand.vmem [shape: f32[32,128], index: 9, kind: output, shape index: {}]
  %s10 = sld [smem:[#allocation0]]
  $region105: #{run.1} parent=0
    _
  %s12 = ssub.s32 1, %s10
  %s13 = scalar_select 0, %s12, %s10
  $region1: #{run.1} parent=0
    #allocation2 [shape = 'u8[131072]{0}', space=vmem, size = 0x20000, scoped, tag = 'input window, operand 0']
    #allocation3 [shape = 's32[2]{0}', space=sflag, size = 0x8, scoped, tag = 'scoped memory for run.1']
    #allocation4 [shape = 'u8[16384]{0}', space=vmem, size = 0x4000, scoped, tag = 'input window, operand 1']
    #allocation5 [shape = 's32[2]{0}', space=sflag, size = 0x8, scoped, tag = 'scoped memory for run.1']
    #allocation6 [shape = 'u8[131072]{0}', space=vmem, size = 0x20000, scoped, tag = 'input window, operand 2']
    #allocation7 [shape = 'u8[32768]{0}', space=vmem, size = 0x8000, scoped, tag = 'input window, operand 3']
    #allocation8 [shape = 's32[2]{0}', space=sflag, size = 0x8, scoped, tag = 'scoped memory for run.1']
    #allocation9 [shape = 'u8[212992]{0}', space=vmem, size = 0x34000, scoped, tag = 'input window, operand 4, single buffered']
    #allocation10 [shape = 'u8[163840]{0}', space=vmem, size = 0x28000, scoped, tag = 'input window, operand 5, single buffered']
    #allocation11 [shape = 's32[1]{0}', space=sflag, size = 0x4, scoped, tag = 'scoped memory for run.1']
    #allocation12 [shape = 'u8[1048576]{0}', space=vmem, size = 0x100000, scoped, tag = 'input window, operand 6, single buffered']
    #allocation13 [shape = 'u8[262144]{0}', space=vmem, size = 0x40000, scoped, tag = 'input window, operand 7, single buffered']
    #allocation14 [shape = 's32[1]{0}', space=sflag, size = 0x4, scoped, tag = 'scoped memory for run.1']
    #allocation15 [shape = 'u8[65536]{0}', space=vmem, size = 0x10000, scoped, tag = 'input window, operand 8, single buffered']
    %14 = vsyncpa [#allocation3], 0
    %s15 = scalar_lea.sflag [#allocation3], 1
    %16 = vsyncpa %s15, 0
    %17 = vsyncpa [#allocation5], 0
    %s18 = scalar_lea.sflag [#allocation5], 1
    %19 = vsyncpa %s18, 0
    %20 = vsyncpa [#allocation8], 0
    %s21 = scalar_lea.sflag [#allocation8], 1
    %22 = vsyncpa %s21, 0
    %23 = vsyncpa [#allocation11], 0
    %24 = vsyncpa [#allocation14], 0
    loop: start=0, step=1, limit=4
    $region2: #{run.1} parent=1 // loop_pre_header
      _
    $region3: #{run.1} parent=1 // loop_header
      %s26 = sphi 0, %s30
      %p27 = scmp.ge.s32.totalorder %s26, 4
      %s38 = sphi 0, %s40
      %s41 = sphi 0, %s38
      %s42 = sphi 0, %s41
      %s58 = sphi 0, %s42
      %s66 = sphi 0, %s68
      %s69 = sphi 0, %s66
      %s70 = sphi 0, %s69
      %s86 = sphi 0, %s70
      %s92 = sphi 0, %s94
      %s95 = sphi 0, %s92
      %s96 = sphi 0, %s95
      %s112 = sphi 0, %s96
      %s118 = sphi 0, %s120
      %s121 = sphi 0, %s118
      %s122 = sphi 0, %s121
      %s138 = sphi 0, %s122
      %s142 = sphi 0, %s142
      %s144 = sphi 0, %s142
      %s145 = sphi 0, %s144
      %s159 = sphi 0, %s145
      %s163 = sphi 0, %s163
      %s165 = sphi 0, %s163
      %s166 = sphi 0, %s165
      %s180 = sphi 0, %s166
      %s184 = sphi 0, %s184
      %s186 = sphi 0, %s184
      %s187 = sphi 0, %s186
      %s201 = sphi 0, %s187
      %s205 = sphi 0, %s205
      %s207 = sphi 0, %s205
      %s208 = sphi 0, %s207
      %s222 = sphi 0, %s208
      %s226 = sphi 0, %s226
      %s228 = sphi 0, %s226
      %s229 = sphi 0, %s228
      %s243 = sphi 0, %s229
      %s249 = sphi 0, %s251
      %s252 = sphi 0, %s249
      %s253 = sphi 0, %s252
      %s269 = sphi 0, %s253
    $region4: #{run.1} parent=1 // loop_header_branch
      %29 = sbr.rel (%p27) target = $region8
    $region5: #{run.1} parent=1 // loop_body
      %s31 = ssub.s32 %s26, 1
      %s32 = ssub.s32 %s26, 2
      %s33 = sadd.s32 %s26, 1
      %s34 = ssub.s32 %s26, %s33
      %s35 = ssub.s32 %s26, %s33
      %s36 = sor.u32 %s34, %s35
      %p37 = scmp.eq.s32.totalorder %s36, 0
      %s39 = sadd.s32 %s38, 1
      %s40 = scalar_select %p37, %s38, %s39
      %p43 = pneg %p37
      %p44 = scmp.eq.s32.totalorder %s26, 1
      %p45 = por %p43, %p44
      %p46 = scmp.ne.s32.totalorder %s38, %s41
      %p47 = scmp.eq.s32.totalorder %s26, 0
      %p48 = por %p46, %p47
      %p49 = scmp.ne.s32.totalorder %s38, %s41
      %p50 = scmp.eq.s32.totalorder %s31, 1
      %p51 = por %p49, %p50
      %p52 = scmp.ne.s32.totalorder %s41, %s42
      %p53 = scmp.eq.s32.totalorder %s31, 0
      %p54 = por %p52, %p53
      %p55 = scmp.ne.s32.totalorder %s41, %s42
      %p56 = scmp.eq.s32.totalorder %s32, 1
      %p57 = por %p55, %p56
      %p59 = scmp.ne.s32.totalorder %s42, %s58
      %p60 = scmp.eq.s32.totalorder %s32, 0
      %p61 = por %p59, %p60
      %s62 = ssub.s32 %s26, %s33
      %s63 = ssub.s32 %s26, %s33
      %s64 = sor.u32 %s62, %s63
      %p65 = scmp.eq.s32.totalorder %s64, 0
      %s67 = sadd.s32 %s66, 1
      %s68 = scalar_select %p65, %s66, %s67
      %p71 = pneg %p65
      %p72 = scmp.eq.s32.totalorder %s26, 1
      %p73 = por %p71, %p72
      %p74 = scmp.ne.s32.totalorder %s66, %s69
      %p75 = scmp.eq.s32.totalorder %s26, 0
      %p76 = por %p74, %p75
      %p77 = scmp.ne.s32.totalorder %s66, %s69
      %p78 = scmp.eq.s32.totalorder %s31, 1
      %p79 = por %p77, %p78
      %p80 = scmp.ne.s32.totalorder %s69, %s70
      %p81 = scmp.eq.s32.totalorder %s31, 0
      %p82 = por %p80, %p81
      %p83 = scmp.ne.s32.totalorder %s69, %s70
      %p84 = scmp.eq.s32.totalorder %s32, 1
      %p85 = por %p83, %p84
      %p87 = scmp.ne.s32.totalorder %s70, %s86
      %p88 = scmp.eq.s32.totalorder %s32, 0
      %p89 = por %p87, %p88
      %s90 = ssub.s32 %s26, %s33
      %p91 = scmp.eq.s32.totalorder %s90, 0
      %s93 = sadd.s32 %s92, 1
      %s94 = scalar_select %p91, %s92, %s93
      %p97 = pneg %p91
      %p98 = scmp.eq.s32.totalorder %s26, 1
      %p99 = por %p97, %p98
      %p100 = scmp.ne.s32.totalorder %s92, %s95
      %p101 = scmp.eq.s32.totalorder %s26, 0
      %p102 = por %p100, %p101
      %p103 = scmp.ne.s32.totalorder %s92, %s95
      %p104 = scmp.eq.s32.totalorder %s31, 1
      %p105 = por %p103, %p104
      %p106 = scmp.ne.s32.totalorder %s95, %s96
      %p107 = scmp.eq.s32.totalorder %s31, 0
      %p108 = por %p106, %p107
      %p109 = scmp.ne.s32.totalorder %s95, %s96
      %p110 = scmp.eq.s32.totalorder %s32, 1
      %p111 = por %p109, %p110
      %p113 = scmp.ne.s32.totalorder %s96, %s112
      %p114 = scmp.eq.s32.totalorder %s32, 0
      %p115 = por %p113, %p114
      %s116 = ssub.s32 %s26, %s33
      %p117 = scmp.eq.s32.totalorder %s116, 0
      %s119 = sadd.s32 %s118, 1
      %s120 = scalar_select %p117, %s118, %s119
      %p123 = pneg %p117
      %p124 = scmp.eq.s32.totalorder %s26, 1
      %p125 = por %p123, %p124
      %p126 = scmp.ne.s32.totalorder %s118, %s121
      %p127 = scmp.eq.s32.totalorder %s26, 0
      %p128 = por %p126, %p127
      %p129 = scmp.ne.s32.totalorder %s118, %s121
      %p130 = scmp.eq.s32.totalorder %s31, 1
      %p131 = por %p129, %p130
      %p132 = scmp.ne.s32.totalorder %s121, %s122
      %p133 = scmp.eq.s32.totalorder %s31, 0
      %p134 = por %p132, %p133
      %p135 = scmp.ne.s32.totalorder %s121, %s122
      %p136 = scmp.eq.s32.totalorder %s32, 1
      %p137 = por %p135, %p136
      %p139 = scmp.ne.s32.totalorder %s122, %s138
      %p140 = scmp.eq.s32.totalorder %s32, 0
      %p141 = por %p139, %p140
      %s143 = sadd.s32 %s142, 1
      %p146 = scmp.eq.s32.totalorder %s26, 1
      %p147 = scmp.ne.s32.totalorder %s142, %s144
      %p148 = scmp.eq.s32.totalorder %s26, 0
      %p149 = por %p147, %p148
      %p150 = scmp.ne.s32.totalorder %s142, %s144
      %p151 = scmp.eq.s32.totalorder %s31, 1
      %p152 = por %p150, %p151
      %p153 = scmp.ne.s32.totalorder %s144, %s145
      %p154 = scmp.eq.s32.totalorder %s31, 0
      %p155 = por %p153, %p154
      %p156 = scmp.ne.s32.totalorder %s144, %s145
      %p157 = scmp.eq.s32.totalorder %s32, 1
      %p158 = por %p156, %p157
      %p160 = scmp.ne.s32.totalorder %s145, %s159
      %p161 = scmp.eq.s32.totalorder %s32, 0
      %p162 = por %p160, %p161
      %s164 = sadd.s32 %s163, 1
      %p167 = scmp.eq.s32.totalorder %s26, 1
      %p168 = scmp.ne.s32.totalorder %s163, %s165
      %p169 = scmp.eq.s32.totalorder %s26, 0
      %p170 = por %p168, %p169
      %p171 = scmp.ne.s32.totalorder %s163, %s165
      %p172 = scmp.eq.s32.totalorder %s31, 1
      %p173 = por %p171, %p172
      %p174 = scmp.ne.s32.totalorder %s165, %s166
      %p175 = scmp.eq.s32.totalorder %s31, 0
      %p176 = por %p174, %p175
      %p177 = scmp.ne.s32.totalorder %s165, %s166
      %p178 = scmp.eq.s32.totalorder %s32, 1
      %p179 = por %p177, %p178
      %p181 = scmp.ne.s32.totalorder %s166, %s180
      %p182 = scmp.eq.s32.totalorder %s32, 0
      %p183 = por %p181, %p182
      %s185 = sadd.s32 %s184, 1
      %p188 = scmp.eq.s32.totalorder %s26, 1
      %p189 = scmp.ne.s32.totalorder %s184, %s186
      %p190 = scmp.eq.s32.totalorder %s26, 0
      %p191 = por %p189, %p190
      %p192 = scmp.ne.s32.totalorder %s184, %s186
      %p193 = scmp.eq.s32.totalorder %s31, 1
      %p194 = por %p192, %p193
      %p195 = scmp.ne.s32.totalorder %s186, %s187
      %p196 = scmp.eq.s32.totalorder %s31, 0
      %p197 = por %p195, %p196
      %p198 = scmp.ne.s32.totalorder %s186, %s187
      %p199 = scmp.eq.s32.totalorder %s32, 1
      %p200 = por %p198, %p199
      %p202 = scmp.ne.s32.totalorder %s187, %s201
      %p203 = scmp.eq.s32.totalorder %s32, 0
      %p204 = por %p202, %p203
      %s206 = sadd.s32 %s205, 1
      %p209 = scmp.eq.s32.totalorder %s26, 1
      %p210 = scmp.ne.s32.totalorder %s205, %s207
      %p211 = scmp.eq.s32.totalorder %s26, 0
      %p212 = por %p210, %p211
      %p213 = scmp.ne.s32.totalorder %s205, %s207
      %p214 = scmp.eq.s32.totalorder %s31, 1
      %p215 = por %p213, %p214
      %p216 = scmp.ne.s32.totalorder %s207, %s208
      %p217 = scmp.eq.s32.totalorder %s31, 0
      %p218 = por %p216, %p217
      %p219 = scmp.ne.s32.totalorder %s207, %s208
      %p220 = scmp.eq.s32.totalorder %s32, 1
      %p221 = por %p219, %p220
      %p223 = scmp.ne.s32.totalorder %s208, %s222
      %p224 = scmp.eq.s32.totalorder %s32, 0
      %p225 = por %p223, %p224
      %s227 = sadd.s32 %s226, 1
      %p230 = scmp.eq.s32.totalorder %s26, 1
      %p231 = scmp.ne.s32.totalorder %s226, %s228
      %p232 = scmp.eq.s32.totalorder %s26, 0
      %p233 = por %p231, %p232
      %p234 = scmp.ne.s32.totalorder %s226, %s228
      %p235 = scmp.eq.s32.totalorder %s31, 1
      %p236 = por %p234, %p235
      %p237 = scmp.ne.s32.totalorder %s228, %s229
      %p238 = scmp.eq.s32.totalorder %s31, 0
      %p239 = por %p237, %p238
      %p240 = scmp.ne.s32.totalorder %s228, %s229
      %p241 = scmp.eq.s32.totalorder %s32, 1
      %p242 = por %p240, %p241
      %p244 = scmp.ne.s32.totalorder %s229, %s243
      %p245 = scmp.eq.s32.totalorder %s32, 0
      %p246 = por %p244, %p245
      %s247 = ssub.s32 %s26, %s33
      %p248 = scmp.eq.s32.totalorder %s247, 0
      %s250 = sadd.s32 %s249, 1
      %s251 = scalar_select %p248, %s249, %s250
      %p254 = pneg %p248
      %p255 = scmp.eq.s32.totalorder %s26, 1
      %p256 = por %p254, %p255
      %p257 = scmp.ne.s32.totalorder %s249, %s252
      %p258 = scmp.eq.s32.totalorder %s26, 0
      %p259 = por %p257, %p258
      %p260 = scmp.ne.s32.totalorder %s249, %s252
      %p261 = scmp.eq.s32.totalorder %s31, 1
      %p262 = por %p260, %p261
      %p263 = scmp.ne.s32.totalorder %s252, %s253
      %p264 = scmp.eq.s32.totalorder %s31, 0
      %p265 = por %p263, %p264
      %p266 = scmp.ne.s32.totalorder %s252, %s253
      %p267 = scmp.eq.s32.totalorder %s32, 1
      %p268 = por %p266, %p267
      %p270 = scmp.ne.s32.totalorder %s253, %s269
      %p271 = scmp.eq.s32.totalorder %s32, 0
      %p272 = por %p270, %p271
      %p273 = scmp.le.s32.totalorder 1, %s26
      %p274 = scmp.lt.s32.totalorder %s26, 3
      %p275 = pnand %p273, %p274
      %p276 = pneg %p275
      // Predicated region
      $region9: #{run.1} parent=5 // pred_check
        _
      $region10: #{run.1} parent=5 // pred_check_branch
        %278 = sbr.rel (%p275) target = $region12
      $region11: #{run.1} parent=5 // pred_region
        %s279 = ssub.s32 %s26, 1
        // Predicated region
        $region13: #{run.1} parent=11 // pred_check
          %p280 = pneg %p155
        $region14: #{run.1} parent=11 // pred_check_branch
          %282 = sbr.rel (%p280) target = $region16
        $region15: #{run.1} parent=11 // pred_region
          %s284 = ssub.s32 6656, 6656
          %285 = vsyncadd [#allocation8], %s284
          %s286 = sshll.u32 [#allocation9], 4
          %s287 = int_to_ptr.vmem [resolvable:$true] %s286
          %292 = dma.hbm_to_vmem [thread:$0]  %s4, 6656, %s287, [#allocation8], 64, 64, 4
        $region16: #{run.1} parent=11 // pred_fallthru
          _
        // Predicated region
        $region17: #{run.1} parent=11 // pred_check
          %p293 = pneg %p176
        $region18: #{run.1} parent=11 // pred_check_branch
          %295 = sbr.rel (%p293) target = $region20
        $region19: #{run.1} parent=11 // pred_region
          %s297 = ssub.s32 5120, 5120
          %298 = vsyncadd [#allocation11], %s297
          %s299 = sshll.u32 [#allocation10], 4
          %s300 = int_to_ptr.vmem [resolvable:$true] %s299
          %305 = dma.hbm_to_vmem [thread:$0]  %s5, 5120, %s300, [#allocation11], 512, 512, 32
        $region20: #{run.1} parent=11 // pred_fallthru
          _
        // Predicated region
        $region21: #{run.1} parent=11 // pred_check
          %p306 = pneg %p197
        $region22: #{run.1} parent=11 // pred_check_branch
          %308 = sbr.rel (%p306) target = $region24
        $region23: #{run.1} parent=11 // pred_region
          %s310 = ssub.s32 32768, 32768
          %311 = vsyncadd [#allocation11], %s310
          %s312 = sshll.u32 [#allocation12], 4
          %s313 = int_to_ptr.vmem [resolvable:$true] %s312
          %318 = dma.hbm_to_vmem [thread:$0]  %s6, 32768, %s313, [#allocation11], 256, 256, 16
        $region24: #{run.1} parent=11 // pred_fallthru
          _
        // Predicated region
        $region25: #{run.1} parent=11 // pred_check
          %p319 = pneg %p218
        $region26: #{run.1} parent=11 // pred_check_branch
          %321 = sbr.rel (%p319) target = $region28
        $region27: #{run.1} parent=11 // pred_region
          %s323 = ssub.s32 8192, 8192
          %324 = vsyncadd [#allocation14], %s323
          %s325 = sshll.u32 [#allocation13], 4
          %s326 = int_to_ptr.vmem [resolvable:$true] %s325
          %331 = dma.hbm_to_vmem [thread:$0]  %s7, 8192, %s326, [#allocation14], 128, 128, 8
        $region28: #{run.1} parent=11 // pred_fallthru
          _
        // Predicated region
        $region29: #{run.1} parent=11 // pred_check
          %p332 = pneg %p239
        $region30: #{run.1} parent=11 // pred_check_branch
          %334 = sbr.rel (%p332) target = $region32
        $region31: #{run.1} parent=11 // pred_region
          %s336 = ssub.s32 2048, 2048
          %337 = vsyncadd [#allocation14], %s336
          %s338 = sshll.u32 [#allocation15], 4
          %s339 = int_to_ptr.vmem [resolvable:$true] %s338
          %344 = dma.hbm_to_vmem [thread:$0]  %s8, 2048, %s339, [#allocation14], 1024, 1024, 64
        $region32: #{run.1} parent=11 // pred_fallthru
          _
      $region12: #{run.1} parent=5 // pred_fallthru
        _
      %p345 = scmp.lt.s32.totalorder %s26, 2
      // Predicated region
      $region33: #{run.1} parent=5 // pred_check
        %p346 = pneg %p345
      $region34: #{run.1} parent=5 // pred_check_branch
        %348 = sbr.rel (%p346) target = $region36
      $region35: #{run.1} parent=5 // pred_region
        // Predicated region
        $region37: #{run.1} parent=35 // pred_check
          %p349 = pneg %p48
        $region38: #{run.1} parent=35 // pred_check_branch
          %351 = sbr.rel (%p349) target = $region40
        $region39: #{run.1} parent=35 // pred_region
          %s352 = sand.u32 %s38, 1
          %s353 = scalar_lea.sflag [#allocation3], %s352
          %s354 = sand.u32 %s38, 1
          %s355 = smul.addr %s354, 128
          %s356 = scalar_lea.vmem [#allocation2], %s355
          %s357 = smul.u32 16, %s26
          %s359 = ssub.s32 2048, 2048
          %360 = vsyncadd %s353, %s359
          %s361 = smul.addr %s357, 2
          %s362 = sadd.s32 %s26, %s361
          %s363 = smul.addr %s362, 128
          %s364 = scalar_lea.hbm %s0, %s363
          %s365 = sshll.u32 %s356, 4
          %s366 = int_to_ptr.vmem [resolvable:$true] %s365
          %371 = dma.hbm_to_vmem [thread:$0]  %s364, 2048, %s366, %s353, 256, 128, 8
        $region40: #{run.1} parent=35 // pred_fallthru
          _
        // Predicated region
        $region41: #{run.1} parent=35 // pred_check
          %p372 = pneg %p76
        $region42: #{run.1} parent=35 // pred_check_branch
          %374 = sbr.rel (%p372) target = $region44
        $region43: #{run.1} parent=35 // pred_region
          %s375 = sand.u32 %s26, 1
          %s376 = scalar_lea.sflag [#allocation5], %s375
          %s377 = sand.u32 %s66, 1
          %s378 = smul.addr %s377, 16
          %s379 = scalar_lea.vmem [#allocation4], %s378
          %s380 = smul.u32 2, %s26
          %s382 = ssub.s32 256, 256
          %383 = vsyncadd %s376, %s382
          %s384 = smul.addr %s380, 2
          %s385 = sadd.s32 %s26, %s384
          %s386 = smul.addr %s385, 128
          %s387 = scalar_lea.hbm %s1, %s386
          %s388 = sshll.u32 %s379, 4
          %s389 = int_to_ptr.vmem [resolvable:$true] %s388
          %394 = dma.hbm_to_vmem [thread:$0]  %s387, 256, %s389, %s376, 256, 128, 8
        $region44: #{run.1} parent=35 // pred_fallthru
          _
        // Predicated region
        $region45: #{run.1} parent=35 // pred_check
          %p395 = pneg %p102
        $region46: #{run.1} parent=35 // pred_check_branch
          %397 = sbr.rel (%p395) target = $region48
        $region47: #{run.1} parent=35 // pred_region
          %s398 = sand.u32 %s26, 1
          %s399 = scalar_lea.sflag [#allocation5], %s398
          %s400 = sand.u32 %s92, 1
          %s401 = smul.addr %s400, 128
          %s402 = scalar_lea.vmem [#allocation6], %s401
          %s403 = smul.u32 16, %s26
          %s405 = ssub.s32 2048, 2048
          %406 = vsyncadd %s399, %s405
          %s407 = smul.addr %s403, 128
          %s408 = scalar_lea.hbm %s2, %s407
          %s409 = sshll.u32 %s402, 4
          %s410 = int_to_ptr.vmem [resolvable:$true] %s409
          %415 = dma.hbm_to_vmem [thread:$0]  %s408, 2048, %s410, %s399, 128, 128, 8
        $region48: #{run.1} parent=35 // pred_fallthru
          _
        // Predicated region
        $region49: #{run.1} parent=35 // pred_check
          %p416 = pneg %p128
        $region50: #{run.1} parent=35 // pred_check_branch
          %418 = sbr.rel (%p416) target = $region52
        $region51: #{run.1} parent=35 // pred_region
          %s419 = sand.u32 %s26, 1
          %s420 = scalar_lea.sflag [#allocation8], %s419
          %s421 = sand.u32 %s118, 1
          %s422 = smul.addr %s421, 32
          %s423 = scalar_lea.vmem [#allocation7], %s422
          %s424 = smul.u32 2, %s26
          %s426 = ssub.s32 512, 512
          %427 = vsyncadd %s420, %s426
          %s428 = smul.addr %s424, 2
          %s429 = smul.addr %s428, 128
          %s430 = scalar_lea.hbm %s3, %s429
          %s431 = sshll.u32 %s423, 4
          %s432 = int_to_ptr.vmem [resolvable:$true] %s431
          %437 = dma.hbm_to_vmem [thread:$0]  %s430, 512, %s432, %s420, 256, 256, 16
        $region52: #{run.1} parent=35 // pred_fallthru
          _
      $region36: #{run.1} parent=5 // pred_fallthru
        _
      %p438 = scmp.le.s32.totalorder 1, %s26
      %p439 = scmp.lt.s32.totalorder %s26, 3
      %p440 = pnand %p438, %p439
      %p441 = pneg %p440
      // Predicated region
      $region53: #{run.1} parent=5 // pred_check
        _
      $region54: #{run.1} parent=5 // pred_check_branch
        %443 = sbr.rel (%p440) target = $region56
      $region55: #{run.1} parent=5 // pred_region
        %s444 = ssub.s32 %s26, 1
        %s445 = sand.u32 %s41, 1
        %s446 = scalar_lea.sflag [#allocation3], %s445
        %s447 = sand.u32 %s41, 1
        %s448 = smul.addr %s447, 128
        %s449 = scalar_lea.vmem [#allocation2], %s448
        // Predicated region
        $region57: #{run.1} parent=55 // pred_check
          %p450 = pneg %p54
        $region58: #{run.1} parent=55 // pred_check_branch
          %452 = sbr.rel (%p450) target = $region60
        $region59: #{run.1} parent=55 // pred_region
          %453 = dma.done %s446, 2048
        $region60: #{run.1} parent=55 // pred_fallthru
          _
        %s454 = sand.u32 %s31, 1
        %s455 = scalar_lea.sflag [#allocation5], %s454
        %s456 = sand.u32 %s69, 1
        %s457 = smul.addr %s456, 16
        %s458 = scalar_lea.vmem [#allocation4], %s457
        // Predicated region
        $region61: #{run.1} parent=55 // pred_check
          %p459 = pneg %p82
        $region62: #{run.1} parent=55 // pred_check_branch
          %461 = sbr.rel (%p459) target = $region64
        $region63: #{run.1} parent=55 // pred_region
          %462 = dma.done %s455, 256
        $region64: #{run.1} parent=55 // pred_fallthru
          _
        %s463 = sand.u32 %s31, 1
        %s464 = scalar_lea.sflag [#allocation5], %s463
        %s465 = sand.u32 %s95, 1
        %s466 = smul.addr %s465, 128
        %s467 = scalar_lea.vmem [#allocation6], %s466
        // Predicated region
        $region65: #{run.1} parent=55 // pred_check
          %p468 = pneg %p108
        $region66: #{run.1} parent=55 // pred_check_branch
          %470 = sbr.rel (%p468) target = $region68
        $region67: #{run.1} parent=55 // pred_region
          %471 = dma.done %s464, 2048
        $region68: #{run.1} parent=55 // pred_fallthru
          _
        %s472 = sand.u32 %s31, 1
        %s473 = scalar_lea.sflag [#allocation8], %s472
        %s474 = sand.u32 %s121, 1
        %s475 = smul.addr %s474, 32
        %s476 = scalar_lea.vmem [#allocation7], %s475
        // Predicated region
        $region69: #{run.1} parent=55 // pred_check
          %p477 = pneg %p134
        $region70: #{run.1} parent=55 // pred_check_branch
          %479 = sbr.rel (%p477) target = $region72
        $region71: #{run.1} parent=55 // pred_region
          %480 = dma.done %s473, 512
        $region72: #{run.1} parent=55 // pred_fallthru
          _
        // Predicated region
        $region73: #{run.1} parent=55 // pred_check
          %p481 = pneg %p155
        $region74: #{run.1} parent=55 // pred_check_branch
          %483 = sbr.rel (%p481) target = $region76
        $region75: #{run.1} parent=55 // pred_region
          %484 = dma.done [#allocation8], 6656
        $region76: #{run.1} parent=55 // pred_fallthru
          _
        // Predicated region
        $region77: #{run.1} parent=55 // pred_check
          %p485 = pneg %p176
        $region78: #{run.1} parent=55 // pred_check_branch
          %487 = sbr.rel (%p485) target = $region80
        $region79: #{run.1} parent=55 // pred_region
          %488 = dma.done [#allocation11], 5120
        $region80: #{run.1} parent=55 // pred_fallthru
          _
        // Predicated region
        $region81: #{run.1} parent=55 // pred_check
          %p489 = pneg %p197
        $region82: #{run.1} parent=55 // pred_check_branch
          %491 = sbr.rel (%p489) target = $region84
        $region83: #{run.1} parent=55 // pred_region
          %492 = dma.done [#allocation11], 32768
        $region84: #{run.1} parent=55 // pred_fallthru
          _
        // Predicated region
        $region85: #{run.1} parent=55 // pred_check
          %p493 = pneg %p218
        $region86: #{run.1} parent=55 // pred_check_branch
          %495 = sbr.rel (%p493) target = $region88
        $region87: #{run.1} parent=55 // pred_region
          %496 = dma.done [#allocation14], 8192
        $region88: #{run.1} parent=55 // pred_fallthru
          _
        // Predicated region
        $region89: #{run.1} parent=55 // pred_check
          %p497 = pneg %p239
        $region90: #{run.1} parent=55 // pred_check_branch
          %499 = sbr.rel (%p497) target = $region92
        $region91: #{run.1} parent=55 // pred_region
          %500 = dma.done [#allocation14], 2048
        $region92: #{run.1} parent=55 // pred_fallthru
          _
        %s501 = sand.u32 %s41, 1
        %s502 = scalar_lea.sflag [#allocation3], %s501
        %s503 = sand.u32 %s41, 1
        %s504 = smul.addr %s503, 128
        %s505 = scalar_lea.vmem [#allocation2], %s504
        %p506 = pneg %p54
        %p507 = pneg %p51
        %s508 = sand.u32 %s31, 1
        %s509 = scalar_lea.sflag [#allocation5], %s508
        %s510 = sand.u32 %s69, 1
        %s511 = smul.addr %s510, 16
        %s512 = scalar_lea.vmem [#allocation4], %s511
        %p513 = pneg %p82
        %p514 = pneg %p79
        %s515 = sand.u32 %s31, 1
        %s516 = scalar_lea.sflag [#allocation5], %s515
        %s517 = sand.u32 %s95, 1
        %s518 = smul.addr %s517, 128
        %s519 = scalar_lea.vmem [#allocation6], %s518
        %p520 = pneg %p108
        %p521 = pneg %p105
        %s522 = sand.u32 %s31, 1
        %s523 = scalar_lea.sflag [#allocation8], %s522
        %s524 = sand.u32 %s121, 1
        %s525 = smul.addr %s524, 32
        %s526 = scalar_lea.vmem [#allocation7], %s525
        %p527 = pneg %p134
        %p528 = pneg %p131
        %p529 = pneg %p155
        %p530 = pneg %p152
        %p531 = pneg %p176
        %p532 = pneg %p173
        %p533 = pneg %p197
        %p534 = pneg %p194
        %p535 = pneg %p218
        %p536 = pneg %p215
        %p537 = pneg %p239
        %p538 = pneg %p236
        %p539 = pneg %p265
        %p540 = pneg %p262
        %s541 = smul.u32 2, %s31
        %p542 = scmp.lt.s32.totalorder %s541, 3
        %s543 = scalar_select %p542, %s541, 3
        %s544 = smul.addr %s543, 8
        %s545 = scalar_lea.vmem %s9, %s544
        %s546 = smul.u32 16, %s31
        %s547 = smul.u32 2, %s31
        %s548 = smul.u32 16, %s31
        %s549 = smul.u32 2, %s31
        %s550 = smul.u32 2, %s31
        %p551 = scmp.lt.s32.totalorder %s550, 3
        %s552 = scalar_select %p551, %s550, 3
        %s553 = smul.addr %s552, 8
        %s554 = scalar_lea.vmem %s9, %s553
        %s555 = smul.u32 2, %s31
        %v557 = vld [vmem:[%s449] sm:$0xff]
        %v558 = vld [vmem:[%s449 + $0x8] sm:$0xff]
        %v559 = vld [vmem:[%s449 + $0x10] sm:$0xff]
        %v560 = vld [vmem:[%s449 + $0x18] sm:$0xff]
        %v561 = vld [vmem:[%s449 + $0x20] sm:$0xff]
        %v562 = vld [vmem:[%s449 + $0x28] sm:$0xff]
        %v563 = vld [vmem:[%s449 + $0x30] sm:$0xff]
        %v564 = vld [vmem:[%s449 + $0x38] sm:$0xff]
        %v565 = vld [vmem:[%s449 + $0x40] sm:$0xff]
        %v566 = vld [vmem:[%s449 + $0x48] sm:$0xff]
        %v567 = vld [vmem:[%s449 + $0x50] sm:$0xff]
        %v568 = vld [vmem:[%s449 + $0x58] sm:$0xff]
        %v569 = vld [vmem:[%s449 + $0x60] sm:$0xff]
        %v570 = vld [vmem:[%s449 + $0x68] sm:$0xff]
        %v571 = vld [vmem:[%s449 + $0x70] sm:$0xff]
        %v572 = vld [vmem:[%s449 + $0x78] sm:$0xff]
        %v573 = vld [vmem:[%s467] sm:$0xff]
        %v574 = vld [vmem:[%s467 + $0x8] sm:$0xff]
        %v575 = vld [vmem:[%s467 + $0x10] sm:$0xff]
        %v576 = vld [vmem:[%s467 + $0x18] sm:$0xff]
        %v577 = vld [vmem:[%s467 + $0x20] sm:$0xff]
        %v578 = vld [vmem:[%s467 + $0x28] sm:$0xff]
        %v579 = vld [vmem:[%s467 + $0x30] sm:$0xff]
        %v580 = vld [vmem:[%s467 + $0x38] sm:$0xff]
        %v581 = vld [vmem:[%s467 + $0x40] sm:$0xff]
        %v582 = vld [vmem:[%s467 + $0x48] sm:$0xff]
        %v583 = vld [vmem:[%s467 + $0x50] sm:$0xff]
        %v584 = vld [vmem:[%s467 + $0x58] sm:$0xff]
        %v585 = vld [vmem:[%s467 + $0x60] sm:$0xff]
        %v586 = vld [vmem:[%s467 + $0x68] sm:$0xff]
        %v587 = vld [vmem:[%s467 + $0x70] sm:$0xff]
        %v588 = vld [vmem:[%s467 + $0x78] sm:$0xff]
        %v589 = vld [vmem:[#allocation9] sm:$0xf]
        %v590 = vld [vmem:[#allocation9 + $0x4] sm:$0xf]
        %v591 = vld [vmem:[#allocation9 + $0x8] sm:$0xf]
        %v592 = vld [vmem:[#allocation9 + $0xc] sm:$0xf]
        %v593 = vpack.c.bf16 %v574, %v573
        %v594 = vpack.c.bf16 %v576, %v575
        %v595 = vpack.c.bf16 %v578, %v577
        %v596 = vpack.c.bf16 %v580, %v579
        %v597 = vpack.c.bf16 %v582, %v581
        %v598 = vpack.c.bf16 %v584, %v583
        %v599 = vpack.c.bf16 %v586, %v585
        %v600 = vpack.c.bf16 %v588, %v587
        %v605 = vunpack.c.l.b16 %v589
        %v606 = vunpack.c.l.b16 %v590
        %v607 = vunpack.c.l.b16 %v591
        %v608 = vunpack.c.l.b16 %v592
        %v609 = vpack.c.b16 %v606, %v605
        %v610 = vpack.c.b16 %v608, %v607
        %vm613 = vcmask 261120
        %v615 = vsel %vm613, %v593, 0
        %v618 = vsel %vm613, %v594, 0
        %v621 = vsel %vm613, %v595, 0
        %v624 = vsel %vm613, %v596, 0
        %v627 = vsel %vm613, %v597, 0
        %v630 = vsel %vm613, %v598, 0
        %v633 = vsel %vm613, %v599, 0
        %v636 = vsel %vm613, %v600, 0
        %638 = vmatprep.subr.bf16.mxu0 0
        %639 = vmatpush1.bf16.msra.mxu0 %v609
        %640 = vmatprep.subr.bf16.mxu0 0
        %641 = vmatpush1.bf16.msra.mxu0 %v610
        %642 = vmatprep.subr.bf16.mxu0 0
        %643 = vmatpush1.bf16.msra.mxu0 0
        %644 = vmatprep.subr.bf16.mxu0 0
        %645 = vmatpush1.bf16.msra.mxu0 0
        %646 = vmatprep.subr.bf16.mxu0 0
        %647 = vmatpush1.bf16.msra.mxu0 0
        %648 = vmatprep.subr.bf16.mxu0 0
        %649 = vmatpush1.bf16.msra.mxu0 0
        %650 = vmatprep.subr.bf16.mxu0 0
        %651 = vmatpush1.bf16.msra.mxu0 0
        %652 = vmatprep.subr.bf16.mxu0 0
        %653 = vmatpush1.bf16.msra.mxu0 0
        %654 = vmatprep.subr.bf16.mxu0 0
        %655 = vmatpush1.bf16.msra.mxu0 0
        %656 = vmatprep.subr.bf16.mxu0 0
        %657 = vmatpush1.bf16.msra.mxu0 0
        %658 = vmatprep.subr.bf16.mxu0 0
        %659 = vmatpush1.bf16.msra.mxu0 0
        %660 = vmatprep.subr.bf16.mxu0 0
        %661 = vmatpush1.bf16.msra.mxu0 0
        %662 = vmatprep.subr.bf16.mxu0 0
        %663 = vmatpush1.bf16.msra.mxu0 0
        %664 = vmatprep.subr.bf16.mxu0 0
        %665 = vmatpush1.bf16.msra.mxu0 0
        %666 = vmatprep.subr.bf16.mxu0 0
        %667 = vmatpush1.bf16.msra.mxu0 0
        %668 = vmatprep.subr.bf16.mxu0 0
        %669 = vmatpush1.bf16.msra.mxu0 0
        %670 = vmatprep.mubr.bf16.mxu0 0
        %671 = vmatmul.mubr.bf16.gmra.mrb[0].mxu0 %v615
        %v672 = vpop.f32.mrb[0].mxu0
        %v673 = vadd.f32 0.0, %v672
        %v674 = vpop.f32.mrb[0].mxu0
        %v675 = vpop.f32.mrb[0].mxu0
        %v676 = vadd.f32 0.0, %v675
        %v677 = vpop.f32.mrb[0].mxu0
        %678 = vmatprep.mubr.bf16.mxu0 0
        %679 = vmatmul.mubr.bf16.gmra.mrb[0].mxu0 %v618
        %v680 = vpop.f32.mrb[0].mxu0
        %v681 = vadd.f32 0.0, %v680
        %v682 = vpop.f32.mrb[0].mxu0
        %v683 = vpop.f32.mrb[0].mxu0
        %v684 = vadd.f32 0.0, %v683
        %v685 = vpop.f32.mrb[0].mxu0
        %686 = vmatprep.mubr.bf16.mxu0 0
        %687 = vmatmul.mubr.bf16.gmra.mrb[0].mxu0 %v621
        %v688 = vpop.f32.mrb[0].mxu0
        %v689 = vadd.f32 0.0, %v688
        %v690 = vpop.f32.mrb[0].mxu0
        %v691 = vpop.f32.mrb[0].mxu0
        %v692 = vadd.f32 0.0, %v691
        %v693 = vpop.f32.mrb[0].mxu0
        %694 = vmatprep.mubr.bf16.mxu0 0
        %695 = vmatmul.mubr.bf16.gmra.mrb[0].mxu0 %v624
        %v696 = vpop.f32.mrb[0].mxu0
        %v697 = vadd.f32 0.0, %v696
        %v698 = vpop.f32.mrb[0].mxu0
        %v699 = vpop.f32.mrb[0].mxu0
        %v700 = vadd.f32 0.0, %v699
        %v701 = vpop.f32.mrb[0].mxu0
        %702 = vmatprep.mubr.bf16.mxu0 0
        %703 = vmatmul.mubr.bf16.gmra.mrb[0].mxu0 %v627
        %v704 = vpop.f32.mrb[0].mxu0
        %v705 = vadd.f32 0.0, %v704
        %v706 = vpop.f32.mrb[0].mxu0
        %v707 = vpop.f32.mrb[0].mxu0
        %v708 = vadd.f32 0.0, %v707
        %v709 = vpop.f32.mrb[0].mxu0
        %710 = vmatprep.mubr.bf16.mxu0 0
        %711 = vmatmul.mubr.bf16.gmra.mrb[0].mxu0 %v630
        %v712 = vpop.f32.mrb[0].mxu0
        %v713 = vadd.f32 0.0, %v712
        %v714 = vpop.f32.mrb[0].mxu0
        %v715 = vpop.f32.mrb[0].mxu0
        %v716 = vadd.f32 0.0, %v715
        %v717 = vpop.f32.mrb[0].mxu0
        %718 = vmatprep.mubr.bf16.mxu0 0
        %719 = vmatmul.mubr.bf16.gmra.mrb[0].mxu0 %v633
        %v720 = vpop.f32.mrb[0].mxu0
        %v721 = vadd.f32 0.0, %v720
        %v722 = vpop.f32.mrb[0].mxu0
        %v723 = vpop.f32.mrb[0].mxu0
        %v724 = vadd.f32 0.0, %v723
        %v725 = vpop.f32.mrb[0].mxu0
        %726 = vmatprep.mubr.bf16.mxu0 0
        %727 = vmatmul.mubr.bf16.gmra.mrb[0].mxu0 %v636
        %v728 = vpop.f32.mrb[0].mxu0
        %v729 = vadd.f32 0.0, %v728
        %v730 = vpop.f32.mrb[0].mxu0
        %v731 = vpop.f32.mrb[0].mxu0
        %v732 = vadd.f32 0.0, %v731
        %v733 = vpop.f32.mrb[0].mxu0
        %734 = vdwg.mxu0
        %v735 = vpack.c.bf16 %v558, %v557
        %v736 = vpack.c.bf16 %v560, %v559
        %v737 = vpack.c.bf16 %v562, %v561
        %v738 = vpack.c.bf16 %v564, %v563
        %v739 = vpack.c.bf16 %v566, %v565
        %v740 = vpack.c.bf16 %v568, %v567
        %v741 = vpack.c.bf16 %v570, %v569
        %v742 = vpack.c.bf16 %v572, %v571
        %v743 = vpack.c.bf16 %v676, %v673
        %v744 = vpack.c.bf16 %v684, %v681
        %v745 = vpack.c.bf16 %v692, %v689
        %v746 = vpack.c.bf16 %v700, %v697
        %v747 = vpack.c.bf16 %v708, %v705
        %v748 = vpack.c.bf16 %v716, %v713
        %v749 = vpack.c.bf16 %v724, %v721
        %v750 = vpack.c.bf16 %v732, %v729
        %v751 = vld [vmem:[#allocation15] ss:$0 sm:$0xff]
        %752 = vmatprep.subr.bf16.mxu0 0
        %753 = vmatpush1.bf16.msra.mxu0 %v743
        %754 = vmatprep.subr.bf16.mxu0 0
        %755 = vmatpush1.bf16.msra.mxu0 %v744
        %756 = vmatprep.subr.bf16.mxu0 0
        %757 = vmatpush1.bf16.msra.mxu0 %v745
        %758 = vmatprep.subr.bf16.mxu0 0
        %759 = vmatpush1.bf16.msra.mxu0 %v746
        %760 = vmatprep.subr.bf16.mxu0 0
        %761 = vmatpush1.bf16.msra.mxu0 %v747
        %762 = vmatprep.subr.bf16.mxu0 0
        %763 = vmatpush1.bf16.msra.mxu0 %v748
        %764 = vmatprep.subr.bf16.mxu0 0
        %765 = vmatpush1.bf16.msra.mxu0 %v749
        %766 = vmatprep.subr.bf16.mxu0 0
        %767 = vmatpush1.bf16.msra.mxu0 %v750
        %768 = vmatprep.subr.bf16.mxu0 0
        %769 = vmatpush1.bf16.msra.mxu0 0
        %770 = vmatprep.subr.bf16.mxu0 0
        %771 = vmatpush1.bf16.msra.mxu0 0
        %772 = vmatprep.subr.bf16.mxu0 0
        %773 = vmatpush1.bf16.msra.mxu0 0
        %774 = vmatprep.subr.bf16.mxu0 0
        %775 = vmatpush1.bf16.msra.mxu0 0
        %776 = vmatprep.subr.bf16.mxu0 0
        %777 = vmatpush1.bf16.msra.mxu0 0
        %778 = vmatprep.subr.bf16.mxu0 0
        %779 = vmatpush1.bf16.msra.mxu0 0
        %780 = vmatprep.subr.bf16.mxu0 0
        %781 = vmatpush1.bf16.msra.mxu0 0
        %782 = vmatprep.subr.bf16.mxu0 0
        %783 = vmatpush1.bf16.msra.mxu0 0
        %784 = vmatprep.mubr.bf16.mxu0 0
        %785 = vmatmul.mubr.bf16.gmra.mrb[0].mxu0 %v735
        %v786 = vpop.f32.mrb[0].mxu0
        %v787 = vadd.f32 %v751, %v786
        %v788 = vpop.f32.mrb[0].mxu0
        %v789 = vpop.f32.mrb[0].mxu0
        %v790 = vadd.f32 %v751, %v789
        %v791 = vpop.f32.mrb[0].mxu0
        %792 = vmatprep.mubr.bf16.mxu0 0
        %793 = vmatmul.mubr.bf16.gmra.mrb[0].mxu0 %v736
        %v794 = vpop.f32.mrb[0].mxu0
        %v795 = vadd.f32 %v751, %v794
        %v796 = vpop.f32.mrb[0].mxu0
        %v797 = vpop.f32.mrb[0].mxu0
        %v798 = vadd.f32 %v751, %v797
        %v799 = vpop.f32.mrb[0].mxu0
        %800 = vmatprep.mubr.bf16.mxu0 0
        %801 = vmatmul.mubr.bf16.gmra.mrb[0].mxu0 %v737
        %v802 = vpop.f32.mrb[0].mxu0
        %v803 = vadd.f32 %v751, %v802
        %v804 = vpop.f32.mrb[0].mxu0
        %v805 = vpop.f32.mrb[0].mxu0
        %v806 = vadd.f32 %v751, %v805
        %v807 = vpop.f32.mrb[0].mxu0
        %808 = vmatprep.mubr.bf16.mxu0 0
        %809 = vmatmul.mubr.bf16.gmra.mrb[0].mxu0 %v738
        %v810 = vpop.f32.mrb[0].mxu0
        %v811 = vadd.f32 %v751, %v810
        %v812 = vpop.f32.mrb[0].mxu0
        %v813 = vpop.f32.mrb[0].mxu0
        %v814 = vadd.f32 %v751, %v813
        %v815 = vpop.f32.mrb[0].mxu0
        %816 = vmatprep.mubr.bf16.mxu0 0
        %817 = vmatmul.mubr.bf16.gmra.mrb[0].mxu0 %v739
        %v818 = vpop.f32.mrb[0].mxu0
        %v819 = vadd.f32 %v751, %v818
        %v820 = vpop.f32.mrb[0].mxu0
        %v821 = vpop.f32.mrb[0].mxu0
        %v822 = vadd.f32 %v751, %v821
        %v823 = vpop.f32.mrb[0].mxu0
        %824 = vmatprep.mubr.bf16.mxu0 0
        %825 = vmatmul.mubr.bf16.gmra.mrb[0].mxu0 %v740
        %v826 = vpop.f32.mrb[0].mxu0
        %v827 = vadd.f32 %v751, %v826
        %v828 = vpop.f32.mrb[0].mxu0
        %v829 = vpop.f32.mrb[0].mxu0
        %v830 = vadd.f32 %v751, %v829
        %v831 = vpop.f32.mrb[0].mxu0
        %832 = vmatprep.mubr.bf16.mxu0 0
        %833 = vmatmul.mubr.bf16.gmra.mrb[0].mxu0 %v741
        %v834 = vpop.f32.mrb[0].mxu0
        %v835 = vadd.f32 %v751, %v834
        %v836 = vpop.f32.mrb[0].mxu0
        %v837 = vpop.f32.mrb[0].mxu0
        %v838 = vadd.f32 %v751, %v837
        %v839 = vpop.f32.mrb[0].mxu0
        %840 = vmatprep.mubr.bf16.mxu0 0
        %841 = vmatmul.mubr.bf16.gmra.mrb[0].mxu0 %v742
        %v842 = vpop.f32.mrb[0].mxu0
        %v843 = vadd.f32 %v751, %v842
        %v844 = vpop.f32.mrb[0].mxu0
        %v845 = vpop.f32.mrb[0].mxu0
        %v846 = vadd.f32 %v751, %v845
        %v847 = vpop.f32.mrb[0].mxu0
        %848 = vdwg.mxu0
        %v849 = vmax.f32 %v787, 0.0
        %v850 = vmax.f32 %v790, 0.0
        %v851 = vmax.f32 %v795, 0.0
        %v852 = vmax.f32 %v798, 0.0
        %v853 = vmax.f32 %v803, 0.0
        %v854 = vmax.f32 %v806, 0.0
        %v855 = vmax.f32 %v811, 0.0
        %v856 = vmax.f32 %v814, 0.0
        %v857 = vmax.f32 %v819, 0.0
        %v858 = vmax.f32 %v822, 0.0
        %v859 = vmax.f32 %v827, 0.0
        %v860 = vmax.f32 %v830, 0.0
        %v861 = vmax.f32 %v835, 0.0
        %v862 = vmax.f32 %v838, 0.0
        %v863 = vmax.f32 %v843, 0.0
        %v864 = vmax.f32 %v846, 0.0
        %v865 = vld [vmem:[#allocation9 + $0x10] sm:$0xf]
        %v866 = vld [vmem:[#allocation9 + $0x14] sm:$0xf]
        %v867 = vld [vmem:[#allocation9 + $0x18] sm:$0xf]
        %v868 = vld [vmem:[#allocation9 + $0x1c] sm:$0xf]
        %v869 = vpack.c.bf16 %v850, %v849
        %v870 = vpack.c.bf16 %v852, %v851
        %v871 = vpack.c.bf16 %v854, %v853
        %v872 = vpack.c.bf16 %v856, %v855
        %v873 = vpack.c.bf16 %v858, %v857
        %v874 = vpack.c.bf16 %v860, %v859
        %v875 = vpack.c.bf16 %v862, %v861
        %v876 = vpack.c.bf16 %v864, %v863
        %v881 = vunpack.c.l.b16 %v865
        %v882 = vunpack.c.l.b16 %v866
        %v883 = vunpack.c.l.b16 %v867
        %v884 = vunpack.c.l.b16 %v868
        %v885 = vpack.c.b16 %v882, %v881
        %v886 = vpack.c.b16 %v884, %v883
        %v890 = vsel %vm613, %v869, 0
        %v893 = vsel %vm613, %v870, 0
        %v896 = vsel %vm613, %v871, 0
        %v899 = vsel %vm613, %v872, 0
        %v902 = vsel %vm613, %v873, 0
        %v905 = vsel %vm613, %v874, 0
        %v908 = vsel %vm613, %v875, 0
        %v911 = vsel %vm613, %v876, 0
        %913 = vmatprep.subr.bf16.mxu0 0
        %914 = vmatpush1.bf16.msra.mxu0 %v885
        %915 = vmatprep.subr.bf16.mxu0 0
        %916 = vmatpush1.bf16.msra.mxu0 %v886
        %917 = vmatprep.subr.bf16.mxu0 0
        %918 = vmatpush1.bf16.msra.mxu0 0
        %919 = vmatprep.subr.bf16.mxu0 0
        %920 = vmatpush1.bf16.msra.mxu0 0
        %921 = vmatprep.subr.bf16.mxu0 0
        %922 = vmatpush1.bf16.msra.mxu0 0
        %923 = vmatprep.subr.bf16.mxu0 0
        %924 = vmatpush1.bf16.msra.mxu0 0
        %925 = vmatprep.subr.bf16.mxu0 0
        %926 = vmatpush1.bf16.msra.mxu0 0
        %927 = vmatprep.subr.bf16.mxu0 0
        %928 = vmatpush1.bf16.msra.mxu0 0
        %929 = vmatprep.subr.bf16.mxu0 0
        %930 = vmatpush1.bf16.msra.mxu0 0
        %931 = vmatprep.subr.bf16.mxu0 0
        %932 = vmatpush1.bf16.msra.mxu0 0
        %933 = vmatprep.subr.bf16.mxu0 0
        %934 = vmatpush1.bf16.msra.mxu0 0
        %935 = vmatprep.subr.bf16.mxu0 0
        %936 = vmatpush1.bf16.msra.mxu0 0
        %937 = vmatprep.subr.bf16.mxu0 0
        %938 = vmatpush1.bf16.msra.mxu0 0
        %939 = vmatprep.subr.bf16.mxu0 0
        %940 = vmatpush1.bf16.msra.mxu0 0
        %941 = vmatprep.subr.bf16.mxu0 0
        %942 = vmatpush1.bf16.msra.mxu0 0
        %943 = vmatprep.subr.bf16.mxu0 0
        %944 = vmatpush1.bf16.msra.mxu0 0
        %945 = vmatprep.mubr.bf16.mxu0 0
        %946 = vmatmul.mubr.bf16.gmra.mrb[0].mxu0 %v890
        %v947 = vpop.f32.mrb[0].mxu0
        %v948 = vadd.f32 0.0, %v947
        %v949 = vpop.f32.mrb[0].mxu0
        %v950 = vpop.f32.mrb[0].mxu0
        %v951 = vadd.f32 0.0, %v950
        %v952 = vpop.f32.mrb[0].mxu0
        %953 = vmatprep.mubr.bf16.mxu0 0
        %954 = vmatmul.mubr.bf16.gmra.mrb[0].mxu0 %v893
        %v955 = vpop.f32.mrb[0].mxu0
        %v956 = vadd.f32 0.0, %v955
        %v957 = vpop.f32.mrb[0].mxu0
        %v958 = vpop.f32.mrb[0].mxu0
        %v959 = vadd.f32 0.0, %v958
        %v960 = vpop.f32.mrb[0].mxu0
        %961 = vmatprep.mubr.bf16.mxu0 0
        %962 = vmatmul.mubr.bf16.gmra.mrb[0].mxu0 %v896
        %v963 = vpop.f32.mrb[0].mxu0
        %v964 = vadd.f32 0.0, %v963
        %v965 = vpop.f32.mrb[0].mxu0
        %v966 = vpop.f32.mrb[0].mxu0
        %v967 = vadd.f32 0.0, %v966
        %v968 = vpop.f32.mrb[0].mxu0
        %969 = vmatprep.mubr.bf16.mxu0 0
        %970 = vmatmul.mubr.bf16.gmra.mrb[0].mxu0 %v899
        %v971 = vpop.f32.mrb[0].mxu0
        %v972 = vadd.f32 0.0, %v971
        %v973 = vpop.f32.mrb[0].mxu0
        %v974 = vpop.f32.mrb[0].mxu0
        %v975 = vadd.f32 0.0, %v974
        %v976 = vpop.f32.mrb[0].mxu0
        %977 = vmatprep.mubr.bf16.mxu0 0
        %978 = vmatmul.mubr.bf16.gmra.mrb[0].mxu0 %v902
        %v979 = vpop.f32.mrb[0].mxu0
        %v980 = vadd.f32 0.0, %v979
        %v981 = vpop.f32.mrb[0].mxu0
        %v982 = vpop.f32.mrb[0].mxu0
        %v983 = vadd.f32 0.0, %v982
        %v984 = vpop.f32.mrb[0].mxu0
        %985 = vmatprep.mubr.bf16.mxu0 0
        %986 = vmatmul.mubr.bf16.gmra.mrb[0].mxu0 %v905
        %v987 = vpop.f32.mrb[0].mxu0
        %v988 = vadd.f32 0.0, %v987
        %v989 = vpop.f32.mrb[0].mxu0
        %v990 = vpop.f32.mrb[0].mxu0
        %v991 = vadd.f32 0.0, %v990
        %v992 = vpop.f32.mrb[0].mxu0
        %993 = vmatprep.mubr.bf16.mxu0 0
        %994 = vmatmul.mubr.bf16.gmra.mrb[0].mxu0 %v908
        %v995 = vpop.f32.mrb[0].mxu0
        %v996 = vadd.f32 0.0, %v995
        %v997 = vpop.f32.mrb[0].mxu0
        %v998 = vpop.f32.mrb[0].mxu0
        %v999 = vadd.f32 0.0, %v998
        %v1000 = vpop.f32.mrb[0].mxu0
        %1001 = vmatprep.mubr.bf16.mxu0 0
        %1002 = vmatmul.mubr.bf16.gmra.mrb[0].mxu0 %v911
        %v1003 = vpop.f32.mrb[0].mxu0
        %v1004 = vadd.f32 0.0, %v1003
        %v1005 = vpop.f32.mrb[0].mxu0
        %v1006 = vpop.f32.mrb[0].mxu0
        %v1007 = vadd.f32 0.0, %v1006
        %v1008 = vpop.f32.mrb[0].mxu0
        %1009 = vdwg.mxu0
        %v1010 = vpack.c.bf16 %v951, %v948
        %v1011 = vpack.c.bf16 %v959, %v956
        %v1012 = vpack.c.bf16 %v967, %v964
        %v1013 = vpack.c.bf16 %v975, %v972
        %v1014 = vpack.c.bf16 %v983, %v980
        %v1015 = vpack.c.bf16 %v991, %v988
        %v1016 = vpack.c.bf16 %v999, %v996
        %v1017 = vpack.c.bf16 %v1007, %v1004
        %v1018 = vld [vmem:[#allocation15 + $0x1] ss:$0 sm:$0xff]
        %1019 = vmatprep.subr.bf16.mxu0 0
        %1020 = vmatpush1.bf16.msra.mxu0 %v1010
        %1021 = vmatprep.subr.bf16.mxu0 0
        %1022 = vmatpush1.bf16.msra.mxu0 %v1011
        %1023 = vmatprep.subr.bf16.mxu0 0
        %1024 = vmatpush1.bf16.msra.mxu0 %v1012
        %1025 = vmatprep.subr.bf16.mxu0 0
        %1026 = vmatpush1.bf16.msra.mxu0 %v1013
        %1027 = vmatprep.subr.bf16.mxu0 0
        %1028 = vmatpush1.bf16.msra.mxu0 %v1014
        %1029 = vmatprep.subr.bf16.mxu0 0
        %1030 = vmatpush1.bf16.msra.mxu0 %v1015
        %1031 = vmatprep.subr.bf16.mxu0 0
        %1032 = vmatpush1.bf16.msra.mxu0 %v1016
        %1033 = vmatprep.subr.bf16.mxu0 0
        %1034 = vmatpush1.bf16.msra.mxu0 %v1017
        %1035 = vmatprep.subr.bf16.mxu0 0
        %1036 = vmatpush1.bf16.msra.mxu0 0
        %1037 = vmatprep.subr.bf16.mxu0 0
        %1038 = vmatpush1.bf16.msra.mxu0 0
        %1039 = vmatprep.subr.bf16.mxu0 0
        %1040 = vmatpush1.bf16.msra.mxu0 0
        %1041 = vmatprep.subr.bf16.mxu0 0
        %1042 = vmatpush1.bf16.msra.mxu0 0
        %1043 = vmatprep.subr.bf16.mxu0 0
        %1044 = vmatpush1.bf16.msra.mxu0 0
        %1045 = vmatprep.subr.bf16.mxu0 0
        %1046 = vmatpush1.bf16.msra.mxu0 0
        %1047 = vmatprep.subr.bf16.mxu0 0
        %1048 = vmatpush1.bf16.msra.mxu0 0
        %1049 = vmatprep.subr.bf16.mxu0 0
        %1050 = vmatpush1.bf16.msra.mxu0 0
        %1051 = vmatprep.mubr.bf16.mxu0 0
        %1052 = vmatmul.mubr.bf16.gmra.mrb[0].mxu0 %v735
        %v1053 = vpop.f32.mrb[0].mxu0
        %v1054 = vadd.f32 %v1018, %v1053
        %v1055 = vpop.f32.mrb[0].mxu0
        %v1056 = vpop.f32.mrb[0].mxu0
        %v1057 = vadd.f32 %v1018, %v1056
        %v1058 = vpop.f32.mrb[0].mxu0
        %1059 = vmatprep.mubr.bf16.mxu0 0
        %1060 = vmatmul.mubr.bf16.gmra.mrb[0].mxu0 %v736
        %v1061 = vpop.f32.mrb[0].mxu0
        %v1062 = vadd.f32 %v1018, %v1061
        %v1063 = vpop.f32.mrb[0].mxu0
        %v1064 = vpop.f32.mrb[0].mxu0
        %v1065 = vadd.f32 %v1018, %v1064
        %v1066 = vpop.f32.mrb[0].mxu0
        %1067 = vmatprep.mubr.bf16.mxu0 0
        %1068 = vmatmul.mubr.bf16.gmra.mrb[0].mxu0 %v737
        %v1069 = vpop.f32.mrb[0].mxu0
        %v1070 = vadd.f32 %v1018, %v1069
        %v1071 = vpop.f32.mrb[0].mxu0
        %v1072 = vpop.f32.mrb[0].mxu0
        %v1073 = vadd.f32 %v1018, %v1072
        %v1074 = vpop.f32.mrb[0].mxu0
        %1075 = vmatprep.mubr.bf16.mxu0 0
        %1076 = vmatmul.mubr.bf16.gmra.mrb[0].mxu0 %v738
        %v1077 = vpop.f32.mrb[0].mxu0
        %v1078 = vadd.f32 %v1018, %v1077
        %v1079 = vpop.f32.mrb[0].mxu0
        %v1080 = vpop.f32.mrb[0].mxu0
        %v1081 = vadd.f32 %v1018, %v1080
        %v1082 = vpop.f32.mrb[0].mxu0
        %1083 = vmatprep.mubr.bf16.mxu0 0
        %1084 = vmatmul.mubr.bf16.gmra.mrb[0].mxu0 %v739
        %v1085 = vpop.f32.mrb[0].mxu0
        %v1086 = vadd.f32 %v1018, %v1085
        %v1087 = vpop.f32.mrb[0].mxu0
        %v1088 = vpop.f32.mrb[0].mxu0
        %v1089 = vadd.f32 %v1018, %v1088
        %v1090 = vpop.f32.mrb[0].mxu0
        %1091 = vmatprep.mubr.bf16.mxu0 0
        %1092 = vmatmul.mubr.bf16.gmra.mrb[0].mxu0 %v740
        %v1093 = vpop.f32.mrb[0].mxu0
        %v1094 = vadd.f32 %v1018, %v1093
        %v1095 = vpop.f32.mrb[0].mxu0
        %v1096 = vpop.f32.mrb[0].mxu0
        %v1097 = vadd.f32 %v1018, %v1096
        %v1098 = vpop.f32.mrb[0].mxu0
        %1099 = vmatprep.mubr.bf16.mxu0 0
        %1100 = vmatmul.mubr.bf16.gmra.mrb[0].mxu0 %v741
        %v1101 = vpop.f32.mrb[0].mxu0
        %v1102 = vadd.f32 %v1018, %v1101
        %v1103 = vpop.f32.mrb[0].mxu0
        %v1104 = vpop.f32.mrb[0].mxu0
        %v1105 = vadd.f32 %v1018, %v1104
        %v1106 = vpop.f32.mrb[0].mxu0
        %1107 = vmatprep.mubr.bf16.mxu0 0
        %1108 = vmatmul.mubr.bf16.gmra.mrb[0].mxu0 %v742
        %v1109 = vpop.f32.mrb[0].mxu0
        %v1110 = vadd.f32 %v1018, %v1109
        %v1111 = vpop.f32.mrb[0].mxu0
        %v1112 = vpop.f32.mrb[0].mxu0
        %v1113 = vadd.f32 %v1018, %v1112
        %v1114 = vpop.f32.mrb[0].mxu0
        %1115 = vdwg.mxu0
        %v1116 = vld [vmem:[%s458] sm:$0xff]
        %v1117 = vld [vmem:[%s458 + $0x8] sm:$0xff]
        %v1118 = vpack.c.bf16 %v1117, %v1116
        %v1119 = vpack.c.bf16 %v1057, %v1054
        %v1120 = vpack.c.bf16 %v1065, %v1062
        %v1121 = vpack.c.bf16 %v1073, %v1070
        %v1122 = vpack.c.bf16 %v1081, %v1078
        %v1123 = vpack.c.bf16 %v1089, %v1086
        %v1124 = vpack.c.bf16 %v1097, %v1094
        %v1125 = vpack.c.bf16 %v1105, %v1102
        %v1126 = vpack.c.bf16 %v1113, %v1110
        %1127 = vmatprep.subr.bf16.mxu0 0
        %1128 = vmatpush1.bf16.msra.mxu0 %v1119
        %1129 = vmatprep.subr.bf16.mxu0 0
        %1130 = vmatpush1.bf16.msra.mxu0 %v1120
        %1131 = vmatprep.subr.bf16.mxu0 0
        %1132 = vmatpush1.bf16.msra.mxu0 %v1121
        %1133 = vmatprep.subr.bf16.mxu0 0
        %1134 = vmatpush1.bf16.msra.mxu0 %v1122
        %1135 = vmatprep.subr.bf16.mxu0 0
        %1136 = vmatpush1.bf16.msra.mxu0 %v1123
        %1137 = vmatprep.subr.bf16.mxu0 0
        %1138 = vmatpush1.bf16.msra.mxu0 %v1124
        %1139 = vmatprep.subr.bf16.mxu0 0
        %1140 = vmatpush1.bf16.msra.mxu0 %v1125
        %1141 = vmatprep.subr.bf16.mxu0 0
        %1142 = vmatpush1.bf16.msra.mxu0 %v1126
        %1143 = vmatprep.subr.bf16.mxu0 0
        %1144 = vmatpush1.bf16.msra.mxu0 0
        %1145 = vmatprep.subr.bf16.mxu0 0
        %1146 = vmatpush1.bf16.msra.mxu0 0
        %1147 = vmatprep.subr.bf16.mxu0 0
        %1148 = vmatpush1.bf16.msra.mxu0 0
        %1149 = vmatprep.subr.bf16.mxu0 0
        %1150 = vmatpush1.bf16.msra.mxu0 0
        %1151 = vmatprep.subr.bf16.mxu0 0
        %1152 = vmatpush1.bf16.msra.mxu0 0
        %1153 = vmatprep.subr.bf16.mxu0 0
        %1154 = vmatpush1.bf16.msra.mxu0 0
        %1155 = vmatprep.subr.bf16.mxu0 0
        %1156 = vmatpush1.bf16.msra.mxu0 0
        %1157 = vmatprep.subr.bf16.mxu0 0
        %1158 = vmatpush1.bf16.msra.mxu0 0
        %1159 = vmatprep.mubr.bf16.mxu0 0
        %1160 = vmatmul.mubr.bf16.gmra.mrb[0].mxu0 %v1118
        %v1161 = vpop.f32.mrb[0].mxu0
        %v1162 = vadd.f32 0.0, %v1161
        %v1163 = vpop.f32.mrb[0].mxu0
        %v1164 = vpop.f32.mrb[0].mxu0
        %v1165 = vadd.f32 0.0, %v1164
        %v1166 = vpop.f32.mrb[0].mxu0
        %1167 = vdwg.mxu0
        %v1168 = vld [vmem:[#allocation9 + $0x20] sm:$0xf]
        %v1169 = vld [vmem:[#allocation9 + $0x24] sm:$0xf]
        %v1170 = vld [vmem:[#allocation9 + $0x28] sm:$0xf]
        %v1171 = vld [vmem:[#allocation9 + $0x2c] sm:$0xf]
        %v1172 = vpack.c.bf16 %v1165, %v1162
        %v1173 = vld [vmem:[#allocation15 + $0x2] ss:$0 sm:$0xff]
        %v1178 = vunpack.c.l.b16 %v1168
        %v1179 = vunpack.c.l.b16 %v1169
        %v1180 = vunpack.c.l.b16 %v1170
        %v1181 = vunpack.c.l.b16 %v1171
        %v1182 = vpack.c.b16 %v1179, %v1178
        %v1183 = vpack.c.b16 %v1181, %v1180
        %v1187 = vsel %vm613, %v1172, 0
        %1189 = vmatprep.subr.bf16.mxu0 0
        %1190 = vmatpush1.bf16.msra.mxu0 %v1182
        %1191 = vmatprep.subr.bf16.mxu0 0
        %1192 = vmatpush1.bf16.msra.mxu0 %v1183
        %1193 = vmatprep.subr.bf16.mxu0 0
        %1194 = vmatpush1.bf16.msra.mxu0 0
        %1195 = vmatprep.subr.bf16.mxu0 0
        %1196 = vmatpush1.bf16.msra.mxu0 0
        %1197 = vmatprep.subr.bf16.mxu0 0
        %1198 = vmatpush1.bf16.msra.mxu0 0
        %1199 = vmatprep.subr.bf16.mxu0 0
        %1200 = vmatpush1.bf16.msra.mxu0 0
        %1201 = vmatprep.subr.bf16.mxu0 0
        %1202 = vmatpush1.bf16.msra.mxu0 0
        %1203 = vmatprep.subr.bf16.mxu0 0
        %1204 = vmatpush1.bf16.msra.mxu0 0
        %1205 = vmatprep.subr.bf16.mxu0 0
        %1206 = vmatpush1.bf16.msra.mxu0 0
        %1207 = vmatprep.subr.bf16.mxu0 0
        %1208 = vmatpush1.bf16.msra.mxu0 0
        %1209 = vmatprep.subr.bf16.mxu0 0
        %1210 = vmatpush1.bf16.msra.mxu0 0
        %1211 = vmatprep.subr.bf16.mxu0 0
        %1212 = vmatpush1.bf16.msra.mxu0 0
        %1213 = vmatprep.subr.bf16.mxu0 0
        %1214 = vmatpush1.bf16.msra.mxu0 0
        %1215 = vmatprep.subr.bf16.mxu0 0
        %1216 = vmatpush1.bf16.msra.mxu0 0
        %1217 = vmatprep.subr.bf16.mxu0 0
        %1218 = vmatpush1.bf16.msra.mxu0 0
        %1219 = vmatprep.subr.bf16.mxu0 0
        %1220 = vmatpush1.bf16.msra.mxu0 0
        %1221 = vmatprep.mubr.bf16.mxu0 0
        %1222 = vmatmul.mubr.bf16.gmra.mrb[0].mxu0 %v1187
        %v1223 = vpop.f32.mrb[0].mxu0
        %v1224 = vadd.f32 %v1173, %v1223
        %v1225 = vpop.f32.mrb[0].mxu0
        %v1226 = vpop.f32.mrb[0].mxu0
        %v1227 = vadd.f32 %v1173, %v1226
        %v1228 = vpop.f32.mrb[0].mxu0
        %1229 = vdwg.mxu0
        %v1230 = vld [vmem:[%s476] sm:$0xff]
        %v1231 = vld [vmem:[%s476 + $0x8] sm:$0xff]
        %v1232 = vld [vmem:[%s476 + $0x10] sm:$0xff]
        %v1233 = vld [vmem:[%s476 + $0x18] sm:$0xff]
        %v1234 = vld [vmem:[#allocation9 + $0x30] sm:$0xf]
        %v1235 = vld [vmem:[#allocation9 + $0x34] sm:$0xf]
        %v1236 = vld [vmem:[#allocation9 + $0x38] sm:$0xf]
        %v1237 = vld [vmem:[#allocation9 + $0x3c] sm:$0xf]
        %v1238 = vld [vmem:[#allocation9 + $0x40] sm:$0xf]
        %v1239 = vld [vmem:[#allocation9 + $0x44] sm:$0xf]
        %v1240 = vld [vmem:[#allocation9 + $0x48] sm:$0xf]
        %v1241 = vld [vmem:[#allocation9 + $0x4c] sm:$0xf]
        %v1242 = vld [vmem:[#allocation9 + $0x50] sm:$0xf]
        %v1243 = vld [vmem:[#allocation9 + $0x54] sm:$0xf]
        %v1244 = vld [vmem:[#allocation9 + $0x58] sm:$0xf]
        %v1245 = vld [vmem:[#allocation9 + $0x5c] sm:$0xf]
        %v1246 = vld [vmem:[#allocation9 + $0x60] sm:$0xf]
        %v1247 = vld [vmem:[#allocation9 + $0x64] sm:$0xf]
        %v1248 = vld [vmem:[#allocation9 + $0x68] sm:$0xf]
        %v1249 = vld [vmem:[#allocation9 + $0x6c] sm:$0xf]
        %v1250 = vld [vmem:[#allocation9 + $0x70] sm:$0xf]
        %v1251 = vld [vmem:[#allocation9 + $0x74] sm:$0xf]
        %v1252 = vld [vmem:[#allocation9 + $0x78] sm:$0xf]
        %v1253 = vld [vmem:[#allocation9 + $0x7c] sm:$0xf]
        %v1254 = vld [vmem:[#allocation9 + $0x80] sm:$0xf]
        %v1255 = vld [vmem:[#allocation9 + $0x84] sm:$0xf]
        %v1256 = vld [vmem:[#allocation9 + $0x88] sm:$0xf]
        %v1257 = vld [vmem:[#allocation9 + $0x8c] sm:$0xf]
        %v1258 = vld [vmem:[#allocation9 + $0x90] sm:$0xf]
        %v1259 = vld [vmem:[#allocation9 + $0x94] sm:$0xf]
        %v1260 = vld [vmem:[#allocation9 + $0x98] sm:$0xf]
        %v1261 = vld [vmem:[#allocation9 + $0x9c] sm:$0xf]
        %v1262 = vld [vmem:[#allocation9 + $0xa0] sm:$0xf]
        %v1263 = vld [vmem:[#allocation9 + $0xa4] sm:$0xf]
        %v1264 = vld [vmem:[#allocation9 + $0xa8] sm:$0xf]
        %v1265 = vld [vmem:[#allocation9 + $0xac] sm:$0xf]
        %v1266 = vpack.c.bf16 %v1232, %v1230
        %v1267 = vpack.c.bf16 %v1233, %v1231
        %v1268 = vld [vmem:[#allocation15 + $0x3] ss:$0 sm:$0xff]
        %v1301 = vunpack.c.l.b16 %v1234
        %v1302 = vunpack.c.l.b16 %v1235
        %v1303 = vunpack.c.l.b16 %v1236
        %v1304 = vunpack.c.l.b16 %v1237
        %v1305 = vunpack.c.l.b16 %v1238
        %v1306 = vunpack.c.l.b16 %v1239
        %v1307 = vunpack.c.l.b16 %v1240
        %v1308 = vunpack.c.l.b16 %v1241
        %v1309 = vunpack.c.l.b16 %v1242
        %v1310 = vunpack.c.l.b16 %v1243
        %v1311 = vunpack.c.l.b16 %v1244
        %v1312 = vunpack.c.l.b16 %v1245
        %v1313 = vunpack.c.l.b16 %v1246
        %v1314 = vunpack.c.l.b16 %v1247
        %v1315 = vunpack.c.l.b16 %v1248
        %v1316 = vunpack.c.l.b16 %v1249
        %v1317 = vunpack.c.l.b16 %v1250
        %v1318 = vunpack.c.l.b16 %v1251
        %v1319 = vunpack.c.l.b16 %v1252
        %v1320 = vunpack.c.l.b16 %v1253
        %v1321 = vunpack.c.l.b16 %v1254
        %v1322 = vunpack.c.l.b16 %v1255
        %v1323 = vunpack.c.l.b16 %v1256
        %v1324 = vunpack.c.l.b16 %v1257
        %v1325 = vunpack.c.l.b16 %v1258
        %v1326 = vunpack.c.l.b16 %v1259
        %v1327 = vunpack.c.l.b16 %v1260
        %v1328 = vunpack.c.l.b16 %v1261
        %v1329 = vunpack.c.l.b16 %v1262
        %v1330 = vunpack.c.l.b16 %v1263
        %v1331 = vunpack.c.l.b16 %v1264
        %v1332 = vunpack.c.l.b16 %v1265
        %v1333 = vpack.c.b16 %v1302, %v1301
        %v1334 = vpack.c.b16 %v1304, %v1303
        %v1335 = vpack.c.b16 %v1306, %v1305
        %v1336 = vpack.c.b16 %v1308, %v1307
        %v1337 = vpack.c.b16 %v1310, %v1309
        %v1338 = vpack.c.b16 %v1312, %v1311
        %v1339 = vpack.c.b16 %v1314, %v1313
        %v1340 = vpack.c.b16 %v1316, %v1315
        %v1341 = vpack.c.b16 %v1318, %v1317
        %v1342 = vpack.c.b16 %v1320, %v1319
        %v1343 = vpack.c.b16 %v1322, %v1321
        %v1344 = vpack.c.b16 %v1324, %v1323
        %v1345 = vpack.c.b16 %v1326, %v1325
        %v1346 = vpack.c.b16 %v1328, %v1327
        %v1347 = vpack.c.b16 %v1330, %v1329
        %v1348 = vpack.c.b16 %v1332, %v1331
        %1365 = vmatprep.subr.bf16.mxu0 0
        %1366 = vmatpush1.bf16.msra.mxu0 %v1333
        %1367 = vmatprep.subr.bf16.mxu0 0
        %1368 = vmatpush1.bf16.msra.mxu0 %v1334
        %1369 = vmatprep.subr.bf16.mxu0 0
        %1370 = vmatpush1.bf16.msra.mxu0 %v1335
        %1371 = vmatprep.subr.bf16.mxu0 0
        %1372 = vmatpush1.bf16.msra.mxu0 %v1336
        %1373 = vmatprep.subr.bf16.mxu0 0
        %1374 = vmatpush1.bf16.msra.mxu0 %v1337
        %1375 = vmatprep.subr.bf16.mxu0 0
        %1376 = vmatpush1.bf16.msra.mxu0 %v1338
        %1377 = vmatprep.subr.bf16.mxu0 0
        %1378 = vmatpush1.bf16.msra.mxu0 %v1339
        %1379 = vmatprep.subr.bf16.mxu0 0
        %1380 = vmatpush1.bf16.msra.mxu0 %v1340
        %1381 = vmatprep.subr.bf16.mxu0 0
        %1382 = vmatpush1.bf16.msra.mxu0 %v1341
        %1383 = vmatprep.subr.bf16.mxu0 0
        %1384 = vmatpush1.bf16.msra.mxu0 %v1342
        %1385 = vmatprep.subr.bf16.mxu0 0
        %1386 = vmatpush1.bf16.msra.mxu0 %v1343
        %1387 = vmatprep.subr.bf16.mxu0 0
        %1388 = vmatpush1.bf16.msra.mxu0 %v1344
        %1389 = vmatprep.subr.bf16.mxu0 0
        %1390 = vmatpush1.bf16.msra.mxu0 %v1345
        %1391 = vmatprep.subr.bf16.mxu0 0
        %1392 = vmatpush1.bf16.msra.mxu0 %v1346
        %1393 = vmatprep.subr.bf16.mxu0 0
        %1394 = vmatpush1.bf16.msra.mxu0 %v1347
        %1395 = vmatprep.subr.bf16.mxu0 0
        %1396 = vmatpush1.bf16.msra.mxu0 %v1348
        %1397 = vmatprep.mubr.bf16.mxu0 %v1267
        %1398 = vmatmul.mubr.bf16.gmra.mrb[0].mxu0 %v1266
        %v1399 = vpop.f32.mrb[0].mxu0
        %v1400 = vadd.f32 %v1268, %v1399
        %v1401 = vpop.f32.mrb[0].mxu0
        %v1402 = vpop.f32.mrb[0].mxu0
        %v1403 = vadd.f32 %v1268, %v1402
        %v1404 = vpop.f32.mrb[0].mxu0
        %1405 = vdwg.mxu0
        %v1406 = vmax.f32 %v1400, 0.0
        %v1407 = vmax.f32 %v1403, 0.0
        %v1408 = vld [vmem:[#allocation9 + $0xb0] sm:$0xf]
        %v1409 = vld [vmem:[#allocation9 + $0xb4] sm:$0xf]
        %v1410 = vld [vmem:[#allocation9 + $0xb8] sm:$0xf]
        %v1411 = vld [vmem:[#allocation9 + $0xbc] sm:$0xf]
        %v1412 = vld [vmem:[#allocation9 + $0xc0] sm:$0xf]
        %v1413 = vld [vmem:[#allocation9 + $0xc4] sm:$0xf]
        %v1414 = vld [vmem:[#allocation9 + $0xc8] sm:$0xf]
        %v1415 = vld [vmem:[#allocation9 + $0xcc] sm:$0xf]
        %v1416 = vld [vmem:[#allocation9 + $0xd0] sm:$0xf]
        %v1417 = vld [vmem:[#allocation9 + $0xd4] sm:$0xf]
        %v1418 = vld [vmem:[#allocation9 + $0xd8] sm:$0xf]
        %v1419 = vld [vmem:[#allocation9 + $0xdc] sm:$0xf]
        %v1420 = vld [vmem:[#allocation9 + $0xe0] sm:$0xf]
        %v1421 = vld [vmem:[#allocation9 + $0xe4] sm:$0xf]
        %v1422 = vld [vmem:[#allocation9 + $0xe8] sm:$0xf]
        %v1423 = vld [vmem:[#allocation9 + $0xec] sm:$0xf]
        %v1424 = vpack.c.bf16 %v1407, %v1406
        %v1425 = vld [vmem:[#allocation15 + $0x4] ss:$0 sm:$0xff]
        %v1442 = vunpack.c.l.b16 %v1408
        %v1443 = vunpack.c.l.b16 %v1409
        %v1444 = vunpack.c.l.b16 %v1410
        %v1445 = vunpack.c.l.b16 %v1411
        %v1446 = vunpack.c.l.b16 %v1412
        %v1447 = vunpack.c.l.b16 %v1413
        %v1448 = vunpack.c.l.b16 %v1414
        %v1449 = vunpack.c.l.b16 %v1415
        %v1450 = vunpack.c.l.b16 %v1416
        %v1451 = vunpack.c.l.b16 %v1417
        %v1452 = vunpack.c.l.b16 %v1418
        %v1453 = vunpack.c.l.b16 %v1419
        %v1454 = vunpack.c.l.b16 %v1420
        %v1455 = vunpack.c.l.b16 %v1421
        %v1456 = vunpack.c.l.b16 %v1422
        %v1457 = vunpack.c.l.b16 %v1423
        %v1458 = vpack.c.b16 %v1443, %v1442
        %v1459 = vpack.c.b16 %v1445, %v1444
        %v1460 = vpack.c.b16 %v1447, %v1446
        %v1461 = vpack.c.b16 %v1449, %v1448
        %v1462 = vpack.c.b16 %v1451, %v1450
        %v1463 = vpack.c.b16 %v1453, %v1452
        %v1464 = vpack.c.b16 %v1455, %v1454
        %v1465 = vpack.c.b16 %v1457, %v1456
        %1474 = vmatprep.subr.bf16.mxu0 0
        %1475 = vmatpush1.bf16.msra.mxu0 %v1458
        %1476 = vmatprep.subr.bf16.mxu0 0
        %1477 = vmatpush1.bf16.msra.mxu0 %v1459
        %1478 = vmatprep.subr.bf16.mxu0 0
        %1479 = vmatpush1.bf16.msra.mxu0 %v1460
        %1480 = vmatprep.subr.bf16.mxu0 0
        %1481 = vmatpush1.bf16.msra.mxu0 %v1461
        %1482 = vmatprep.subr.bf16.mxu0 0
        %1483 = vmatpush1.bf16.msra.mxu0 %v1462
        %1484 = vmatprep.subr.bf16.mxu0 0
        %1485 = vmatpush1.bf16.msra.mxu0 %v1463
        %1486 = vmatprep.subr.bf16.mxu0 0
        %1487 = vmatpush1.bf16.msra.mxu0 %v1464
        %1488 = vmatprep.subr.bf16.mxu0 0
        %1489 = vmatpush1.bf16.msra.mxu0 %v1465
        %1490 = vmatprep.subr.bf16.mxu0 0
        %1491 = vmatpush1.bf16.msra.mxu0 0
        %1492 = vmatprep.subr.bf16.mxu0 0
        %1493 = vmatpush1.bf16.msra.mxu0 0
        %1494 = vmatprep.subr.bf16.mxu0 0
        %1495 = vmatpush1.bf16.msra.mxu0 0
        %1496 = vmatprep.subr.bf16.mxu0 0
        %1497 = vmatpush1.bf16.msra.mxu0 0
        %1498 = vmatprep.subr.bf16.mxu0 0
        %1499 = vmatpush1.bf16.msra.mxu0 0
        %1500 = vmatprep.subr.bf16.mxu0 0
        %1501 = vmatpush1.bf16.msra.mxu0 0
        %1502 = vmatprep.subr.bf16.mxu0 0
        %1503 = vmatpush1.bf16.msra.mxu0 0
        %1504 = vmatprep.subr.bf16.mxu0 0
        %1505 = vmatpush1.bf16.msra.mxu0 0
        %1506 = vmatprep.mubr.bf16.mxu0 0
        %1507 = vmatmul.mubr.bf16.gmra.mrb[0].mxu0 %v1424
        %v1508 = vpop.f32.mrb[0].mxu0
        %v1509 = vadd.f32 %v1425, %v1508
        %v1510 = vpop.f32.mrb[0].mxu0
        %v1511 = vpop.f32.mrb[0].mxu0
        %v1512 = vadd.f32 %v1425, %v1511
        %v1513 = vpop.f32.mrb[0].mxu0
        %1514 = vdwg.mxu0
        %v1515 = vmax.f32 %v1509, 0.0
        %v1516 = vmax.f32 %v1512, 0.0
        %v1517 = vld [vmem:[#allocation9 + $0xf0] sm:$0xf]
        %v1518 = vld [vmem:[#allocation9 + $0xf4] sm:$0xf]
        %v1519 = vld [vmem:[#allocation9 + $0xf8] sm:$0xf]
        %v1520 = vld [vmem:[#allocation9 + $0xfc] sm:$0xf]
        %v1521 = vld [vmem:[#allocation9 + $0x100] sm:$0xf]
        %v1522 = vld [vmem:[#allocation9 + $0x104] sm:$0xf]
        %v1523 = vld [vmem:[#allocation9 + $0x108] sm:$0xf]
        %v1524 = vld [vmem:[#allocation9 + $0x10c] sm:$0xf]
        %v1525 = vpack.c.bf16 %v1516, %v1515
        %v1526 = vld [vmem:[#allocation15 + $0x5] ss:$0 sm:$0xff]
        %v1535 = vunpack.c.l.b16 %v1517
        %v1536 = vunpack.c.l.b16 %v1518
        %v1537 = vunpack.c.l.b16 %v1519
        %v1538 = vunpack.c.l.b16 %v1520
        %v1539 = vunpack.c.l.b16 %v1521
        %v1540 = vunpack.c.l.b16 %v1522
        %v1541 = vunpack.c.l.b16 %v1523
        %v1542 = vunpack.c.l.b16 %v1524
        %v1543 = vpack.c.b16 %v1536, %v1535
        %v1544 = vpack.c.b16 %v1538, %v1537
        %v1545 = vpack.c.b16 %v1540, %v1539
        %v1546 = vpack.c.b16 %v1542, %v1541
        %vm1551 = vcmask 523264
        %v1553 = vsel %vm1551, %v1525, 0
        %1555 = vmatprep.subr.bf16.mxu0 0
        %1556 = vmatpush1.bf16.msra.mxu0 %v1543
        %1557 = vmatprep.subr.bf16.mxu0 0
        %1558 = vmatpush1.bf16.msra.mxu0 %v1544
        %1559 = vmatprep.subr.bf16.mxu0 0
        %1560 = vmatpush1.bf16.msra.mxu0 %v1545
        %1561 = vmatprep.subr.bf16.mxu0 0
        %1562 = vmatpush1.bf16.msra.mxu0 %v1546
        %1563 = vmatprep.subr.bf16.mxu0 0
        %1564 = vmatpush1.bf16.msra.mxu0 0
        %1565 = vmatprep.subr.bf16.mxu0 0
        %1566 = vmatpush1.bf16.msra.mxu0 0
        %1567 = vmatprep.subr.bf16.mxu0 0
        %1568 = vmatpush1.bf16.msra.mxu0 0
        %1569 = vmatprep.subr.bf16.mxu0 0
        %1570 = vmatpush1.bf16.msra.mxu0 0
        %1571 = vmatprep.subr.bf16.mxu0 0
        %1572 = vmatpush1.bf16.msra.mxu0 0
        %1573 = vmatprep.subr.bf16.mxu0 0
        %1574 = vmatpush1.bf16.msra.mxu0 0
        %1575 = vmatprep.subr.bf16.mxu0 0
        %1576 = vmatpush1.bf16.msra.mxu0 0
        %1577 = vmatprep.subr.bf16.mxu0 0
        %1578 = vmatpush1.bf16.msra.mxu0 0
        %1579 = vmatprep.subr.bf16.mxu0 0
        %1580 = vmatpush1.bf16.msra.mxu0 0
        %1581 = vmatprep.subr.bf16.mxu0 0
        %1582 = vmatpush1.bf16.msra.mxu0 0
        %1583 = vmatprep.subr.bf16.mxu0 0
        %1584 = vmatpush1.bf16.msra.mxu0 0
        %1585 = vmatprep.subr.bf16.mxu0 0
        %1586 = vmatpush1.bf16.msra.mxu0 0
        %1587 = vmatprep.mubr.bf16.mxu0 0
        %1588 = vmatmul.mubr.bf16.gmra.mrb[0].mxu0 %v1553
        %v1589 = vpop.f32.mrb[0].mxu0
        %v1590 = vadd.f32 %v1526, %v1589
        %v1591 = vpop.f32.mrb[0].mxu0
        %v1592 = vpop.f32.mrb[0].mxu0
        %v1593 = vadd.f32 %v1526, %v1592
        %v1594 = vpop.f32.mrb[0].mxu0
        %1595 = vdwg.mxu0
        %v1596 = vmax.f32 %v1590, 0.0
        %v1597 = vmax.f32 %v1593, 0.0
        %v1598 = vld [vmem:[#allocation9 + $0x110] sm:$0xf]
        %v1599 = vld [vmem:[#allocation9 + $0x114] sm:$0xf]
        %v1600 = vld [vmem:[#allocation9 + $0x118] sm:$0xf]
        %v1601 = vld [vmem:[#allocation9 + $0x11c] sm:$0xf]
        %v1602 = vpack.c.bf16 %v1597, %v1596
        %v1603 = vld [vmem:[#allocation15 + $0x6] ss:$0 sm:$0xff]
        %v1608 = vunpack.c.l.b16 %v1598
        %v1609 = vunpack.c.l.b16 %v1599
        %v1610 = vunpack.c.l.b16 %v1600
        %v1611 = vunpack.c.l.b16 %v1601
        %v1612 = vpack.c.b16 %v1609, %v1608
        %v1613 = vpack.c.b16 %v1611, %v1610
        %v1617 = vsel %vm613, %v1602, 0
        %1619 = vmatprep.subr.bf16.mxu0 0
        %1620 = vmatpush1.bf16.msra.mxu0 %v1612
        %1621 = vmatprep.subr.bf16.mxu0 0
        %1622 = vmatpush1.bf16.msra.mxu0 %v1613
        %1623 = vmatprep.subr.bf16.mxu0 0
        %1624 = vmatpush1.bf16.msra.mxu0 0
        %1625 = vmatprep.subr.bf16.mxu0 0
        %1626 = vmatpush1.bf16.msra.mxu0 0
        %1627 = vmatprep.subr.bf16.mxu0 0
        %1628 = vmatpush1.bf16.msra.mxu0 0
        %1629 = vmatprep.subr.bf16.mxu0 0
        %1630 = vmatpush1.bf16.msra.mxu0 0
        %1631 = vmatprep.subr.bf16.mxu0 0
        %1632 = vmatpush1.bf16.msra.mxu0 0
        %1633 = vmatprep.subr.bf16.mxu0 0
        %1634 = vmatpush1.bf16.msra.mxu0 0
        %1635 = vmatprep.subr.bf16.mxu0 0
        %1636 = vmatpush1.bf16.msra.mxu0 0
        %1637 = vmatprep.subr.bf16.mxu0 0
        %1638 = vmatpush1.bf16.msra.mxu0 0
        %1639 = vmatprep.subr.bf16.mxu0 0
        %1640 = vmatpush1.bf16.msra.mxu0 0
        %1641 = vmatprep.subr.bf16.mxu0 0
        %1642 = vmatpush1.bf16.msra.mxu0 0
        %1643 = vmatprep.subr.bf16.mxu0 0
        %1644 = vmatpush1.bf16.msra.mxu0 0
        %1645 = vmatprep.subr.bf16.mxu0 0
        %1646 = vmatpush1.bf16.msra.mxu0 0
        %1647 = vmatprep.subr.bf16.mxu0 0
        %1648 = vmatpush1.bf16.msra.mxu0 0
        %1649 = vmatprep.subr.bf16.mxu0 0
        %1650 = vmatpush1.bf16.msra.mxu0 0
        %1651 = vmatprep.mubr.bf16.mxu0 0
        %1652 = vmatmul.mubr.bf16.gmra.mrb[0].mxu0 %v1617
        %v1653 = vpop.f32.mrb[0].mxu0
        %v1654 = vadd.f32 %v1603, %v1653
        %v1655 = vpop.f32.mrb[0].mxu0
        %v1656 = vpop.f32.mrb[0].mxu0
        %v1657 = vadd.f32 %v1603, %v1656
        %v1658 = vpop.f32.mrb[0].mxu0
        %1659 = vdwg.mxu0
        %v1660 = vmax.f32 %v1654, 0.0
        %v1661 = vmax.f32 %v1657, 0.0
        %v1662 = vld [vmem:[#allocation10] sm:$0xff]
        %v1663 = vld [vmem:[#allocation10 + $0x8] sm:$0xff]
        %v1664 = vld [vmem:[#allocation10 + $0x10] sm:$0xff]
        %v1665 = vld [vmem:[#allocation10 + $0x18] sm:$0xff]
        %v1666 = vld [vmem:[#allocation10 + $0x20] sm:$0xff]
        %v1667 = vld [vmem:[#allocation10 + $0x28] sm:$0xff]
        %v1668 = vld [vmem:[#allocation10 + $0x30] sm:$0xff]
        %v1669 = vld [vmem:[#allocation10 + $0x38] sm:$0xff]
        %v1670 = vpack.c.bf16 %v1661, %v1660
        %v1671 = vld [vmem:[#allocation10 + $0x40] sm:$0xff]
        %v1672 = vld [vmem:[#allocation10 + $0x48] sm:$0xff]
        %v1673 = vld [vmem:[#allocation10 + $0x50] sm:$0xff]
        %v1674 = vld [vmem:[#allocation10 + $0x58] sm:$0xff]
        %v1675 = vld [vmem:[#allocation10 + $0x60] sm:$0xff]
        %v1676 = vld [vmem:[#allocation10 + $0x68] sm:$0xff]
        %v1677 = vld [vmem:[#allocation10 + $0x70] sm:$0xff]
        %v1678 = vld [vmem:[#allocation10 + $0x78] sm:$0xff]
        %v1679 = vld [vmem:[#allocation10 + $0x80] sm:$0xff]
        %v1680 = vld [vmem:[#allocation10 + $0x88] sm:$0xff]
        %v1681 = vld [vmem:[#allocation10 + $0x90] sm:$0xff]
        %v1682 = vld [vmem:[#allocation10 + $0x98] sm:$0xff]
        %v1683 = vld [vmem:[#allocation10 + $0xa0] sm:$0xff]
        %v1684 = vld [vmem:[#allocation10 + $0xa8] sm:$0xff]
        %v1685 = vld [vmem:[#allocation10 + $0xb0] sm:$0xff]
        %v1686 = vld [vmem:[#allocation10 + $0xb8] sm:$0xff]
        %v1687 = vld [vmem:[#allocation10 + $0xc0] sm:$0xff]
        %v1688 = vld [vmem:[#allocation10 + $0xc8] sm:$0xff]
        %v1689 = vld [vmem:[#allocation10 + $0xd0] sm:$0xff]
        %v1690 = vld [vmem:[#allocation10 + $0xd8] sm:$0xff]
        %v1691 = vld [vmem:[#allocation10 + $0xe0] sm:$0xff]
        %v1692 = vld [vmem:[#allocation10 + $0xe8] sm:$0xff]
        %v1693 = vld [vmem:[#allocation10 + $0xf0] sm:$0xff]
        %v1694 = vld [vmem:[#allocation10 + $0xf8] sm:$0xff]
        %v1695 = vld [vmem:[#allocation10 + $0x100] sm:$0xff]
        %v1696 = vld [vmem:[#allocation10 + $0x108] sm:$0xff]
        %v1697 = vld [vmem:[#allocation10 + $0x110] sm:$0xff]
        %v1698 = vld [vmem:[#allocation10 + $0x118] sm:$0xff]
        %v1699 = vld [vmem:[#allocation10 + $0x120] sm:$0xff]
        %v1700 = vld [vmem:[#allocation10 + $0x128] sm:$0xff]
        %v1701 = vld [vmem:[#allocation10 + $0x130] sm:$0xff]
        %v1702 = vld [vmem:[#allocation10 + $0x138] sm:$0xff]
        %v1703 = vpack.c.bf16 %v1227, %v1224
        %v1736 = vunpack.c.l.b16 %v1671
        %v1737 = vunpack.c.h.b16 %v1671
        %v1738 = vunpack.c.l.b16 %v1672
        %v1739 = vunpack.c.h.b16 %v1672
        %v1740 = vunpack.c.l.b16 %v1673
        %v1741 = vunpack.c.h.b16 %v1673
        %v1742 = vunpack.c.l.b16 %v1674
        %v1743 = vunpack.c.h.b16 %v1674
        %v1744 = vunpack.c.l.b16 %v1675
        %v1745 = vunpack.c.h.b16 %v1675
        %v1746 = vunpack.c.l.b16 %v1676
        %v1747 = vunpack.c.h.b16 %v1676
        %v1748 = vunpack.c.l.b16 %v1677
        %v1749 = vunpack.c.h.b16 %v1677
        %v1750 = vunpack.c.l.b16 %v1678
        %v1751 = vunpack.c.h.b16 %v1678
        %v1752 = vunpack.c.l.b16 %v1679
        %v1753 = vunpack.c.h.b16 %v1679
        %v1754 = vunpack.c.l.b16 %v1680
        %v1755 = vunpack.c.h.b16 %v1680
        %v1756 = vunpack.c.l.b16 %v1681
        %v1757 = vunpack.c.h.b16 %v1681
        %v1758 = vunpack.c.l.b16 %v1682
        %v1759 = vunpack.c.h.b16 %v1682
        %v1760 = vunpack.c.l.b16 %v1683
        %v1761 = vunpack.c.h.b16 %v1683
        %v1762 = vunpack.c.l.b16 %v1684
        %v1763 = vunpack.c.h.b16 %v1684
        %v1764 = vunpack.c.l.b16 %v1685
        %v1765 = vunpack.c.h.b16 %v1685
        %v1766 = vunpack.c.l.b16 %v1686
        %v1767 = vunpack.c.h.b16 %v1686
        %v1768 = vunpack.c.l.b16 %v1687
        %v1769 = vunpack.c.h.b16 %v1687
        %v1770 = vunpack.c.l.b16 %v1688
        %v1771 = vunpack.c.h.b16 %v1688
        %v1772 = vunpack.c.l.b16 %v1689
        %v1773 = vunpack.c.h.b16 %v1689
        %v1774 = vunpack.c.l.b16 %v1690
        %v1775 = vunpack.c.h.b16 %v1690
        %v1776 = vunpack.c.l.b16 %v1691
        %v1777 = vunpack.c.h.b16 %v1691
        %v1778 = vunpack.c.l.b16 %v1692
        %v1779 = vunpack.c.h.b16 %v1692
        %v1780 = vunpack.c.l.b16 %v1693
        %v1781 = vunpack.c.h.b16 %v1693
        %v1782 = vunpack.c.l.b16 %v1694
        %v1783 = vunpack.c.h.b16 %v1694
        %v1784 = vunpack.c.l.b16 %v1695
        %v1785 = vunpack.c.h.b16 %v1695
        %v1786 = vunpack.c.l.b16 %v1696
        %v1787 = vunpack.c.h.b16 %v1696
        %v1788 = vunpack.c.l.b16 %v1697
        %v1789 = vunpack.c.h.b16 %v1697
        %v1790 = vunpack.c.l.b16 %v1698
        %v1791 = vunpack.c.h.b16 %v1698
        %v1792 = vunpack.c.l.b16 %v1699
        %v1793 = vunpack.c.h.b16 %v1699
        %v1794 = vunpack.c.l.b16 %v1700
        %v1795 = vunpack.c.h.b16 %v1700
        %v1796 = vunpack.c.l.b16 %v1701
        %v1797 = vunpack.c.h.b16 %v1701
        %v1798 = vunpack.c.l.b16 %v1702
        %v1799 = vunpack.c.h.b16 %v1702
        %v1800 = vpack.c.b16 %v1744, %v1736
        %v1801 = vpack.c.b16 %v1745, %v1737
        %v1802 = vpack.c.b16 %v1746, %v1738
        %v1803 = vpack.c.b16 %v1747, %v1739
        %v1804 = vpack.c.b16 %v1748, %v1740
        %v1805 = vpack.c.b16 %v1749, %v1741
        %v1806 = vpack.c.b16 %v1750, %v1742
        %v1807 = vpack.c.b16 %v1751, %v1743
        %v1808 = vpack.c.b16 %v1760, %v1752
        %v1809 = vpack.c.b16 %v1761, %v1753
        %v1810 = vpack.c.b16 %v1762, %v1754
        %v1811 = vpack.c.b16 %v1763, %v1755
        %v1812 = vpack.c.b16 %v1764, %v1756
        %v1813 = vpack.c.b16 %v1765, %v1757
        %v1814 = vpack.c.b16 %v1766, %v1758
        %v1815 = vpack.c.b16 %v1767, %v1759
        %v1816 = vpack.c.b16 %v1776, %v1768
        %v1817 = vpack.c.b16 %v1777, %v1769
        %v1818 = vpack.c.b16 %v1778, %v1770
        %v1819 = vpack.c.b16 %v1779, %v1771
        %v1820 = vpack.c.b16 %v1780, %v1772
        %v1821 = vpack.c.b16 %v1781, %v1773
        %v1822 = vpack.c.b16 %v1782, %v1774
        %v1823 = vpack.c.b16 %v1783, %v1775
        %v1824 = vpack.c.b16 %v1792, %v1784
        %v1825 = vpack.c.b16 %v1793, %v1785
        %v1826 = vpack.c.b16 %v1794, %v1786
        %v1827 = vpack.c.b16 %v1795, %v1787
        %v1828 = vpack.c.b16 %v1796, %v1788
        %v1829 = vpack.c.b16 %v1797, %v1789
        %v1830 = vpack.c.b16 %v1798, %v1790
        %v1831 = vpack.c.b16 %v1799, %v1791
        %v1865 = vsel %vm1551, %v1703, 0
        %1867 = vmatprep.subr.bf16.mxu0 %v1801
        %1868 = vmatpush1.bf16.msra.mxu0 %v1800
        %1869 = vmatprep.subr.bf16.mxu0 %v1809
        %1870 = vmatpush1.bf16.msra.mxu0 %v1808
        %1871 = vmatprep.subr.bf16.mxu0 %v1817
        %1872 = vmatpush1.bf16.msra.mxu0 %v1816
        %1873 = vmatprep.subr.bf16.mxu0 %v1825
        %1874 = vmatpush1.bf16.msra.mxu0 %v1824
        %1875 = vmatprep.subr.bf16.mxu0 0
        %1876 = vmatpush1.bf16.msra.mxu0 0
        %1877 = vmatprep.subr.bf16.mxu0 0
        %1878 = vmatpush1.bf16.msra.mxu0 0
        %1879 = vmatprep.subr.bf16.mxu0 0
        %1880 = vmatpush1.bf16.msra.mxu0 0
        %1881 = vmatprep.subr.bf16.mxu0 0
        %1882 = vmatpush1.bf16.msra.mxu0 0
        %1883 = vmatprep.subr.bf16.mxu0 0
        %1884 = vmatpush1.bf16.msra.mxu0 0
        %1885 = vmatprep.subr.bf16.mxu0 0
        %1886 = vmatpush1.bf16.msra.mxu0 0
        %1887 = vmatprep.subr.bf16.mxu0 0
        %1888 = vmatpush1.bf16.msra.mxu0 0
        %1889 = vmatprep.subr.bf16.mxu0 0
        %1890 = vmatpush1.bf16.msra.mxu0 0
        %1891 = vmatprep.subr.bf16.mxu0 0
        %1892 = vmatpush1.bf16.msra.mxu0 0
        %1893 = vmatprep.subr.bf16.mxu0 0
        %1894 = vmatpush1.bf16.msra.mxu0 0
        %1895 = vmatprep.subr.bf16.mxu0 0
        %1896 = vmatpush1.bf16.msra.mxu0 0
        %1897 = vmatprep.subr.bf16.mxu0 0
        %1898 = vmatpush1.bf16.msra.mxu0 0
        %1899 = vmatprep.mubr.bf16.mxu0 0
        %1900 = vmatmul.mubr.bf16.gmra.mrb[0].mxu0 %v1865
        %v1901 = vpop.f32.mrb[0].mxu0
        %v1902 = vadd.f32 0.0, %v1901
        %v1903 = vpop.f32.mrb[0].mxu0
        %v1904 = vadd.f32 0.0, %v1903
        %v1905 = vpop.f32.mrb[0].mxu0
        %v1906 = vadd.f32 0.0, %v1905
        %v1907 = vpop.f32.mrb[0].mxu0
        %v1908 = vadd.f32 0.0, %v1907
        %1909 = vdwg.mxu0
        %1910 = vmatprep.subr.bf16.mxu0 %v1803
        %1911 = vmatpush1.bf16.msra.mxu0 %v1802
        %1912 = vmatprep.subr.bf16.mxu0 %v1811
        %1913 = vmatpush1.bf16.msra.mxu0 %v1810
        %1914 = vmatprep.subr.bf16.mxu0 %v1819
        %1915 = vmatpush1.bf16.msra.mxu0 %v1818
        %1916 = vmatprep.subr.bf16.mxu0 %v1827
        %1917 = vmatpush1.bf16.msra.mxu0 %v1826
        %1918 = vmatprep.subr.bf16.mxu0 0
        %1919 = vmatpush1.bf16.msra.mxu0 0
        %1920 = vmatprep.subr.bf16.mxu0 0
        %1921 = vmatpush1.bf16.msra.mxu0 0
        %1922 = vmatprep.subr.bf16.mxu0 0
        %1923 = vmatpush1.bf16.msra.mxu0 0
        %1924 = vmatprep.subr.bf16.mxu0 0
        %1925 = vmatpush1.bf16.msra.mxu0 0
        %1926 = vmatprep.subr.bf16.mxu0 0
        %1927 = vmatpush1.bf16.msra.mxu0 0
        %1928 = vmatprep.subr.bf16.mxu0 0
        %1929 = vmatpush1.bf16.msra.mxu0 0
        %1930 = vmatprep.subr.bf16.mxu0 0
        %1931 = vmatpush1.bf16.msra.mxu0 0
        %1932 = vmatprep.subr.bf16.mxu0 0
        %1933 = vmatpush1.bf16.msra.mxu0 0
        %1934 = vmatprep.subr.bf16.mxu0 0
        %1935 = vmatpush1.bf16.msra.mxu0 0
        %1936 = vmatprep.subr.bf16.mxu0 0
        %1937 = vmatpush1.bf16.msra.mxu0 0
        %1938 = vmatprep.subr.bf16.mxu0 0
        %1939 = vmatpush1.bf16.msra.mxu0 0
        %1940 = vmatprep.subr.bf16.mxu0 0
        %1941 = vmatpush1.bf16.msra.mxu0 0
        %1942 = vmatprep.mubr.bf16.mxu0 0
        %1943 = vmatmul.mubr.bf16.gmra.mrb[0].mxu0 %v1865
        %v1944 = vpop.f32.mrb[0].mxu0
        %v1945 = vadd.f32 0.0, %v1944
        %v1946 = vpop.f32.mrb[0].mxu0
        %v1947 = vadd.f32 0.0, %v1946
        %v1948 = vpop.f32.mrb[0].mxu0
        %v1949 = vadd.f32 0.0, %v1948
        %v1950 = vpop.f32.mrb[0].mxu0
        %v1951 = vadd.f32 0.0, %v1950
        %1952 = vdwg.mxu0
        %1953 = vmatprep.subr.bf16.mxu0 %v1805
        %1954 = vmatpush1.bf16.msra.mxu0 %v1804
        %1955 = vmatprep.subr.bf16.mxu0 %v1813
        %1956 = vmatpush1.bf16.msra.mxu0 %v1812
        %1957 = vmatprep.subr.bf16.mxu0 %v1821
        %1958 = vmatpush1.bf16.msra.mxu0 %v1820
        %1959 = vmatprep.subr.bf16.mxu0 %v1829
        %1960 = vmatpush1.bf16.msra.mxu0 %v1828
        %1961 = vmatprep.subr.bf16.mxu0 0
        %1962 = vmatpush1.bf16.msra.mxu0 0
        %1963 = vmatprep.subr.bf16.mxu0 0
        %1964 = vmatpush1.bf16.msra.mxu0 0
        %1965 = vmatprep.subr.bf16.mxu0 0
        %1966 = vmatpush1.bf16.msra.mxu0 0
        %1967 = vmatprep.subr.bf16.mxu0 0
        %1968 = vmatpush1.bf16.msra.mxu0 0
        %1969 = vmatprep.subr.bf16.mxu0 0
        %1970 = vmatpush1.bf16.msra.mxu0 0
        %1971 = vmatprep.subr.bf16.mxu0 0
        %1972 = vmatpush1.bf16.msra.mxu0 0
        %1973 = vmatprep.subr.bf16.mxu0 0
        %1974 = vmatpush1.bf16.msra.mxu0 0
        %1975 = vmatprep.subr.bf16.mxu0 0
        %1976 = vmatpush1.bf16.msra.mxu0 0
        %1977 = vmatprep.subr.bf16.mxu0 0
        %1978 = vmatpush1.bf16.msra.mxu0 0
        %1979 = vmatprep.subr.bf16.mxu0 0
        %1980 = vmatpush1.bf16.msra.mxu0 0
        %1981 = vmatprep.subr.bf16.mxu0 0
        %1982 = vmatpush1.bf16.msra.mxu0 0
        %1983 = vmatprep.subr.bf16.mxu0 0
        %1984 = vmatpush1.bf16.msra.mxu0 0
        %1985 = vmatprep.mubr.bf16.mxu0 0
        %1986 = vmatmul.mubr.bf16.gmra.mrb[0].mxu0 %v1865
        %v1987 = vpop.f32.mrb[0].mxu0
        %v1988 = vadd.f32 0.0, %v1987
        %v1989 = vpop.f32.mrb[0].mxu0
        %v1990 = vadd.f32 0.0, %v1989
        %v1991 = vpop.f32.mrb[0].mxu0
        %v1992 = vadd.f32 0.0, %v1991
        %v1993 = vpop.f32.mrb[0].mxu0
        %v1994 = vadd.f32 0.0, %v1993
        %1995 = vdwg.mxu0
        %1996 = vmatprep.subr.bf16.mxu0 %v1807
        %1997 = vmatpush1.bf16.msra.mxu0 %v1806
        %1998 = vmatprep.subr.bf16.mxu0 %v1815
        %1999 = vmatpush1.bf16.msra.mxu0 %v1814
        %2000 = vmatprep.subr.bf16.mxu0 %v1823
        %2001 = vmatpush1.bf16.msra.mxu0 %v1822
        %2002 = vmatprep.subr.bf16.mxu0 %v1831
        %2003 = vmatpush1.bf16.msra.mxu0 %v1830
        %2004 = vmatprep.subr.bf16.mxu0 0
        %2005 = vmatpush1.bf16.msra.mxu0 0
        %2006 = vmatprep.subr.bf16.mxu0 0
        %2007 = vmatpush1.bf16.msra.mxu0 0
        %2008 = vmatprep.subr.bf16.mxu0 0
        %2009 = vmatpush1.bf16.msra.mxu0 0
        %2010 = vmatprep.subr.bf16.mxu0 0
        %2011 = vmatpush1.bf16.msra.mxu0 0
        %2012 = vmatprep.subr.bf16.mxu0 0
        %2013 = vmatpush1.bf16.msra.mxu0 0
        %2014 = vmatprep.subr.bf16.mxu0 0
        %2015 = vmatpush1.bf16.msra.mxu0 0
        %2016 = vmatprep.subr.bf16.mxu0 0
        %2017 = vmatpush1.bf16.msra.mxu0 0
        %2018 = vmatprep.subr.bf16.mxu0 0
        %2019 = vmatpush1.bf16.msra.mxu0 0
        %2020 = vmatprep.subr.bf16.mxu0 0
        %2021 = vmatpush1.bf16.msra.mxu0 0
        %2022 = vmatprep.subr.bf16.mxu0 0
        %2023 = vmatpush1.bf16.msra.mxu0 0
        %2024 = vmatprep.subr.bf16.mxu0 0
        %2025 = vmatpush1.bf16.msra.mxu0 0
        %2026 = vmatprep.subr.bf16.mxu0 0
        %2027 = vmatpush1.bf16.msra.mxu0 0
        %2028 = vmatprep.mubr.bf16.mxu0 0
        %2029 = vmatmul.mubr.bf16.gmra.mrb[0].mxu0 %v1865
        %v2030 = vpop.f32.mrb[0].mxu0
        %v2031 = vadd.f32 0.0, %v2030
        %v2032 = vpop.f32.mrb[0].mxu0
        %v2033 = vadd.f32 0.0, %v2032
        %v2034 = vpop.f32.mrb[0].mxu0
        %v2035 = vadd.f32 0.0, %v2034
        %v2036 = vpop.f32.mrb[0].mxu0
        %v2037 = vadd.f32 0.0, %v2036
        %2038 = vdwg.mxu0
        %v2047 = vunpack.c.l.b16 %v1662
        %v2048 = vunpack.c.h.b16 %v1662
        %v2049 = vunpack.c.l.b16 %v1663
        %v2050 = vunpack.c.h.b16 %v1663
        %v2051 = vunpack.c.l.b16 %v1664
        %v2052 = vunpack.c.h.b16 %v1664
        %v2053 = vunpack.c.l.b16 %v1665
        %v2054 = vunpack.c.h.b16 %v1665
        %v2055 = vunpack.c.l.b16 %v1666
        %v2056 = vunpack.c.h.b16 %v1666
        %v2057 = vunpack.c.l.b16 %v1667
        %v2058 = vunpack.c.h.b16 %v1667
        %v2059 = vunpack.c.l.b16 %v1668
        %v2060 = vunpack.c.h.b16 %v1668
        %v2061 = vunpack.c.l.b16 %v1669
        %v2062 = vunpack.c.h.b16 %v1669
        %v2063 = vpack.c.b16 %v2055, %v2047
        %v2064 = vpack.c.b16 %v2056, %v2048
        %v2065 = vpack.c.b16 %v2057, %v2049
        %v2066 = vpack.c.b16 %v2058, %v2050
        %v2067 = vpack.c.b16 %v2059, %v2051
        %v2068 = vpack.c.b16 %v2060, %v2052
        %v2069 = vpack.c.b16 %v2061, %v2053
        %v2070 = vpack.c.b16 %v2062, %v2054
        %vm2079 = vcmask 130048
        %v2081 = vsel %vm2079, %v1670, 0
        %2083 = vmatprep.subr.bf16.mxu0 %v2064
        %2084 = vmatpush1.bf16.msra.mxu0 %v2063
        %2085 = vmatprep.subr.bf16.mxu0 0
        %2086 = vmatpush1.bf16.msra.mxu0 0
        %2087 = vmatprep.subr.bf16.mxu0 0
        %2088 = vmatpush1.bf16.msra.mxu0 0
        %2089 = vmatprep.subr.bf16.mxu0 0
        %2090 = vmatpush1.bf16.msra.mxu0 0
        %2091 = vmatprep.subr.bf16.mxu0 0
        %2092 = vmatpush1.bf16.msra.mxu0 0
        %2093 = vmatprep.subr.bf16.mxu0 0
        %2094 = vmatpush1.bf16.msra.mxu0 0
        %2095 = vmatprep.subr.bf16.mxu0 0
        %2096 = vmatpush1.bf16.msra.mxu0 0
        %2097 = vmatprep.subr.bf16.mxu0 0
        %2098 = vmatpush1.bf16.msra.mxu0 0
        %2099 = vmatprep.subr.bf16.mxu0 0
        %2100 = vmatpush1.bf16.msra.mxu0 0
        %2101 = vmatprep.subr.bf16.mxu0 0
        %2102 = vmatpush1.bf16.msra.mxu0 0
        %2103 = vmatprep.subr.bf16.mxu0 0
        %2104 = vmatpush1.bf16.msra.mxu0 0
        %2105 = vmatprep.subr.bf16.mxu0 0
        %2106 = vmatpush1.bf16.msra.mxu0 0
        %2107 = vmatprep.subr.bf16.mxu0 0
        %2108 = vmatpush1.bf16.msra.mxu0 0
        %2109 = vmatprep.subr.bf16.mxu0 0
        %2110 = vmatpush1.bf16.msra.mxu0 0
        %2111 = vmatprep.subr.bf16.mxu0 0
        %2112 = vmatpush1.bf16.msra.mxu0 0
        %2113 = vmatprep.subr.bf16.mxu0 0
        %2114 = vmatpush1.bf16.msra.mxu0 0
        %2115 = vmatprep.mubr.bf16.mxu0 0
        %2116 = vmatmul.mubr.bf16.gmra.mrb[0].mxu0 %v2081
        %v2117 = vpop.f32.mrb[0].mxu0
        %v2118 = vadd.f32 %v1902, %v2117
        %v2119 = vpop.f32.mrb[0].mxu0
        %v2120 = vadd.f32 %v1904, %v2119
        %v2121 = vpop.f32.mrb[0].mxu0
        %v2122 = vadd.f32 %v1906, %v2121
        %v2123 = vpop.f32.mrb[0].mxu0
        %v2124 = vadd.f32 %v1908, %v2123
        %2125 = vdwg.mxu0
        %2126 = vmatprep.subr.bf16.mxu0 %v2066
        %2127 = vmatpush1.bf16.msra.mxu0 %v2065
        %2128 = vmatprep.subr.bf16.mxu0 0
        %2129 = vmatpush1.bf16.msra.mxu0 0
        %2130 = vmatprep.subr.bf16.mxu0 0
        %2131 = vmatpush1.bf16.msra.mxu0 0
        %2132 = vmatprep.subr.bf16.mxu0 0
        %2133 = vmatpush1.bf16.msra.mxu0 0
        %2134 = vmatprep.subr.bf16.mxu0 0
        %2135 = vmatpush1.bf16.msra.mxu0 0
        %2136 = vmatprep.subr.bf16.mxu0 0
        %2137 = vmatpush1.bf16.msra.mxu0 0
        %2138 = vmatprep.subr.bf16.mxu0 0
        %2139 = vmatpush1.bf16.msra.mxu0 0
        %2140 = vmatprep.subr.bf16.mxu0 0
        %2141 = vmatpush1.bf16.msra.mxu0 0
        %2142 = vmatprep.subr.bf16.mxu0 0
        %2143 = vmatpush1.bf16.msra.mxu0 0
        %2144 = vmatprep.subr.bf16.mxu0 0
        %2145 = vmatpush1.bf16.msra.mxu0 0
        %2146 = vmatprep.subr.bf16.mxu0 0
        %2147 = vmatpush1.bf16.msra.mxu0 0
        %2148 = vmatprep.subr.bf16.mxu0 0
        %2149 = vmatpush1.bf16.msra.mxu0 0
        %2150 = vmatprep.subr.bf16.mxu0 0
        %2151 = vmatpush1.bf16.msra.mxu0 0
        %2152 = vmatprep.subr.bf16.mxu0 0
        %2153 = vmatpush1.bf16.msra.mxu0 0
        %2154 = vmatprep.subr.bf16.mxu0 0
        %2155 = vmatpush1.bf16.msra.mxu0 0
        %2156 = vmatprep.subr.bf16.mxu0 0
        %2157 = vmatpush1.bf16.msra.mxu0 0
        %2158 = vmatprep.mubr.bf16.mxu0 0
        %2159 = vmatmul.mubr.bf16.gmra.mrb[0].mxu0 %v2081
        %v2160 = vpop.f32.mrb[0].mxu0
        %v2161 = vadd.f32 %v1945, %v2160
        %v2162 = vpop.f32.mrb[0].mxu0
        %v2163 = vadd.f32 %v1947, %v2162
        %v2164 = vpop.f32.mrb[0].mxu0
        %v2165 = vadd.f32 %v1949, %v2164
        %v2166 = vpop.f32.mrb[0].mxu0
        %v2167 = vadd.f32 %v1951, %v2166
        %2168 = vdwg.mxu0
        %2169 = vmatprep.subr.bf16.mxu0 %v2068
        %2170 = vmatpush1.bf16.msra.mxu0 %v2067
        %2171 = vmatprep.subr.bf16.mxu0 0
        %2172 = vmatpush1.bf16.msra.mxu0 0
        %2173 = vmatprep.subr.bf16.mxu0 0
        %2174 = vmatpush1.bf16.msra.mxu0 0
        %2175 = vmatprep.subr.bf16.mxu0 0
        %2176 = vmatpush1.bf16.msra.mxu0 0
        %2177 = vmatprep.subr.bf16.mxu0 0
        %2178 = vmatpush1.bf16.msra.mxu0 0
        %2179 = vmatprep.subr.bf16.mxu0 0
        %2180 = vmatpush1.bf16.msra.mxu0 0
        %2181 = vmatprep.subr.bf16.mxu0 0
        %2182 = vmatpush1.bf16.msra.mxu0 0
        %2183 = vmatprep.subr.bf16.mxu0 0
        %2184 = vmatpush1.bf16.msra.mxu0 0
        %2185 = vmatprep.subr.bf16.mxu0 0
        %2186 = vmatpush1.bf16.msra.mxu0 0
        %2187 = vmatprep.subr.bf16.mxu0 0
        %2188 = vmatpush1.bf16.msra.mxu0 0
        %2189 = vmatprep.subr.bf16.mxu0 0
        %2190 = vmatpush1.bf16.msra.mxu0 0
        %2191 = vmatprep.subr.bf16.mxu0 0
        %2192 = vmatpush1.bf16.msra.mxu0 0
        %2193 = vmatprep.subr.bf16.mxu0 0
        %2194 = vmatpush1.bf16.msra.mxu0 0
        %2195 = vmatprep.subr.bf16.mxu0 0
        %2196 = vmatpush1.bf16.msra.mxu0 0
        %2197 = vmatprep.subr.bf16.mxu0 0
        %2198 = vmatpush1.bf16.msra.mxu0 0
        %2199 = vmatprep.subr.bf16.mxu0 0
        %2200 = vmatpush1.bf16.msra.mxu0 0
        %2201 = vmatprep.mubr.bf16.mxu0 0
        %2202 = vmatmul.mubr.bf16.gmra.mrb[0].mxu0 %v2081
        %v2203 = vpop.f32.mrb[0].mxu0
        %v2204 = vadd.f32 %v1988, %v2203
        %v2205 = vpop.f32.mrb[0].mxu0
        %v2206 = vadd.f32 %v1990, %v2205
        %v2207 = vpop.f32.mrb[0].mxu0
        %v2208 = vadd.f32 %v1992, %v2207
        %v2209 = vpop.f32.mrb[0].mxu0
        %v2210 = vadd.f32 %v1994, %v2209
        %2211 = vdwg.mxu0
        %2212 = vmatprep.subr.bf16.mxu0 %v2070
        %2213 = vmatpush1.bf16.msra.mxu0 %v2069
        %2214 = vmatprep.subr.bf16.mxu0 0
        %2215 = vmatpush1.bf16.msra.mxu0 0
        %2216 = vmatprep.subr.bf16.mxu0 0
        %2217 = vmatpush1.bf16.msra.mxu0 0
        %2218 = vmatprep.subr.bf16.mxu0 0
        %2219 = vmatpush1.bf16.msra.mxu0 0
        %2220 = vmatprep.subr.bf16.mxu0 0
        %2221 = vmatpush1.bf16.msra.mxu0 0
        %2222 = vmatprep.subr.bf16.mxu0 0
        %2223 = vmatpush1.bf16.msra.mxu0 0
        %2224 = vmatprep.subr.bf16.mxu0 0
        %2225 = vmatpush1.bf16.msra.mxu0 0
        %2226 = vmatprep.subr.bf16.mxu0 0
        %2227 = vmatpush1.bf16.msra.mxu0 0
        %2228 = vmatprep.subr.bf16.mxu0 0
        %2229 = vmatpush1.bf16.msra.mxu0 0
        %2230 = vmatprep.subr.bf16.mxu0 0
        %2231 = vmatpush1.bf16.msra.mxu0 0
        %2232 = vmatprep.subr.bf16.mxu0 0
        %2233 = vmatpush1.bf16.msra.mxu0 0
        %2234 = vmatprep.subr.bf16.mxu0 0
        %2235 = vmatpush1.bf16.msra.mxu0 0
        %2236 = vmatprep.subr.bf16.mxu0 0
        %2237 = vmatpush1.bf16.msra.mxu0 0
        %2238 = vmatprep.subr.bf16.mxu0 0
        %2239 = vmatpush1.bf16.msra.mxu0 0
        %2240 = vmatprep.subr.bf16.mxu0 0
        %2241 = vmatpush1.bf16.msra.mxu0 0
        %2242 = vmatprep.subr.bf16.mxu0 0
        %2243 = vmatpush1.bf16.msra.mxu0 0
        %2244 = vmatprep.mubr.bf16.mxu0 0
        %2245 = vmatmul.mubr.bf16.gmra.mrb[0].mxu0 %v2081
        %v2246 = vpop.f32.mrb[0].mxu0
        %v2247 = vadd.f32 %v2031, %v2246
        %v2248 = vpop.f32.mrb[0].mxu0
        %v2249 = vadd.f32 %v2033, %v2248
        %v2250 = vpop.f32.mrb[0].mxu0
        %v2251 = vadd.f32 %v2035, %v2250
        %v2252 = vpop.f32.mrb[0].mxu0
        %v2253 = vadd.f32 %v2037, %v2252
        %2254 = vdwg.mxu0
        %s2255 = scalar_lea.vmem [#allocation15], 7
        %v2256 = vld [vmem:[%s2255] ss:$8 sm:$0xf]
        %v2257 = vld [vmem:[%s2255] ss:$8 sm:$0xf0]
        %v2258 = vor.u32 %v2256, %v2257
        %v2260 = vlaneseq
        %v2261 = vshrl.u32 %v2260, 7
        %v2262 = vsub.s32 0, %v2261
        %v2263 = vrot.slane %v2258, %v2262
        %v2264 = vlaneseq
        %v2265 = vshrl.u32 %v2264, 7
        %v2266 = vsub.s32 1, %v2265
        %v2267 = vrot.slane %v2258, %v2266
        %v2268 = vlaneseq
        %v2269 = vshrl.u32 %v2268, 7
        %v2270 = vsub.s32 2, %v2269
        %v2271 = vrot.slane %v2258, %v2270
        %v2272 = vlaneseq
        %v2273 = vshrl.u32 %v2272, 7
        %v2274 = vsub.s32 3, %v2273
        %v2275 = vrot.slane %v2258, %v2274
        %v2276 = vlaneseq
        %v2277 = vshrl.u32 %v2276, 7
        %v2278 = vsub.s32 4, %v2277
        %v2279 = vrot.slane %v2258, %v2278
        %v2280 = vlaneseq
        %v2281 = vshrl.u32 %v2280, 7
        %v2282 = vsub.s32 5, %v2281
        %v2283 = vrot.slane %v2258, %v2282
        %v2284 = vlaneseq
        %v2285 = vshrl.u32 %v2284, 7
        %v2286 = vsub.s32 6, %v2285
        %v2287 = vrot.slane %v2258, %v2286
        %v2288 = vlaneseq
        %v2289 = vshrl.u32 %v2288, 7
        %v2290 = vsub.s32 7, %v2289
        %v2291 = vrot.slane %v2258, %v2290
        %v2300 = vadd.f32 %v2118, %v2263
        %v2301 = vadd.f32 %v2120, %v2267
        %v2302 = vadd.f32 %v2161, %v2271
        %v2303 = vadd.f32 %v2163, %v2275
        %v2304 = vadd.f32 %v2204, %v2279
        %v2305 = vadd.f32 %v2206, %v2283
        %v2306 = vadd.f32 %v2247, %v2287
        %v2307 = vadd.f32 %v2249, %v2291
        %v2308 = vadd.f32 %v2122, %v2263
        %v2309 = vadd.f32 %v2124, %v2267
        %v2310 = vadd.f32 %v2165, %v2271
        %v2311 = vadd.f32 %v2167, %v2275
        %v2312 = vadd.f32 %v2208, %v2279
        %v2313 = vadd.f32 %v2210, %v2283
        %v2314 = vadd.f32 %v2251, %v2287
        %v2315 = vadd.f32 %v2253, %v2291
        %v2316 = vmax.f32 %v2300, 0.0
        %v2317 = vmax.f32 %v2301, 0.0
        %v2318 = vmax.f32 %v2302, 0.0
        %v2319 = vmax.f32 %v2303, 0.0
        %v2320 = vmax.f32 %v2304, 0.0
        %v2321 = vmax.f32 %v2305, 0.0
        %v2322 = vmax.f32 %v2306, 0.0
        %v2323 = vmax.f32 %v2307, 0.0
        %v2324 = vmax.f32 %v2308, 0.0
        %v2325 = vmax.f32 %v2309, 0.0
        %v2326 = vmax.f32 %v2310, 0.0
        %v2327 = vmax.f32 %v2311, 0.0
        %v2328 = vmax.f32 %v2312, 0.0
        %v2329 = vmax.f32 %v2313, 0.0
        %v2330 = vmax.f32 %v2314, 0.0
        %v2331 = vmax.f32 %v2315, 0.0
        %v2332 = vld [vmem:[#allocation12] sm:$0xff]
        %v2333 = vld [vmem:[#allocation12 + $0x8] sm:$0xff]
        %v2334 = vld [vmem:[#allocation12 + $0x10] sm:$0xff]
        %v2335 = vld [vmem:[#allocation12 + $0x18] sm:$0xff]
        %v2336 = vld [vmem:[#allocation12 + $0x20] sm:$0xff]
        %v2337 = vld [vmem:[#allocation12 + $0x28] sm:$0xff]
        %v2338 = vld [vmem:[#allocation12 + $0x30] sm:$0xff]
        %v2339 = vld [vmem:[#allocation12 + $0x38] sm:$0xff]
        %v2340 = vld [vmem:[#allocation12 + $0x40] sm:$0xff]
        %v2341 = vld [vmem:[#allocation12 + $0x48] sm:$0xff]
        %v2342 = vld [vmem:[#allocation12 + $0x50] sm:$0xff]
        %v2343 = vld [vmem:[#allocation12 + $0x58] sm:$0xff]
        %v2344 = vld [vmem:[#allocation12 + $0x60] sm:$0xff]
        %v2345 = vld [vmem:[#allocation12 + $0x68] sm:$0xff]
        %v2346 = vld [vmem:[#allocation12 + $0x70] sm:$0xff]
        %v2347 = vld [vmem:[#allocation12 + $0x78] sm:$0xff]
        %v2348 = vld [vmem:[#allocation12 + $0x80] sm:$0xff]
        %v2349 = vld [vmem:[#allocation12 + $0x88] sm:$0xff]
        %v2350 = vld [vmem:[#allocation12 + $0x90] sm:$0xff]
        %v2351 = vld [vmem:[#allocation12 + $0x98] sm:$0xff]
        %v2352 = vld [vmem:[#allocation12 + $0xa0] sm:$0xff]
        %v2353 = vld [vmem:[#allocation12 + $0xa8] sm:$0xff]
        %v2354 = vld [vmem:[#allocation12 + $0xb0] sm:$0xff]
        %v2355 = vld [vmem:[#allocation12 + $0xb8] sm:$0xff]
        %v2356 = vld [vmem:[#allocation12 + $0xc0] sm:$0xff]
        %v2357 = vld [vmem:[#allocation12 + $0xc8] sm:$0xff]
        %v2358 = vld [vmem:[#allocation12 + $0xd0] sm:$0xff]
        %v2359 = vld [vmem:[#allocation12 + $0xd8] sm:$0xff]
        %v2360 = vld [vmem:[#allocation12 + $0xe0] sm:$0xff]
        %v2361 = vld [vmem:[#allocation12 + $0xe8] sm:$0xff]
        %v2362 = vld [vmem:[#allocation12 + $0xf0] sm:$0xff]
        %v2363 = vld [vmem:[#allocation12 + $0xf8] sm:$0xff]
        %v2364 = vld [vmem:[#allocation12 + $0x100] sm:$0xff]
        %v2365 = vld [vmem:[#allocation12 + $0x108] sm:$0xff]
        %v2366 = vld [vmem:[#allocation12 + $0x110] sm:$0xff]
        %v2367 = vld [vmem:[#allocation12 + $0x118] sm:$0xff]
        %v2368 = vld [vmem:[#allocation12 + $0x120] sm:$0xff]
        %v2369 = vld [vmem:[#allocation12 + $0x128] sm:$0xff]
        %v2370 = vld [vmem:[#allocation12 + $0x130] sm:$0xff]
        %v2371 = vld [vmem:[#allocation12 + $0x138] sm:$0xff]
        %v2372 = vld [vmem:[#allocation12 + $0x140] sm:$0xff]
        %v2373 = vld [vmem:[#allocation12 + $0x148] sm:$0xff]
        %v2374 = vld [vmem:[#allocation12 + $0x150] sm:$0xff]
        %v2375 = vld [vmem:[#allocation12 + $0x158] sm:$0xff]
        %v2376 = vld [vmem:[#allocation12 + $0x160] sm:$0xff]
        %v2377 = vld [vmem:[#allocation12 + $0x168] sm:$0xff]
        %v2378 = vld [vmem:[#allocation12 + $0x170] sm:$0xff]
        %v2379 = vld [vmem:[#allocation12 + $0x178] sm:$0xff]
        %v2380 = vld [vmem:[#allocation12 + $0x180] sm:$0xff]
        %v2381 = vld [vmem:[#allocation12 + $0x188] sm:$0xff]
        %v2382 = vld [vmem:[#allocation12 + $0x190] sm:$0xff]
        %v2383 = vld [vmem:[#allocation12 + $0x198] sm:$0xff]
        %v2384 = vld [vmem:[#allocation12 + $0x1a0] sm:$0xff]
        %v2385 = vld [vmem:[#allocation12 + $0x1a8] sm:$0xff]
        %v2386 = vld [vmem:[#allocation12 + $0x1b0] sm:$0xff]
        %v2387 = vld [vmem:[#allocation12 + $0x1b8] sm:$0xff]
        %v2388 = vld [vmem:[#allocation12 + $0x1c0] sm:$0xff]
        %v2389 = vld [vmem:[#allocation12 + $0x1c8] sm:$0xff]
        %v2390 = vld [vmem:[#allocation12 + $0x1d0] sm:$0xff]
        %v2391 = vld [vmem:[#allocation12 + $0x1d8] sm:$0xff]
        %v2392 = vld [vmem:[#allocation12 + $0x1e0] sm:$0xff]
        %v2393 = vld [vmem:[#allocation12 + $0x1e8] sm:$0xff]
        %v2394 = vld [vmem:[#allocation12 + $0x1f0] sm:$0xff]
        %v2395 = vld [vmem:[#allocation12 + $0x1f8] sm:$0xff]
        %v2396 = vld [vmem:[#allocation12 + $0x200] sm:$0xff]
        %v2397 = vld [vmem:[#allocation12 + $0x208] sm:$0xff]
        %v2398 = vld [vmem:[#allocation12 + $0x210] sm:$0xff]
        %v2399 = vld [vmem:[#allocation12 + $0x218] sm:$0xff]
        %v2400 = vld [vmem:[#allocation12 + $0x220] sm:$0xff]
        %v2401 = vld [vmem:[#allocation12 + $0x228] sm:$0xff]
        %v2402 = vld [vmem:[#allocation12 + $0x230] sm:$0xff]
        %v2403 = vld [vmem:[#allocation12 + $0x238] sm:$0xff]
        %v2404 = vld [vmem:[#allocation12 + $0x240] sm:$0xff]
        %v2405 = vld [vmem:[#allocation12 + $0x248] sm:$0xff]
        %v2406 = vld [vmem:[#allocation12 + $0x250] sm:$0xff]
        %v2407 = vld [vmem:[#allocation12 + $0x258] sm:$0xff]
        %v2408 = vld [vmem:[#allocation12 + $0x260] sm:$0xff]
        %v2409 = vld [vmem:[#allocation12 + $0x268] sm:$0xff]
        %v2410 = vld [vmem:[#allocation12 + $0x270] sm:$0xff]
        %v2411 = vld [vmem:[#allocation12 + $0x278] sm:$0xff]
        %v2412 = vld [vmem:[#allocation12 + $0x280] sm:$0xff]
        %v2413 = vld [vmem:[#allocation12 + $0x288] sm:$0xff]
        %v2414 = vld [vmem:[#allocation12 + $0x290] sm:$0xff]
        %v2415 = vld [vmem:[#allocation12 + $0x298] sm:$0xff]
        %v2416 = vld [vmem:[#allocation12 + $0x2a0] sm:$0xff]
        %v2417 = vld [vmem:[#allocation12 + $0x2a8] sm:$0xff]
        %v2418 = vld [vmem:[#allocation12 + $0x2b0] sm:$0xff]
        %v2419 = vld [vmem:[#allocation12 + $0x2b8] sm:$0xff]
        %v2420 = vld [vmem:[#allocation12 + $0x2c0] sm:$0xff]
        %v2421 = vld [vmem:[#allocation12 + $0x2c8] sm:$0xff]
        %v2422 = vld [vmem:[#allocation12 + $0x2d0] sm:$0xff]
        %v2423 = vld [vmem:[#allocation12 + $0x2d8] sm:$0xff]
        %v2424 = vld [vmem:[#allocation12 + $0x2e0] sm:$0xff]
        %v2425 = vld [vmem:[#allocation12 + $0x2e8] sm:$0xff]
        %v2426 = vld [vmem:[#allocation12 + $0x2f0] sm:$0xff]
        %v2427 = vld [vmem:[#allocation12 + $0x2f8] sm:$0xff]
        %v2428 = vld [vmem:[#allocation12 + $0x300] sm:$0xff]
        %v2429 = vld [vmem:[#allocation12 + $0x308] sm:$0xff]
        %v2430 = vld [vmem:[#allocation12 + $0x310] sm:$0xff]
        %v2431 = vld [vmem:[#allocation12 + $0x318] sm:$0xff]
        %v2432 = vld [vmem:[#allocation12 + $0x320] sm:$0xff]
        %v2433 = vld [vmem:[#allocation12 + $0x328] sm:$0xff]
        %v2434 = vld [vmem:[#allocation12 + $0x330] sm:$0xff]
        %v2435 = vld [vmem:[#allocation12 + $0x338] sm:$0xff]
        %v2436 = vld [vmem:[#allocation12 + $0x340] sm:$0xff]
        %v2437 = vld [vmem:[#allocation12 + $0x348] sm:$0xff]
        %v2438 = vld [vmem:[#allocation12 + $0x350] sm:$0xff]
        %v2439 = vld [vmem:[#allocation12 + $0x358] sm:$0xff]
        %v2440 = vld [vmem:[#allocation12 + $0x360] sm:$0xff]
        %v2441 = vld [vmem:[#allocation12 + $0x368] sm:$0xff]
        %v2442 = vld [vmem:[#allocation12 + $0x370] sm:$0xff]
        %v2443 = vld [vmem:[#allocation12 + $0x378] sm:$0xff]
        %v2444 = vld [vmem:[#allocation12 + $0x380] sm:$0xff]
        %v2445 = vld [vmem:[#allocation12 + $0x388] sm:$0xff]
        %v2446 = vld [vmem:[#allocation12 + $0x390] sm:$0xff]
        %v2447 = vld [vmem:[#allocation12 + $0x398] sm:$0xff]
        %v2448 = vld [vmem:[#allocation12 + $0x3a0] sm:$0xff]
        %v2449 = vld [vmem:[#allocation12 + $0x3a8] sm:$0xff]
        %v2450 = vld [vmem:[#allocation12 + $0x3b0] sm:$0xff]
        %v2451 = vld [vmem:[#allocation12 + $0x3b8] sm:$0xff]
        %v2452 = vld [vmem:[#allocation12 + $0x3c0] sm:$0xff]
        %v2453 = vld [vmem:[#allocation12 + $0x3c8] sm:$0xff]
        %v2454 = vld [vmem:[#allocation12 + $0x3d0] sm:$0xff]
        %v2455 = vld [vmem:[#allocation12 + $0x3d8] sm:$0xff]
        %v2456 = vld [vmem:[#allocation12 + $0x3e0] sm:$0xff]
        %v2457 = vld [vmem:[#allocation12 + $0x3e8] sm:$0xff]
        %v2458 = vld [vmem:[#allocation12 + $0x3f0] sm:$0xff]
        %v2459 = vld [vmem:[#allocation12 + $0x3f8] sm:$0xff]
        %v2460 = vld [vmem:[#allocation12 + $0x400] sm:$0xff]
        %v2461 = vld [vmem:[#allocation12 + $0x408] sm:$0xff]
        %v2462 = vld [vmem:[#allocation12 + $0x410] sm:$0xff]
        %v2463 = vld [vmem:[#allocation12 + $0x418] sm:$0xff]
        %v2464 = vld [vmem:[#allocation12 + $0x420] sm:$0xff]
        %v2465 = vld [vmem:[#allocation12 + $0x428] sm:$0xff]
        %v2466 = vld [vmem:[#allocation12 + $0x430] sm:$0xff]
        %v2467 = vld [vmem:[#allocation12 + $0x438] sm:$0xff]
        %v2468 = vld [vmem:[#allocation12 + $0x440] sm:$0xff]
        %v2469 = vld [vmem:[#allocation12 + $0x448] sm:$0xff]
        %v2470 = vld [vmem:[#allocation12 + $0x450] sm:$0xff]
        %v2471 = vld [vmem:[#allocation12 + $0x458] sm:$0xff]
        %v2472 = vld [vmem:[#allocation12 + $0x460] sm:$0xff]
        %v2473 = vld [vmem:[#allocation12 + $0x468] sm:$0xff]
        %v2474 = vld [vmem:[#allocation12 + $0x470] sm:$0xff]
        %v2475 = vld [vmem:[#allocation12 + $0x478] sm:$0xff]
        %v2476 = vld [vmem:[#allocation12 + $0x480] sm:$0xff]
        %v2477 = vld [vmem:[#allocation12 + $0x488] sm:$0xff]
        %v2478 = vld [vmem:[#allocation12 + $0x490] sm:$0xff]
        %v2479 = vld [vmem:[#allocation12 + $0x498] sm:$0xff]
        %v2480 = vld [vmem:[#allocation12 + $0x4a0] sm:$0xff]
        %v2481 = vld [vmem:[#allocation12 + $0x4a8] sm:$0xff]
        %v2482 = vld [vmem:[#allocation12 + $0x4b0] sm:$0xff]
        %v2483 = vld [vmem:[#allocation12 + $0x4b8] sm:$0xff]
        %v2484 = vld [vmem:[#allocation12 + $0x4c0] sm:$0xff]
        %v2485 = vld [vmem:[#allocation12 + $0x4c8] sm:$0xff]
        %v2486 = vld [vmem:[#allocation12 + $0x4d0] sm:$0xff]
        %v2487 = vld [vmem:[#allocation12 + $0x4d8] sm:$0xff]
        %v2488 = vld [vmem:[#allocation12 + $0x4e0] sm:$0xff]
        %v2489 = vld [vmem:[#allocation12 + $0x4e8] sm:$0xff]
        %v2490 = vld [vmem:[#allocation12 + $0x4f0] sm:$0xff]
        %v2491 = vld [vmem:[#allocation12 + $0x4f8] sm:$0xff]
        %v2492 = vld [vmem:[#allocation12 + $0x500] sm:$0xff]
        %v2493 = vld [vmem:[#allocation12 + $0x508] sm:$0xff]
        %v2494 = vld [vmem:[#allocation12 + $0x510] sm:$0xff]
        %v2495 = vld [vmem:[#allocation12 + $0x518] sm:$0xff]
        %v2496 = vld [vmem:[#allocation12 + $0x520] sm:$0xff]
        %v2497 = vld [vmem:[#allocation12 + $0x528] sm:$0xff]
        %v2498 = vld [vmem:[#allocation12 + $0x530] sm:$0xff]
        %v2499 = vld [vmem:[#allocation12 + $0x538] sm:$0xff]
        %v2500 = vld [vmem:[#allocation12 + $0x540] sm:$0xff]
        %v2501 = vld [vmem:[#allocation12 + $0x548] sm:$0xff]
        %v2502 = vld [vmem:[#allocation12 + $0x550] sm:$0xff]
        %v2503 = vld [vmem:[#allocation12 + $0x558] sm:$0xff]
        %v2504 = vld [vmem:[#allocation12 + $0x560] sm:$0xff]
        %v2505 = vld [vmem:[#allocation12 + $0x568] sm:$0xff]
        %v2506 = vld [vmem:[#allocation12 + $0x570] sm:$0xff]
        %v2507 = vld [vmem:[#allocation12 + $0x578] sm:$0xff]
        %v2508 = vld [vmem:[#allocation12 + $0x580] sm:$0xff]
        %v2509 = vld [vmem:[#allocation12 + $0x588] sm:$0xff]
        %v2510 = vld [vmem:[#allocation12 + $0x590] sm:$0xff]
        %v2511 = vld [vmem:[#allocation12 + $0x598] sm:$0xff]
        %v2512 = vld [vmem:[#allocation12 + $0x5a0] sm:$0xff]
        %v2513 = vld [vmem:[#allocation12 + $0x5a8] sm:$0xff]
        %v2514 = vld [vmem:[#allocation12 + $0x5b0] sm:$0xff]
        %v2515 = vld [vmem:[#allocation12 + $0x5b8] sm:$0xff]
        %v2516 = vld [vmem:[#allocation12 + $0x5c0] sm:$0xff]
        %v2517 = vld [vmem:[#allocation12 + $0x5c8] sm:$0xff]
        %v2518 = vld [vmem:[#allocation12 + $0x5d0] sm:$0xff]
        %v2519 = vld [vmem:[#allocation12 + $0x5d8] sm:$0xff]
        %v2520 = vld [vmem:[#allocation12 + $0x5e0] sm:$0xff]
        %v2521 = vld [vmem:[#allocation12 + $0x5e8] sm:$0xff]
        %v2522 = vld [vmem:[#allocation12 + $0x5f0] sm:$0xff]
        %v2523 = vld [vmem:[#allocation12 + $0x5f8] sm:$0xff]
        %v2524 = vld [vmem:[#allocation12 + $0x600] sm:$0xff]
        %v2525 = vld [vmem:[#allocation12 + $0x608] sm:$0xff]
        %v2526 = vld [vmem:[#allocation12 + $0x610] sm:$0xff]
        %v2527 = vld [vmem:[#allocation12 + $0x618] sm:$0xff]
        %v2528 = vld [vmem:[#allocation12 + $0x620] sm:$0xff]
        %v2529 = vld [vmem:[#allocation12 + $0x628] sm:$0xff]
        %v2530 = vld [vmem:[#allocation12 + $0x630] sm:$0xff]
        %v2531 = vld [vmem:[#allocation12 + $0x638] sm:$0xff]
        %v2532 = vld [vmem:[#allocation12 + $0x640] sm:$0xff]
        %v2533 = vld [vmem:[#allocation12 + $0x648] sm:$0xff]
        %v2534 = vld [vmem:[#allocation12 + $0x650] sm:$0xff]
        %v2535 = vld [vmem:[#allocation12 + $0x658] sm:$0xff]
        %v2536 = vld [vmem:[#allocation12 + $0x660] sm:$0xff]
        %v2537 = vld [vmem:[#allocation12 + $0x668] sm:$0xff]
        %v2538 = vld [vmem:[#allocation12 + $0x670] sm:$0xff]
        %v2539 = vld [vmem:[#allocation12 + $0x678] sm:$0xff]
        %v2540 = vld [vmem:[#allocation12 + $0x680] sm:$0xff]
        %v2541 = vld [vmem:[#allocation12 + $0x688] sm:$0xff]
        %v2542 = vld [vmem:[#allocation12 + $0x690] sm:$0xff]
        %v2543 = vld [vmem:[#allocation12 + $0x698] sm:$0xff]
        %v2544 = vld [vmem:[#allocation12 + $0x6a0] sm:$0xff]
        %v2545 = vld [vmem:[#allocation12 + $0x6a8] sm:$0xff]
        %v2546 = vld [vmem:[#allocation12 + $0x6b0] sm:$0xff]
        %v2547 = vld [vmem:[#allocation12 + $0x6b8] sm:$0xff]
        %v2548 = vld [vmem:[#allocation12 + $0x6c0] sm:$0xff]
        %v2549 = vld [vmem:[#allocation12 + $0x6c8] sm:$0xff]
        %v2550 = vld [vmem:[#allocation12 + $0x6d0] sm:$0xff]
        %v2551 = vld [vmem:[#allocation12 + $0x6d8] sm:$0xff]
        %v2552 = vld [vmem:[#allocation12 + $0x6e0] sm:$0xff]
        %v2553 = vld [vmem:[#allocation12 + $0x6e8] sm:$0xff]
        %v2554 = vld [vmem:[#allocation12 + $0x6f0] sm:$0xff]
        %v2555 = vld [vmem:[#allocation12 + $0x6f8] sm:$0xff]
        %v2556 = vld [vmem:[#allocation12 + $0x700] sm:$0xff]
        %v2557 = vld [vmem:[#allocation12 + $0x708] sm:$0xff]
        %v2558 = vld [vmem:[#allocation12 + $0x710] sm:$0xff]
        %v2559 = vld [vmem:[#allocation12 + $0x718] sm:$0xff]
        %v2560 = vld [vmem:[#allocation12 + $0x720] sm:$0xff]
        %v2561 = vld [vmem:[#allocation12 + $0x728] sm:$0xff]
        %v2562 = vld [vmem:[#allocation12 + $0x730] sm:$0xff]
        %v2563 = vld [vmem:[#allocation12 + $0x738] sm:$0xff]
        %v2564 = vld [vmem:[#allocation12 + $0x740] sm:$0xff]
        %v2565 = vld [vmem:[#allocation12 + $0x748] sm:$0xff]
        %v2566 = vld [vmem:[#allocation12 + $0x750] sm:$0xff]
        %v2567 = vld [vmem:[#allocation12 + $0x758] sm:$0xff]
        %v2568 = vld [vmem:[#allocation12 + $0x760] sm:$0xff]
        %v2569 = vld [vmem:[#allocation12 + $0x768] sm:$0xff]
        %v2570 = vld [vmem:[#allocation12 + $0x770] sm:$0xff]
        %v2571 = vld [vmem:[#allocation12 + $0x778] sm:$0xff]
        %v2572 = vld [vmem:[#allocation12 + $0x780] sm:$0xff]
        %v2573 = vld [vmem:[#allocation12 + $0x788] sm:$0xff]
        %v2574 = vld [vmem:[#allocation12 + $0x790] sm:$0xff]
        %v2575 = vld [vmem:[#allocation12 + $0x798] sm:$0xff]
        %v2576 = vld [vmem:[#allocation12 + $0x7a0] sm:$0xff]
        %v2577 = vld [vmem:[#allocation12 + $0x7a8] sm:$0xff]
        %v2578 = vld [vmem:[#allocation12 + $0x7b0] sm:$0xff]
        %v2579 = vld [vmem:[#allocation12 + $0x7b8] sm:$0xff]
        %v2580 = vld [vmem:[#allocation12 + $0x7c0] sm:$0xff]
        %v2581 = vld [vmem:[#allocation12 + $0x7c8] sm:$0xff]
        %v2582 = vld [vmem:[#allocation12 + $0x7d0] sm:$0xff]
        %v2583 = vld [vmem:[#allocation12 + $0x7d8] sm:$0xff]
        %v2584 = vld [vmem:[#allocation12 + $0x7e0] sm:$0xff]
        %v2585 = vld [vmem:[#allocation12 + $0x7e8] sm:$0xff]
        %v2586 = vld [vmem:[#allocation12 + $0x7f0] sm:$0xff]
        %v2587 = vld [vmem:[#allocation12 + $0x7f8] sm:$0xff]
        %v2588 = vpack.c.bf16 %v2324, %v2316
        %v2589 = vpack.c.bf16 %v2325, %v2317
        %v2590 = vpack.c.bf16 %v2326, %v2318
        %v2591 = vpack.c.bf16 %v2327, %v2319
        %v2592 = vpack.c.bf16 %v2328, %v2320
        %v2593 = vpack.c.bf16 %v2329, %v2321
        %v2594 = vpack.c.bf16 %v2330, %v2322
        %v2595 = vpack.c.bf16 %v2331, %v2323
        %s2596 = scalar_lea.vmem [#allocation15], 64
        %v2597 = vld [vmem:[%s2596] ss:$8 sm:$0xf]
        %v2599 = vlaneseq
        %v2600 = vshrl.u32 %v2599, 7
        %v2601 = vsub.s32 0, %v2600
        %v2602 = vrot.slane %v2597, %v2601
        %v2603 = vlaneseq
        %v2604 = vshrl.u32 %v2603, 7
        %v2605 = vsub.s32 1, %v2604
        %v2606 = vrot.slane %v2597, %v2605
        %v2607 = vlaneseq
        %v2608 = vshrl.u32 %v2607, 7
        %v2609 = vsub.s32 2, %v2608
        %v2610 = vrot.slane %v2597, %v2609
        %v2611 = vlaneseq
        %v2612 = vshrl.u32 %v2611, 7
        %v2613 = vsub.s32 3, %v2612
        %v2614 = vrot.slane %v2597, %v2613
        %v2875 = vunpack.c.l.b16 %v2332
        %v2876 = vunpack.c.h.b16 %v2332
        %v2877 = vunpack.c.l.b16 %v2333
        %v2878 = vunpack.c.h.b16 %v2333
        %v2879 = vunpack.c.l.b16 %v2334
        %v2880 = vunpack.c.h.b16 %v2334
        %v2881 = vunpack.c.l.b16 %v2335
        %v2882 = vunpack.c.h.b16 %v2335
        %v2883 = vunpack.c.l.b16 %v2336
        %v2884 = vunpack.c.h.b16 %v2336
        %v2885 = vunpack.c.l.b16 %v2337
        %v2886 = vunpack.c.h.b16 %v2337
        %v2887 = vunpack.c.l.b16 %v2338
        %v2888 = vunpack.c.h.b16 %v2338
        %v2889 = vunpack.c.l.b16 %v2339
        %v2890 = vunpack.c.h.b16 %v2339
        %v2891 = vunpack.c.l.b16 %v2340
        %v2892 = vunpack.c.h.b16 %v2340
        %v2893 = vunpack.c.l.b16 %v2341
        %v2894 = vunpack.c.h.b16 %v2341
        %v2895 = vunpack.c.l.b16 %v2342
        %v2896 = vunpack.c.h.b16 %v2342
        %v2897 = vunpack.c.l.b16 %v2343
        %v2898 = vunpack.c.h.b16 %v2343
        %v2899 = vunpack.c.l.b16 %v2344
        %v2900 = vunpack.c.h.b16 %v2344
        %v2901 = vunpack.c.l.b16 %v2345
        %v2902 = vunpack.c.h.b16 %v2345
        %v2903 = vunpack.c.l.b16 %v2346
        %v2904 = vunpack.c.h.b16 %v2346
        %v2905 = vunpack.c.l.b16 %v2347
        %v2906 = vunpack.c.h.b16 %v2347
        %v2907 = vunpack.c.l.b16 %v2348
        %v2908 = vunpack.c.h.b16 %v2348
        %v2909 = vunpack.c.l.b16 %v2349
        %v2910 = vunpack.c.h.b16 %v2349
        %v2911 = vunpack.c.l.b16 %v2350
        %v2912 = vunpack.c.h.b16 %v2350
        %v2913 = vunpack.c.l.b16 %v2351
        %v2914 = vunpack.c.h.b16 %v2351
        %v2915 = vunpack.c.l.b16 %v2352
        %v2916 = vunpack.c.h.b16 %v2352
        %v2917 = vunpack.c.l.b16 %v2353
        %v2918 = vunpack.c.h.b16 %v2353
        %v2919 = vunpack.c.l.b16 %v2354
        %v2920 = vunpack.c.h.b16 %v2354
        %v2921 = vunpack.c.l.b16 %v2355
        %v2922 = vunpack.c.h.b16 %v2355
        %v2923 = vunpack.c.l.b16 %v2356
        %v2924 = vunpack.c.h.b16 %v2356
        %v2925 = vunpack.c.l.b16 %v2357
        %v2926 = vunpack.c.h.b16 %v2357
        %v2927 = vunpack.c.l.b16 %v2358
        %v2928 = vunpack.c.h.b16 %v2358
        %v2929 = vunpack.c.l.b16 %v2359
        %v2930 = vunpack.c.h.b16 %v2359
        %v2931 = vunpack.c.l.b16 %v2360
        %v2932 = vunpack.c.h.b16 %v2360
        %v2933 = vunpack.c.l.b16 %v2361
        %v2934 = vunpack.c.h.b16 %v2361
        %v2935 = vunpack.c.l.b16 %v2362
        %v2936 = vunpack.c.h.b16 %v2362
        %v2937 = vunpack.c.l.b16 %v2363
        %v2938 = vunpack.c.h.b16 %v2363
        %v2939 = vunpack.c.l.b16 %v2364
        %v2940 = vunpack.c.h.b16 %v2364
        %v2941 = vunpack.c.l.b16 %v2365
        %v2942 = vunpack.c.h.b16 %v2365
        %v2943 = vunpack.c.l.b16 %v2366
        %v2944 = vunpack.c.h.b16 %v2366
        %v2945 = vunpack.c.l.b16 %v2367
        %v2946 = vunpack.c.h.b16 %v2367
        %v2947 = vunpack.c.l.b16 %v2368
        %v2948 = vunpack.c.h.b16 %v2368
        %v2949 = vunpack.c.l.b16 %v2369
        %v2950 = vunpack.c.h.b16 %v2369
        %v2951 = vunpack.c.l.b16 %v2370
        %v2952 = vunpack.c.h.b16 %v2370
        %v2953 = vunpack.c.l.b16 %v2371
        %v2954 = vunpack.c.h.b16 %v2371
        %v2955 = vunpack.c.l.b16 %v2372
        %v2956 = vunpack.c.h.b16 %v2372
        %v2957 = vunpack.c.l.b16 %v2373
        %v2958 = vunpack.c.h.b16 %v2373
        %v2959 = vunpack.c.l.b16 %v2374
        %v2960 = vunpack.c.h.b16 %v2374
        %v2961 = vunpack.c.l.b16 %v2375
        %v2962 = vunpack.c.h.b16 %v2375
        %v2963 = vunpack.c.l.b16 %v2376
        %v2964 = vunpack.c.h.b16 %v2376
        %v2965 = vunpack.c.l.b16 %v2377
        %v2966 = vunpack.c.h.b16 %v2377
        %v2967 = vunpack.c.l.b16 %v2378
        %v2968 = vunpack.c.h.b16 %v2378
        %v2969 = vunpack.c.l.b16 %v2379
        %v2970 = vunpack.c.h.b16 %v2379
        %v2971 = vunpack.c.l.b16 %v2380
        %v2972 = vunpack.c.h.b16 %v2380
        %v2973 = vunpack.c.l.b16 %v2381
        %v2974 = vunpack.c.h.b16 %v2381
        %v2975 = vunpack.c.l.b16 %v2382
        %v2976 = vunpack.c.h.b16 %v2382
        %v2977 = vunpack.c.l.b16 %v2383
        %v2978 = vunpack.c.h.b16 %v2383
        %v2979 = vunpack.c.l.b16 %v2384
        %v2980 = vunpack.c.h.b16 %v2384
        %v2981 = vunpack.c.l.b16 %v2385
        %v2982 = vunpack.c.h.b16 %v2385
        %v2983 = vunpack.c.l.b16 %v2386
        %v2984 = vunpack.c.h.b16 %v2386
        %v2985 = vunpack.c.l.b16 %v2387
        %v2986 = vunpack.c.h.b16 %v2387
        %v2987 = vunpack.c.l.b16 %v2388
        %v2988 = vunpack.c.h.b16 %v2388
        %v2989 = vunpack.c.l.b16 %v2389
        %v2990 = vunpack.c.h.b16 %v2389
        %v2991 = vunpack.c.l.b16 %v2390
        %v2992 = vunpack.c.h.b16 %v2390
        %v2993 = vunpack.c.l.b16 %v2391
        %v2994 = vunpack.c.h.b16 %v2391
        %v2995 = vunpack.c.l.b16 %v2392
        %v2996 = vunpack.c.h.b16 %v2392
        %v2997 = vunpack.c.l.b16 %v2393
        %v2998 = vunpack.c.h.b16 %v2393
        %v2999 = vunpack.c.l.b16 %v2394
        %v3000 = vunpack.c.h.b16 %v2394
        %v3001 = vunpack.c.l.b16 %v2395
        %v3002 = vunpack.c.h.b16 %v2395
        %v3003 = vunpack.c.l.b16 %v2396
        %v3004 = vunpack.c.h.b16 %v2396
        %v3005 = vunpack.c.l.b16 %v2397
        %v3006 = vunpack.c.h.b16 %v2397
        %v3007 = vunpack.c.l.b16 %v2398
        %v3008 = vunpack.c.h.b16 %v2398
        %v3009 = vunpack.c.l.b16 %v2399
        %v3010 = vunpack.c.h.b16 %v2399
        %v3011 = vunpack.c.l.b16 %v2400
        %v3012 = vunpack.c.h.b16 %v2400
        %v3013 = vunpack.c.l.b16 %v2401
        %v3014 = vunpack.c.h.b16 %v2401
        %v3015 = vunpack.c.l.b16 %v2402
        %v3016 = vunpack.c.h.b16 %v2402
        %v3017 = vunpack.c.l.b16 %v2403
        %v3018 = vunpack.c.h.b16 %v2403
        %v3019 = vunpack.c.l.b16 %v2404
        %v3020 = vunpack.c.h.b16 %v2404
        %v3021 = vunpack.c.l.b16 %v2405
        %v3022 = vunpack.c.h.b16 %v2405
        %v3023 = vunpack.c.l.b16 %v2406
        %v3024 = vunpack.c.h.b16 %v2406
        %v3025 = vunpack.c.l.b16 %v2407
        %v3026 = vunpack.c.h.b16 %v2407
        %v3027 = vunpack.c.l.b16 %v2408
        %v3028 = vunpack.c.h.b16 %v2408
        %v3029 = vunpack.c.l.b16 %v2409
        %v3030 = vunpack.c.h.b16 %v2409
        %v3031 = vunpack.c.l.b16 %v2410
        %v3032 = vunpack.c.h.b16 %v2410
        %v3033 = vunpack.c.l.b16 %v2411
        %v3034 = vunpack.c.h.b16 %v2411
        %v3035 = vunpack.c.l.b16 %v2412
        %v3036 = vunpack.c.h.b16 %v2412
        %v3037 = vunpack.c.l.b16 %v2413
        %v3038 = vunpack.c.h.b16 %v2413
        %v3039 = vunpack.c.l.b16 %v2414
        %v3040 = vunpack.c.h.b16 %v2414
        %v3041 = vunpack.c.l.b16 %v2415
        %v3042 = vunpack.c.h.b16 %v2415
        %v3043 = vunpack.c.l.b16 %v2416
        %v3044 = vunpack.c.h.b16 %v2416
        %v3045 = vunpack.c.l.b16 %v2417
        %v3046 = vunpack.c.h.b16 %v2417
        %v3047 = vunpack.c.l.b16 %v2418
        %v3048 = vunpack.c.h.b16 %v2418
        %v3049 = vunpack.c.l.b16 %v2419
        %v3050 = vunpack.c.h.b16 %v2419
        %v3051 = vunpack.c.l.b16 %v2420
        %v3052 = vunpack.c.h.b16 %v2420
        %v3053 = vunpack.c.l.b16 %v2421
        %v3054 = vunpack.c.h.b16 %v2421
        %v3055 = vunpack.c.l.b16 %v2422
        %v3056 = vunpack.c.h.b16 %v2422
        %v3057 = vunpack.c.l.b16 %v2423
        %v3058 = vunpack.c.h.b16 %v2423
        %v3059 = vunpack.c.l.b16 %v2424
        %v3060 = vunpack.c.h.b16 %v2424
        %v3061 = vunpack.c.l.b16 %v2425
        %v3062 = vunpack.c.h.b16 %v2425
        %v3063 = vunpack.c.l.b16 %v2426
        %v3064 = vunpack.c.h.b16 %v2426
        %v3065 = vunpack.c.l.b16 %v2427
        %v3066 = vunpack.c.h.b16 %v2427
        %v3067 = vunpack.c.l.b16 %v2428
        %v3068 = vunpack.c.h.b16 %v2428
        %v3069 = vunpack.c.l.b16 %v2429
        %v3070 = vunpack.c.h.b16 %v2429
        %v3071 = vunpack.c.l.b16 %v2430
        %v3072 = vunpack.c.h.b16 %v2430
        %v3073 = vunpack.c.l.b16 %v2431
        %v3074 = vunpack.c.h.b16 %v2431
        %v3075 = vunpack.c.l.b16 %v2432
        %v3076 = vunpack.c.h.b16 %v2432
        %v3077 = vunpack.c.l.b16 %v2433
        %v3078 = vunpack.c.h.b16 %v2433
        %v3079 = vunpack.c.l.b16 %v2434
        %v3080 = vunpack.c.h.b16 %v2434
        %v3081 = vunpack.c.l.b16 %v2435
        %v3082 = vunpack.c.h.b16 %v2435
        %v3083 = vunpack.c.l.b16 %v2436
        %v3084 = vunpack.c.h.b16 %v2436
        %v3085 = vunpack.c.l.b16 %v2437
        %v3086 = vunpack.c.h.b16 %v2437
        %v3087 = vunpack.c.l.b16 %v2438
        %v3088 = vunpack.c.h.b16 %v2438
        %v3089 = vunpack.c.l.b16 %v2439
        %v3090 = vunpack.c.h.b16 %v2439
        %v3091 = vunpack.c.l.b16 %v2440
        %v3092 = vunpack.c.h.b16 %v2440
        %v3093 = vunpack.c.l.b16 %v2441
        %v3094 = vunpack.c.h.b16 %v2441
        %v3095 = vunpack.c.l.b16 %v2442
        %v3096 = vunpack.c.h.b16 %v2442
        %v3097 = vunpack.c.l.b16 %v2443
        %v3098 = vunpack.c.h.b16 %v2443
        %v3099 = vunpack.c.l.b16 %v2444
        %v3100 = vunpack.c.h.b16 %v2444
        %v3101 = vunpack.c.l.b16 %v2445
        %v3102 = vunpack.c.h.b16 %v2445
        %v3103 = vunpack.c.l.b16 %v2446
        %v3104 = vunpack.c.h.b16 %v2446
        %v3105 = vunpack.c.l.b16 %v2447
        %v3106 = vunpack.c.h.b16 %v2447
        %v3107 = vunpack.c.l.b16 %v2448
        %v3108 = vunpack.c.h.b16 %v2448
        %v3109 = vunpack.c.l.b16 %v2449
        %v3110 = vunpack.c.h.b16 %v2449
        %v3111 = vunpack.c.l.b16 %v2450
        %v3112 = vunpack.c.h.b16 %v2450
        %v3113 = vunpack.c.l.b16 %v2451
        %v3114 = vunpack.c.h.b16 %v2451
        %v3115 = vunpack.c.l.b16 %v2452
        %v3116 = vunpack.c.h.b16 %v2452
        %v3117 = vunpack.c.l.b16 %v2453
        %v3118 = vunpack.c.h.b16 %v2453
        %v3119 = vunpack.c.l.b16 %v2454
        %v3120 = vunpack.c.h.b16 %v2454
        %v3121 = vunpack.c.l.b16 %v2455
        %v3122 = vunpack.c.h.b16 %v2455
        %v3123 = vunpack.c.l.b16 %v2456
        %v3124 = vunpack.c.h.b16 %v2456
        %v3125 = vunpack.c.l.b16 %v2457
        %v3126 = vunpack.c.h.b16 %v2457
        %v3127 = vunpack.c.l.b16 %v2458
        %v3128 = vunpack.c.h.b16 %v2458
        %v3129 = vunpack.c.l.b16 %v2459
        %v3130 = vunpack.c.h.b16 %v2459
        %v3131 = vunpack.c.l.b16 %v2460
        %v3132 = vunpack.c.h.b16 %v2460
        %v3133 = vunpack.c.l.b16 %v2461
        %v3134 = vunpack.c.h.b16 %v2461
        %v3135 = vunpack.c.l.b16 %v2462
        %v3136 = vunpack.c.h.b16 %v2462
        %v3137 = vunpack.c.l.b16 %v2463
        %v3138 = vunpack.c.h.b16 %v2463
        %v3139 = vunpack.c.l.b16 %v2464
        %v3140 = vunpack.c.h.b16 %v2464
        %v3141 = vunpack.c.l.b16 %v2465
        %v3142 = vunpack.c.h.b16 %v2465
        %v3143 = vunpack.c.l.b16 %v2466
        %v3144 = vunpack.c.h.b16 %v2466
        %v3145 = vunpack.c.l.b16 %v2467
        %v3146 = vunpack.c.h.b16 %v2467
        %v3147 = vunpack.c.l.b16 %v2468
        %v3148 = vunpack.c.h.b16 %v2468
        %v3149 = vunpack.c.l.b16 %v2469
        %v3150 = vunpack.c.h.b16 %v2469
        %v3151 = vunpack.c.l.b16 %v2470
        %v3152 = vunpack.c.h.b16 %v2470
        %v3153 = vunpack.c.l.b16 %v2471
        %v3154 = vunpack.c.h.b16 %v2471
        %v3155 = vunpack.c.l.b16 %v2472
        %v3156 = vunpack.c.h.b16 %v2472
        %v3157 = vunpack.c.l.b16 %v2473
        %v3158 = vunpack.c.h.b16 %v2473
        %v3159 = vunpack.c.l.b16 %v2474
        %v3160 = vunpack.c.h.b16 %v2474
        %v3161 = vunpack.c.l.b16 %v2475
        %v3162 = vunpack.c.h.b16 %v2475
        %v3163 = vunpack.c.l.b16 %v2476
        %v3164 = vunpack.c.h.b16 %v2476
        %v3165 = vunpack.c.l.b16 %v2477
        %v3166 = vunpack.c.h.b16 %v2477
        %v3167 = vunpack.c.l.b16 %v2478
        %v3168 = vunpack.c.h.b16 %v2478
        %v3169 = vunpack.c.l.b16 %v2479
        %v3170 = vunpack.c.h.b16 %v2479
        %v3171 = vunpack.c.l.b16 %v2480
        %v3172 = vunpack.c.h.b16 %v2480
        %v3173 = vunpack.c.l.b16 %v2481
        %v3174 = vunpack.c.h.b16 %v2481
        %v3175 = vunpack.c.l.b16 %v2482
        %v3176 = vunpack.c.h.b16 %v2482
        %v3177 = vunpack.c.l.b16 %v2483
        %v3178 = vunpack.c.h.b16 %v2483
        %v3179 = vunpack.c.l.b16 %v2484
        %v3180 = vunpack.c.h.b16 %v2484
        %v3181 = vunpack.c.l.b16 %v2485
        %v3182 = vunpack.c.h.b16 %v2485
        %v3183 = vunpack.c.l.b16 %v2486
        %v3184 = vunpack.c.h.b16 %v2486
        %v3185 = vunpack.c.l.b16 %v2487
        %v3186 = vunpack.c.h.b16 %v2487
        %v3187 = vunpack.c.l.b16 %v2488
        %v3188 = vunpack.c.h.b16 %v2488
        %v3189 = vunpack.c.l.b16 %v2489
        %v3190 = vunpack.c.h.b16 %v2489
        %v3191 = vunpack.c.l.b16 %v2490
        %v3192 = vunpack.c.h.b16 %v2490
        %v3193 = vunpack.c.l.b16 %v2491
        %v3194 = vunpack.c.h.b16 %v2491
        %v3195 = vunpack.c.l.b16 %v2492
        %v3196 = vunpack.c.h.b16 %v2492
        %v3197 = vunpack.c.l.b16 %v2493
        %v3198 = vunpack.c.h.b16 %v2493
        %v3199 = vunpack.c.l.b16 %v2494
        %v3200 = vunpack.c.h.b16 %v2494
        %v3201 = vunpack.c.l.b16 %v2495
        %v3202 = vunpack.c.h.b16 %v2495
        %v3203 = vunpack.c.l.b16 %v2496
        %v3204 = vunpack.c.h.b16 %v2496
        %v3205 = vunpack.c.l.b16 %v2497
        %v3206 = vunpack.c.h.b16 %v2497
        %v3207 = vunpack.c.l.b16 %v2498
        %v3208 = vunpack.c.h.b16 %v2498
        %v3209 = vunpack.c.l.b16 %v2499
        %v3210 = vunpack.c.h.b16 %v2499
        %v3211 = vunpack.c.l.b16 %v2500
        %v3212 = vunpack.c.h.b16 %v2500
        %v3213 = vunpack.c.l.b16 %v2501
        %v3214 = vunpack.c.h.b16 %v2501
        %v3215 = vunpack.c.l.b16 %v2502
        %v3216 = vunpack.c.h.b16 %v2502
        %v3217 = vunpack.c.l.b16 %v2503
        %v3218 = vunpack.c.h.b16 %v2503
        %v3219 = vunpack.c.l.b16 %v2504
        %v3220 = vunpack.c.h.b16 %v2504
        %v3221 = vunpack.c.l.b16 %v2505
        %v3222 = vunpack.c.h.b16 %v2505
        %v3223 = vunpack.c.l.b16 %v2506
        %v3224 = vunpack.c.h.b16 %v2506
        %v3225 = vunpack.c.l.b16 %v2507
        %v3226 = vunpack.c.h.b16 %v2507
        %v3227 = vunpack.c.l.b16 %v2508
        %v3228 = vunpack.c.h.b16 %v2508
        %v3229 = vunpack.c.l.b16 %v2509
        %v3230 = vunpack.c.h.b16 %v2509
        %v3231 = vunpack.c.l.b16 %v2510
        %v3232 = vunpack.c.h.b16 %v2510
        %v3233 = vunpack.c.l.b16 %v2511
        %v3234 = vunpack.c.h.b16 %v2511
        %v3235 = vunpack.c.l.b16 %v2512
        %v3236 = vunpack.c.h.b16 %v2512
        %v3237 = vunpack.c.l.b16 %v2513
        %v3238 = vunpack.c.h.b16 %v2513
        %v3239 = vunpack.c.l.b16 %v2514
        %v3240 = vunpack.c.h.b16 %v2514
        %v3241 = vunpack.c.l.b16 %v2515
        %v3242 = vunpack.c.h.b16 %v2515
        %v3243 = vunpack.c.l.b16 %v2516
        %v3244 = vunpack.c.h.b16 %v2516
        %v3245 = vunpack.c.l.b16 %v2517
        %v3246 = vunpack.c.h.b16 %v2517
        %v3247 = vunpack.c.l.b16 %v2518
        %v3248 = vunpack.c.h.b16 %v2518
        %v3249 = vunpack.c.l.b16 %v2519
        %v3250 = vunpack.c.h.b16 %v2519
        %v3251 = vunpack.c.l.b16 %v2520
        %v3252 = vunpack.c.h.b16 %v2520
        %v3253 = vunpack.c.l.b16 %v2521
        %v3254 = vunpack.c.h.b16 %v2521
        %v3255 = vunpack.c.l.b16 %v2522
        %v3256 = vunpack.c.h.b16 %v2522
        %v3257 = vunpack.c.l.b16 %v2523
        %v3258 = vunpack.c.h.b16 %v2523
        %v3259 = vunpack.c.l.b16 %v2524
        %v3260 = vunpack.c.h.b16 %v2524
        %v3261 = vunpack.c.l.b16 %v2525
        %v3262 = vunpack.c.h.b16 %v2525
        %v3263 = vunpack.c.l.b16 %v2526
        %v3264 = vunpack.c.h.b16 %v2526
        %v3265 = vunpack.c.l.b16 %v2527
        %v3266 = vunpack.c.h.b16 %v2527
        %v3267 = vunpack.c.l.b16 %v2528
        %v3268 = vunpack.c.h.b16 %v2528
        %v3269 = vunpack.c.l.b16 %v2529
        %v3270 = vunpack.c.h.b16 %v2529
        %v3271 = vunpack.c.l.b16 %v2530
        %v3272 = vunpack.c.h.b16 %v2530
        %v3273 = vunpack.c.l.b16 %v2531
        %v3274 = vunpack.c.h.b16 %v2531
        %v3275 = vunpack.c.l.b16 %v2532
        %v3276 = vunpack.c.h.b16 %v2532
        %v3277 = vunpack.c.l.b16 %v2533
        %v3278 = vunpack.c.h.b16 %v2533
        %v3279 = vunpack.c.l.b16 %v2534
        %v3280 = vunpack.c.h.b16 %v2534
        %v3281 = vunpack.c.l.b16 %v2535
        %v3282 = vunpack.c.h.b16 %v2535
        %v3283 = vunpack.c.l.b16 %v2536
        %v3284 = vunpack.c.h.b16 %v2536
        %v3285 = vunpack.c.l.b16 %v2537
        %v3286 = vunpack.c.h.b16 %v2537
        %v3287 = vunpack.c.l.b16 %v2538
        %v3288 = vunpack.c.h.b16 %v2538
        %v3289 = vunpack.c.l.b16 %v2539
        %v3290 = vunpack.c.h.b16 %v2539
        %v3291 = vunpack.c.l.b16 %v2540
        %v3292 = vunpack.c.h.b16 %v2540
        %v3293 = vunpack.c.l.b16 %v2541
        %v3294 = vunpack.c.h.b16 %v2541
        %v3295 = vunpack.c.l.b16 %v2542
        %v3296 = vunpack.c.h.b16 %v2542
        %v3297 = vunpack.c.l.b16 %v2543
        %v3298 = vunpack.c.h.b16 %v2543
        %v3299 = vunpack.c.l.b16 %v2544
        %v3300 = vunpack.c.h.b16 %v2544
        %v3301 = vunpack.c.l.b16 %v2545
        %v3302 = vunpack.c.h.b16 %v2545
        %v3303 = vunpack.c.l.b16 %v2546
        %v3304 = vunpack.c.h.b16 %v2546
        %v3305 = vunpack.c.l.b16 %v2547
        %v3306 = vunpack.c.h.b16 %v2547
        %v3307 = vunpack.c.l.b16 %v2548
        %v3308 = vunpack.c.h.b16 %v2548
        %v3309 = vunpack.c.l.b16 %v2549
        %v3310 = vunpack.c.h.b16 %v2549
        %v3311 = vunpack.c.l.b16 %v2550
        %v3312 = vunpack.c.h.b16 %v2550
        %v3313 = vunpack.c.l.b16 %v2551
        %v3314 = vunpack.c.h.b16 %v2551
        %v3315 = vunpack.c.l.b16 %v2552
        %v3316 = vunpack.c.h.b16 %v2552
        %v3317 = vunpack.c.l.b16 %v2553
        %v3318 = vunpack.c.h.b16 %v2553
        %v3319 = vunpack.c.l.b16 %v2554
        %v3320 = vunpack.c.h.b16 %v2554
        %v3321 = vunpack.c.l.b16 %v2555
        %v3322 = vunpack.c.h.b16 %v2555
        %v3323 = vunpack.c.l.b16 %v2556
        %v3324 = vunpack.c.h.b16 %v2556
        %v3325 = vunpack.c.l.b16 %v2557
        %v3326 = vunpack.c.h.b16 %v2557
        %v3327 = vunpack.c.l.b16 %v2558
        %v3328 = vunpack.c.h.b16 %v2558
        %v3329 = vunpack.c.l.b16 %v2559
        %v3330 = vunpack.c.h.b16 %v2559
        %v3331 = vunpack.c.l.b16 %v2560
        %v3332 = vunpack.c.h.b16 %v2560
        %v3333 = vunpack.c.l.b16 %v2561
        %v3334 = vunpack.c.h.b16 %v2561
        %v3335 = vunpack.c.l.b16 %v2562
        %v3336 = vunpack.c.h.b16 %v2562
        %v3337 = vunpack.c.l.b16 %v2563
        %v3338 = vunpack.c.h.b16 %v2563
        %v3339 = vunpack.c.l.b16 %v2564
        %v3340 = vunpack.c.h.b16 %v2564
        %v3341 = vunpack.c.l.b16 %v2565
        %v3342 = vunpack.c.h.b16 %v2565
        %v3343 = vunpack.c.l.b16 %v2566
        %v3344 = vunpack.c.h.b16 %v2566
        %v3345 = vunpack.c.l.b16 %v2567
        %v3346 = vunpack.c.h.b16 %v2567
        %v3347 = vunpack.c.l.b16 %v2568
        %v3348 = vunpack.c.h.b16 %v2568
        %v3349 = vunpack.c.l.b16 %v2569
        %v3350 = vunpack.c.h.b16 %v2569
        %v3351 = vunpack.c.l.b16 %v2570
        %v3352 = vunpack.c.h.b16 %v2570
        %v3353 = vunpack.c.l.b16 %v2571
        %v3354 = vunpack.c.h.b16 %v2571
        %v3355 = vunpack.c.l.b16 %v2572
        %v3356 = vunpack.c.h.b16 %v2572
        %v3357 = vunpack.c.l.b16 %v2573
        %v3358 = vunpack.c.h.b16 %v2573
        %v3359 = vunpack.c.l.b16 %v2574
        %v3360 = vunpack.c.h.b16 %v2574
        %v3361 = vunpack.c.l.b16 %v2575
        %v3362 = vunpack.c.h.b16 %v2575
        %v3363 = vunpack.c.l.b16 %v2576
        %v3364 = vunpack.c.h.b16 %v2576
        %v3365 = vunpack.c.l.b16 %v2577
        %v3366 = vunpack.c.h.b16 %v2577
        %v3367 = vunpack.c.l.b16 %v2578
        %v3368 = vunpack.c.h.b16 %v2578
        %v3369 = vunpack.c.l.b16 %v2579
        %v3370 = vunpack.c.h.b16 %v2579
        %v3371 = vunpack.c.l.b16 %v2580
        %v3372 = vunpack.c.h.b16 %v2580
        %v3373 = vunpack.c.l.b16 %v2581
        %v3374 = vunpack.c.h.b16 %v2581
        %v3375 = vunpack.c.l.b16 %v2582
        %v3376 = vunpack.c.h.b16 %v2582
        %v3377 = vunpack.c.l.b16 %v2583
        %v3378 = vunpack.c.h.b16 %v2583
        %v3379 = vunpack.c.l.b16 %v2584
        %v3380 = vunpack.c.h.b16 %v2584
        %v3381 = vunpack.c.l.b16 %v2585
        %v3382 = vunpack.c.h.b16 %v2585
        %v3383 = vunpack.c.l.b16 %v2586
        %v3384 = vunpack.c.h.b16 %v2586
        %v3385 = vunpack.c.l.b16 %v2587
        %v3386 = vunpack.c.h.b16 %v2587
        %v3387 = vpack.c.b16 %v2879, %v2875
        %v3388 = vpack.c.b16 %v2880, %v2876
        %v3389 = vpack.c.b16 %v2881, %v2877
        %v3390 = vpack.c.b16 %v2882, %v2878
        %v3391 = vpack.c.b16 %v2887, %v2883
        %v3392 = vpack.c.b16 %v2888, %v2884
        %v3393 = vpack.c.b16 %v2889, %v2885
        %v3394 = vpack.c.b16 %v2890, %v2886
        %v3395 = vpack.c.b16 %v2895, %v2891
        %v3396 = vpack.c.b16 %v2896, %v2892
        %v3397 = vpack.c.b16 %v2897, %v2893
        %v3398 = vpack.c.b16 %v2898, %v2894
        %v3399 = vpack.c.b16 %v2903, %v2899
        %v3400 = vpack.c.b16 %v2904, %v2900
        %v3401 = vpack.c.b16 %v2905, %v2901
        %v3402 = vpack.c.b16 %v2906, %v2902
        %v3403 = vpack.c.b16 %v2911, %v2907
        %v3404 = vpack.c.b16 %v2912, %v2908
        %v3405 = vpack.c.b16 %v2913, %v2909
        %v3406 = vpack.c.b16 %v2914, %v2910
        %v3407 = vpack.c.b16 %v2919, %v2915
        %v3408 = vpack.c.b16 %v2920, %v2916
        %v3409 = vpack.c.b16 %v2921, %v2917
        %v3410 = vpack.c.b16 %v2922, %v2918
        %v3411 = vpack.c.b16 %v2927, %v2923
        %v3412 = vpack.c.b16 %v2928, %v2924
        %v3413 = vpack.c.b16 %v2929, %v2925
        %v3414 = vpack.c.b16 %v2930, %v2926
        %v3415 = vpack.c.b16 %v2935, %v2931
        %v3416 = vpack.c.b16 %v2936, %v2932
        %v3417 = vpack.c.b16 %v2937, %v2933
        %v3418 = vpack.c.b16 %v2938, %v2934
        %v3419 = vpack.c.b16 %v2943, %v2939
        %v3420 = vpack.c.b16 %v2944, %v2940
        %v3421 = vpack.c.b16 %v2945, %v2941
        %v3422 = vpack.c.b16 %v2946, %v2942
        %v3423 = vpack.c.b16 %v2951, %v2947
        %v3424 = vpack.c.b16 %v2952, %v2948
        %v3425 = vpack.c.b16 %v2953, %v2949
        %v3426 = vpack.c.b16 %v2954, %v2950
        %v3427 = vpack.c.b16 %v2959, %v2955
        %v3428 = vpack.c.b16 %v2960, %v2956
        %v3429 = vpack.c.b16 %v2961, %v2957
        %v3430 = vpack.c.b16 %v2962, %v2958
        %v3431 = vpack.c.b16 %v2967, %v2963
        %v3432 = vpack.c.b16 %v2968, %v2964
        %v3433 = vpack.c.b16 %v2969, %v2965
        %v3434 = vpack.c.b16 %v2970, %v2966
        %v3435 = vpack.c.b16 %v2975, %v2971
        %v3436 = vpack.c.b16 %v2976, %v2972
        %v3437 = vpack.c.b16 %v2977, %v2973
        %v3438 = vpack.c.b16 %v2978, %v2974
        %v3439 = vpack.c.b16 %v2983, %v2979
        %v3440 = vpack.c.b16 %v2984, %v2980
        %v3441 = vpack.c.b16 %v2985, %v2981
        %v3442 = vpack.c.b16 %v2986, %v2982
        %v3443 = vpack.c.b16 %v2991, %v2987
        %v3444 = vpack.c.b16 %v2992, %v2988
        %v3445 = vpack.c.b16 %v2993, %v2989
        %v3446 = vpack.c.b16 %v2994, %v2990
        %v3447 = vpack.c.b16 %v2999, %v2995
        %v3448 = vpack.c.b16 %v3000, %v2996
        %v3449 = vpack.c.b16 %v3001, %v2997
        %v3450 = vpack.c.b16 %v3002, %v2998
        %v3451 = vpack.c.b16 %v3007, %v3003
        %v3452 = vpack.c.b16 %v3008, %v3004
        %v3453 = vpack.c.b16 %v3009, %v3005
        %v3454 = vpack.c.b16 %v3010, %v3006
        %v3455 = vpack.c.b16 %v3015, %v3011
        %v3456 = vpack.c.b16 %v3016, %v3012
        %v3457 = vpack.c.b16 %v3017, %v3013
        %v3458 = vpack.c.b16 %v3018, %v3014
        %v3459 = vpack.c.b16 %v3023, %v3019
        %v3460 = vpack.c.b16 %v3024, %v3020
        %v3461 = vpack.c.b16 %v3025, %v3021
        %v3462 = vpack.c.b16 %v3026, %v3022
        %v3463 = vpack.c.b16 %v3031, %v3027
        %v3464 = vpack.c.b16 %v3032, %v3028
        %v3465 = vpack.c.b16 %v3033, %v3029
        %v3466 = vpack.c.b16 %v3034, %v3030
        %v3467 = vpack.c.b16 %v3039, %v3035
        %v3468 = vpack.c.b16 %v3040, %v3036
        %v3469 = vpack.c.b16 %v3041, %v3037
        %v3470 = vpack.c.b16 %v3042, %v3038
        %v3471 = vpack.c.b16 %v3047, %v3043
        %v3472 = vpack.c.b16 %v3048, %v3044
        %v3473 = vpack.c.b16 %v3049, %v3045
        %v3474 = vpack.c.b16 %v3050, %v3046
        %v3475 = vpack.c.b16 %v3055, %v3051
        %v3476 = vpack.c.b16 %v3056, %v3052
        %v3477 = vpack.c.b16 %v3057, %v3053
        %v3478 = vpack.c.b16 %v3058, %v3054
        %v3479 = vpack.c.b16 %v3063, %v3059
        %v3480 = vpack.c.b16 %v3064, %v3060
        %v3481 = vpack.c.b16 %v3065, %v3061
        %v3482 = vpack.c.b16 %v3066, %v3062
        %v3483 = vpack.c.b16 %v3071, %v3067
        %v3484 = vpack.c.b16 %v3072, %v3068
        %v3485 = vpack.c.b16 %v3073, %v3069
        %v3486 = vpack.c.b16 %v3074, %v3070
        %v3487 = vpack.c.b16 %v3079, %v3075
        %v3488 = vpack.c.b16 %v3080, %v3076
        %v3489 = vpack.c.b16 %v3081, %v3077
        %v3490 = vpack.c.b16 %v3082, %v3078
        %v3491 = vpack.c.b16 %v3087, %v3083
        %v3492 = vpack.c.b16 %v3088, %v3084
        %v3493 = vpack.c.b16 %v3089, %v3085
        %v3494 = vpack.c.b16 %v3090, %v3086
        %v3495 = vpack.c.b16 %v3095, %v3091
        %v3496 = vpack.c.b16 %v3096, %v3092
        %v3497 = vpack.c.b16 %v3097, %v3093
        %v3498 = vpack.c.b16 %v3098, %v3094
        %v3499 = vpack.c.b16 %v3103, %v3099
        %v3500 = vpack.c.b16 %v3104, %v3100
        %v3501 = vpack.c.b16 %v3105, %v3101
        %v3502 = vpack.c.b16 %v3106, %v3102
        %v3503 = vpack.c.b16 %v3111, %v3107
        %v3504 = vpack.c.b16 %v3112, %v3108
        %v3505 = vpack.c.b16 %v3113, %v3109
        %v3506 = vpack.c.b16 %v3114, %v3110
        %v3507 = vpack.c.b16 %v3119, %v3115
        %v3508 = vpack.c.b16 %v3120, %v3116
        %v3509 = vpack.c.b16 %v3121, %v3117
        %v3510 = vpack.c.b16 %v3122, %v3118
        %v3511 = vpack.c.b16 %v3127, %v3123
        %v3512 = vpack.c.b16 %v3128, %v3124
        %v3513 = vpack.c.b16 %v3129, %v3125
        %v3514 = vpack.c.b16 %v3130, %v3126
        %v3515 = vpack.c.b16 %v3135, %v3131
        %v3516 = vpack.c.b16 %v3136, %v3132
        %v3517 = vpack.c.b16 %v3137, %v3133
        %v3518 = vpack.c.b16 %v3138, %v3134
        %v3519 = vpack.c.b16 %v3143, %v3139
        %v3520 = vpack.c.b16 %v3144, %v3140
        %v3521 = vpack.c.b16 %v3145, %v3141
        %v3522 = vpack.c.b16 %v3146, %v3142
        %v3523 = vpack.c.b16 %v3151, %v3147
        %v3524 = vpack.c.b16 %v3152, %v3148
        %v3525 = vpack.c.b16 %v3153, %v3149
        %v3526 = vpack.c.b16 %v3154, %v3150
        %v3527 = vpack.c.b16 %v3159, %v3155
        %v3528 = vpack.c.b16 %v3160, %v3156
        %v3529 = vpack.c.b16 %v3161, %v3157
        %v3530 = vpack.c.b16 %v3162, %v3158
        %v3531 = vpack.c.b16 %v3167, %v3163
        %v3532 = vpack.c.b16 %v3168, %v3164
        %v3533 = vpack.c.b16 %v3169, %v3165
        %v3534 = vpack.c.b16 %v3170, %v3166
        %v3535 = vpack.c.b16 %v3175, %v3171
        %v3536 = vpack.c.b16 %v3176, %v3172
        %v3537 = vpack.c.b16 %v3177, %v3173
        %v3538 = vpack.c.b16 %v3178, %v3174
        %v3539 = vpack.c.b16 %v3183, %v3179
        %v3540 = vpack.c.b16 %v3184, %v3180
        %v3541 = vpack.c.b16 %v3185, %v3181
        %v3542 = vpack.c.b16 %v3186, %v3182
        %v3543 = vpack.c.b16 %v3191, %v3187
        %v3544 = vpack.c.b16 %v3192, %v3188
        %v3545 = vpack.c.b16 %v3193, %v3189
        %v3546 = vpack.c.b16 %v3194, %v3190
        %v3547 = vpack.c.b16 %v3199, %v3195
        %v3548 = vpack.c.b16 %v3200, %v3196
        %v3549 = vpack.c.b16 %v3201, %v3197
        %v3550 = vpack.c.b16 %v3202, %v3198
        %v3551 = vpack.c.b16 %v3207, %v3203
        %v3552 = vpack.c.b16 %v3208, %v3204
        %v3553 = vpack.c.b16 %v3209, %v3205
        %v3554 = vpack.c.b16 %v3210, %v3206
        %v3555 = vpack.c.b16 %v3215, %v3211
        %v3556 = vpack.c.b16 %v3216, %v3212
        %v3557 = vpack.c.b16 %v3217, %v3213
        %v3558 = vpack.c.b16 %v3218, %v3214
        %v3559 = vpack.c.b16 %v3223, %v3219
        %v3560 = vpack.c.b16 %v3224, %v3220
        %v3561 = vpack.c.b16 %v3225, %v3221
        %v3562 = vpack.c.b16 %v3226, %v3222
        %v3563 = vpack.c.b16 %v3231, %v3227
        %v3564 = vpack.c.b16 %v3232, %v3228
        %v3565 = vpack.c.b16 %v3233, %v3229
        %v3566 = vpack.c.b16 %v3234, %v3230
        %v3567 = vpack.c.b16 %v3239, %v3235
        %v3568 = vpack.c.b16 %v3240, %v3236
        %v3569 = vpack.c.b16 %v3241, %v3237
        %v3570 = vpack.c.b16 %v3242, %v3238
        %v3571 = vpack.c.b16 %v3247, %v3243
        %v3572 = vpack.c.b16 %v3248, %v3244
        %v3573 = vpack.c.b16 %v3249, %v3245
        %v3574 = vpack.c.b16 %v3250, %v3246
        %v3575 = vpack.c.b16 %v3255, %v3251
        %v3576 = vpack.c.b16 %v3256, %v3252
        %v3577 = vpack.c.b16 %v3257, %v3253
        %v3578 = vpack.c.b16 %v3258, %v3254
        %v3579 = vpack.c.b16 %v3263, %v3259
        %v3580 = vpack.c.b16 %v3264, %v3260
        %v3581 = vpack.c.b16 %v3265, %v3261
        %v3582 = vpack.c.b16 %v3266, %v3262
        %v3583 = vpack.c.b16 %v3271, %v3267
        %v3584 = vpack.c.b16 %v3272, %v3268
        %v3585 = vpack.c.b16 %v3273, %v3269
        %v3586 = vpack.c.b16 %v3274, %v3270
        %v3587 = vpack.c.b16 %v3279, %v3275
        %v3588 = vpack.c.b16 %v3280, %v3276
        %v3589 = vpack.c.b16 %v3281, %v3277
        %v3590 = vpack.c.b16 %v3282, %v3278
        %v3591 = vpack.c.b16 %v3287, %v3283
        %v3592 = vpack.c.b16 %v3288, %v3284
        %v3593 = vpack.c.b16 %v3289, %v3285
        %v3594 = vpack.c.b16 %v3290, %v3286
        %v3595 = vpack.c.b16 %v3295, %v3291
        %v3596 = vpack.c.b16 %v3296, %v3292
        %v3597 = vpack.c.b16 %v3297, %v3293
        %v3598 = vpack.c.b16 %v3298, %v3294
        %v3599 = vpack.c.b16 %v3303, %v3299
        %v3600 = vpack.c.b16 %v3304, %v3300
        %v3601 = vpack.c.b16 %v3305, %v3301
        %v3602 = vpack.c.b16 %v3306, %v3302
        %v3603 = vpack.c.b16 %v3311, %v3307
        %v3604 = vpack.c.b16 %v3312, %v3308
        %v3605 = vpack.c.b16 %v3313, %v3309
        %v3606 = vpack.c.b16 %v3314, %v3310
        %v3607 = vpack.c.b16 %v3319, %v3315
        %v3608 = vpack.c.b16 %v3320, %v3316
        %v3609 = vpack.c.b16 %v3321, %v3317
        %v3610 = vpack.c.b16 %v3322, %v3318
        %v3611 = vpack.c.b16 %v3327, %v3323
        %v3612 = vpack.c.b16 %v3328, %v3324
        %v3613 = vpack.c.b16 %v3329, %v3325
        %v3614 = vpack.c.b16 %v3330, %v3326
        %v3615 = vpack.c.b16 %v3335, %v3331
        %v3616 = vpack.c.b16 %v3336, %v3332
        %v3617 = vpack.c.b16 %v3337, %v3333
        %v3618 = vpack.c.b16 %v3338, %v3334
        %v3619 = vpack.c.b16 %v3343, %v3339
        %v3620 = vpack.c.b16 %v3344, %v3340
        %v3621 = vpack.c.b16 %v3345, %v3341
        %v3622 = vpack.c.b16 %v3346, %v3342
        %v3623 = vpack.c.b16 %v3351, %v3347
        %v3624 = vpack.c.b16 %v3352, %v3348
        %v3625 = vpack.c.b16 %v3353, %v3349
        %v3626 = vpack.c.b16 %v3354, %v3350
        %v3627 = vpack.c.b16 %v3359, %v3355
        %v3628 = vpack.c.b16 %v3360, %v3356
        %v3629 = vpack.c.b16 %v3361, %v3357
        %v3630 = vpack.c.b16 %v3362, %v3358
        %v3631 = vpack.c.b16 %v3367, %v3363
        %v3632 = vpack.c.b16 %v3368, %v3364
        %v3633 = vpack.c.b16 %v3369, %v3365
        %v3634 = vpack.c.b16 %v3370, %v3366
        %v3635 = vpack.c.b16 %v3375, %v3371
        %v3636 = vpack.c.b16 %v3376, %v3372
        %v3637 = vpack.c.b16 %v3377, %v3373
        %v3638 = vpack.c.b16 %v3378, %v3374
        %v3639 = vpack.c.b16 %v3383, %v3379
        %v3640 = vpack.c.b16 %v3384, %v3380
        %v3641 = vpack.c.b16 %v3385, %v3381
        %v3642 = vpack.c.b16 %v3386, %v3382
        %3899 = vmatprep.subr.bf16.mxu0 %v3388
        %3900 = vmatpush1.bf16.msra.mxu0 %v3387
        %3901 = vmatprep.subr.bf16.mxu0 %v3392
        %3902 = vmatpush1.bf16.msra.mxu0 %v3391
        %3903 = vmatprep.subr.bf16.mxu0 %v3396
        %3904 = vmatpush1.bf16.msra.mxu0 %v3395
        %3905 = vmatprep.subr.bf16.mxu0 %v3400
        %3906 = vmatpush1.bf16.msra.mxu0 %v3399
        %3907 = vmatprep.subr.bf16.mxu0 %v3404
        %3908 = vmatpush1.bf16.msra.mxu0 %v3403
        %3909 = vmatprep.subr.bf16.mxu0 %v3408
        %3910 = vmatpush1.bf16.msra.mxu0 %v3407
        %3911 = vmatprep.subr.bf16.mxu0 %v3412
        %3912 = vmatpush1.bf16.msra.mxu0 %v3411
        %3913 = vmatprep.subr.bf16.mxu0 %v3416
        %3914 = vmatpush1.bf16.msra.mxu0 %v3415
        %3915 = vmatprep.subr.bf16.mxu0 %v3420
        %3916 = vmatpush1.bf16.msra.mxu0 %v3419
        %3917 = vmatprep.subr.bf16.mxu0 %v3424
        %3918 = vmatpush1.bf16.msra.mxu0 %v3423
        %3919 = vmatprep.subr.bf16.mxu0 %v3428
        %3920 = vmatpush1.bf16.msra.mxu0 %v3427
        %3921 = vmatprep.subr.bf16.mxu0 %v3432
        %3922 = vmatpush1.bf16.msra.mxu0 %v3431
        %3923 = vmatprep.subr.bf16.mxu0 %v3436
        %3924 = vmatpush1.bf16.msra.mxu0 %v3435
        %3925 = vmatprep.subr.bf16.mxu0 %v3440
        %3926 = vmatpush1.bf16.msra.mxu0 %v3439
        %3927 = vmatprep.subr.bf16.mxu0 %v3444
        %3928 = vmatpush1.bf16.msra.mxu0 %v3443
        %3929 = vmatprep.subr.bf16.mxu0 %v3448
        %3930 = vmatpush1.bf16.msra.mxu0 %v3447
        %3931 = vmatprep.mubr.bf16.mxu0 %v2589
        %3932 = vmatmul.mubr.bf16.gmra.mrb[0].mxu0 %v2588
        %v3933 = vpop.f32.mrb[0].mxu0
        %v3934 = vadd.f32 %v2602, %v3933
        %v3935 = vpop.f32.mrb[0].mxu0
        %v3936 = vadd.f32 %v2606, %v3935
        %v3937 = vpop.f32.mrb[0].mxu0
        %v3938 = vadd.f32 %v2602, %v3937
        %v3939 = vpop.f32.mrb[0].mxu0
        %v3940 = vadd.f32 %v2606, %v3939
        %3941 = vdwg.mxu0
        %3942 = vmatprep.subr.bf16.mxu0 %v3452
        %3943 = vmatpush1.bf16.msra.mxu0 %v3451
        %3944 = vmatprep.subr.bf16.mxu0 %v3456
        %3945 = vmatpush1.bf16.msra.mxu0 %v3455
        %3946 = vmatprep.subr.bf16.mxu0 %v3460
        %3947 = vmatpush1.bf16.msra.mxu0 %v3459
        %3948 = vmatprep.subr.bf16.mxu0 %v3464
        %3949 = vmatpush1.bf16.msra.mxu0 %v3463
        %3950 = vmatprep.subr.bf16.mxu0 %v3468
        %3951 = vmatpush1.bf16.msra.mxu0 %v3467
        %3952 = vmatprep.subr.bf16.mxu0 %v3472
        %3953 = vmatpush1.bf16.msra.mxu0 %v3471
        %3954 = vmatprep.subr.bf16.mxu0 %v3476
        %3955 = vmatpush1.bf16.msra.mxu0 %v3475
        %3956 = vmatprep.subr.bf16.mxu0 %v3480
        %3957 = vmatpush1.bf16.msra.mxu0 %v3479
        %3958 = vmatprep.subr.bf16.mxu0 %v3484
        %3959 = vmatpush1.bf16.msra.mxu0 %v3483
        %3960 = vmatprep.subr.bf16.mxu0 %v3488
        %3961 = vmatpush1.bf16.msra.mxu0 %v3487
        %3962 = vmatprep.subr.bf16.mxu0 %v3492
        %3963 = vmatpush1.bf16.msra.mxu0 %v3491
        %3964 = vmatprep.subr.bf16.mxu0 %v3496
        %3965 = vmatpush1.bf16.msra.mxu0 %v3495
        %3966 = vmatprep.subr.bf16.mxu0 %v3500
        %3967 = vmatpush1.bf16.msra.mxu0 %v3499
        %3968 = vmatprep.subr.bf16.mxu0 %v3504
        %3969 = vmatpush1.bf16.msra.mxu0 %v3503
        %3970 = vmatprep.subr.bf16.mxu0 %v3508
        %3971 = vmatpush1.bf16.msra.mxu0 %v3507
        %3972 = vmatprep.subr.bf16.mxu0 %v3512
        %3973 = vmatpush1.bf16.msra.mxu0 %v3511
        %3974 = vmatprep.mubr.bf16.mxu0 %v2591
        %3975 = vmatmul.mubr.bf16.gmra.mrb[0].mxu0 %v2590
        %v3976 = vpop.f32.mrb[0].mxu0
        %v3977 = vadd.f32 %v3934, %v3976
        %v3978 = vpop.f32.mrb[0].mxu0
        %v3979 = vadd.f32 %v3936, %v3978
        %v3980 = vpop.f32.mrb[0].mxu0
        %v3981 = vadd.f32 %v3938, %v3980
        %v3982 = vpop.f32.mrb[0].mxu0
        %v3983 = vadd.f32 %v3940, %v3982
        %3984 = vdwg.mxu0
        %3985 = vmatprep.subr.bf16.mxu0 %v3516
        %3986 = vmatpush1.bf16.msra.mxu0 %v3515
        %3987 = vmatprep.subr.bf16.mxu0 %v3520
        %3988 = vmatpush1.bf16.msra.mxu0 %v3519
        %3989 = vmatprep.subr.bf16.mxu0 %v3524
        %3990 = vmatpush1.bf16.msra.mxu0 %v3523
        %3991 = vmatprep.subr.bf16.mxu0 %v3528
        %3992 = vmatpush1.bf16.msra.mxu0 %v3527
        %3993 = vmatprep.subr.bf16.mxu0 %v3532
        %3994 = vmatpush1.bf16.msra.mxu0 %v3531
        %3995 = vmatprep.subr.bf16.mxu0 %v3536
        %3996 = vmatpush1.bf16.msra.mxu0 %v3535
        %3997 = vmatprep.subr.bf16.mxu0 %v3540
        %3998 = vmatpush1.bf16.msra.mxu0 %v3539
        %3999 = vmatprep.subr.bf16.mxu0 %v3544
        %4000 = vmatpush1.bf16.msra.mxu0 %v3543
        %4001 = vmatprep.subr.bf16.mxu0 %v3548
        %4002 = vmatpush1.bf16.msra.mxu0 %v3547
        %4003 = vmatprep.subr.bf16.mxu0 %v3552
        %4004 = vmatpush1.bf16.msra.mxu0 %v3551
        %4005 = vmatprep.subr.bf16.mxu0 %v3556
        %4006 = vmatpush1.bf16.msra.mxu0 %v3555
        %4007 = vmatprep.subr.bf16.mxu0 %v3560
        %4008 = vmatpush1.bf16.msra.mxu0 %v3559
        %4009 = vmatprep.subr.bf16.mxu0 %v3564
        %4010 = vmatpush1.bf16.msra.mxu0 %v3563
        %4011 = vmatprep.subr.bf16.mxu0 %v3568
        %4012 = vmatpush1.bf16.msra.mxu0 %v3567
        %4013 = vmatprep.subr.bf16.mxu0 %v3572
        %4014 = vmatpush1.bf16.msra.mxu0 %v3571
        %4015 = vmatprep.subr.bf16.mxu0 %v3576
        %4016 = vmatpush1.bf16.msra.mxu0 %v3575
        %4017 = vmatprep.mubr.bf16.mxu0 %v2593
        %4018 = vmatmul.mubr.bf16.gmra.mrb[0].mxu0 %v2592
        %v4019 = vpop.f32.mrb[0].mxu0
        %v4020 = vadd.f32 %v3977, %v4019
        %v4021 = vpop.f32.mrb[0].mxu0
        %v4022 = vadd.f32 %v3979, %v4021
        %v4023 = vpop.f32.mrb[0].mxu0
        %v4024 = vadd.f32 %v3981, %v4023
        %v4025 = vpop.f32.mrb[0].mxu0
        %v4026 = vadd.f32 %v3983, %v4025
        %4027 = vdwg.mxu0
        %4028 = vmatprep.subr.bf16.mxu0 %v3580
        %4029 = vmatpush1.bf16.msra.mxu0 %v3579
        %4030 = vmatprep.subr.bf16.mxu0 %v3584
        %4031 = vmatpush1.bf16.msra.mxu0 %v3583
        %4032 = vmatprep.subr.bf16.mxu0 %v3588
        %4033 = vmatpush1.bf16.msra.mxu0 %v3587
        %4034 = vmatprep.subr.bf16.mxu0 %v3592
        %4035 = vmatpush1.bf16.msra.mxu0 %v3591
        %4036 = vmatprep.subr.bf16.mxu0 %v3596
        %4037 = vmatpush1.bf16.msra.mxu0 %v3595
        %4038 = vmatprep.subr.bf16.mxu0 %v3600
        %4039 = vmatpush1.bf16.msra.mxu0 %v3599
        %4040 = vmatprep.subr.bf16.mxu0 %v3604
        %4041 = vmatpush1.bf16.msra.mxu0 %v3603
        %4042 = vmatprep.subr.bf16.mxu0 %v3608
        %4043 = vmatpush1.bf16.msra.mxu0 %v3607
        %4044 = vmatprep.subr.bf16.mxu0 %v3612
        %4045 = vmatpush1.bf16.msra.mxu0 %v3611
        %4046 = vmatprep.subr.bf16.mxu0 %v3616
        %4047 = vmatpush1.bf16.msra.mxu0 %v3615
        %4048 = vmatprep.subr.bf16.mxu0 %v3620
        %4049 = vmatpush1.bf16.msra.mxu0 %v3619
        %4050 = vmatprep.subr.bf16.mxu0 %v3624
        %4051 = vmatpush1.bf16.msra.mxu0 %v3623
        %4052 = vmatprep.subr.bf16.mxu0 %v3628
        %4053 = vmatpush1.bf16.msra.mxu0 %v3627
        %4054 = vmatprep.subr.bf16.mxu0 %v3632
        %4055 = vmatpush1.bf16.msra.mxu0 %v3631
        %4056 = vmatprep.subr.bf16.mxu0 %v3636
        %4057 = vmatpush1.bf16.msra.mxu0 %v3635
        %4058 = vmatprep.subr.bf16.mxu0 %v3640
        %4059 = vmatpush1.bf16.msra.mxu0 %v3639
        %4060 = vmatprep.mubr.bf16.mxu0 %v2595
        %4061 = vmatmul.mubr.bf16.gmra.mrb[0].mxu0 %v2594
        %v4062 = vpop.f32.mrb[0].mxu0
        %v4063 = vadd.f32 %v4020, %v4062
        %v4064 = vpop.f32.mrb[0].mxu0
        %v4065 = vadd.f32 %v4022, %v4064
        %v4066 = vpop.f32.mrb[0].mxu0
        %v4067 = vadd.f32 %v4024, %v4066
        %v4068 = vpop.f32.mrb[0].mxu0
        %v4069 = vadd.f32 %v4026, %v4068
        %4070 = vdwg.mxu0
        %4071 = vmatprep.subr.bf16.mxu0 %v3390
        %4072 = vmatpush1.bf16.msra.mxu0 %v3389
        %4073 = vmatprep.subr.bf16.mxu0 %v3394
        %4074 = vmatpush1.bf16.msra.mxu0 %v3393
        %4075 = vmatprep.subr.bf16.mxu0 %v3398
        %4076 = vmatpush1.bf16.msra.mxu0 %v3397
        %4077 = vmatprep.subr.bf16.mxu0 %v3402
        %4078 = vmatpush1.bf16.msra.mxu0 %v3401
        %4079 = vmatprep.subr.bf16.mxu0 %v3406
        %4080 = vmatpush1.bf16.msra.mxu0 %v3405
        %4081 = vmatprep.subr.bf16.mxu0 %v3410
        %4082 = vmatpush1.bf16.msra.mxu0 %v3409
        %4083 = vmatprep.subr.bf16.mxu0 %v3414
        %4084 = vmatpush1.bf16.msra.mxu0 %v3413
        %4085 = vmatprep.subr.bf16.mxu0 %v3418
        %4086 = vmatpush1.bf16.msra.mxu0 %v3417
        %4087 = vmatprep.subr.bf16.mxu0 %v3422
        %4088 = vmatpush1.bf16.msra.mxu0 %v3421
        %4089 = vmatprep.subr.bf16.mxu0 %v3426
        %4090 = vmatpush1.bf16.msra.mxu0 %v3425
        %4091 = vmatprep.subr.bf16.mxu0 %v3430
        %4092 = vmatpush1.bf16.msra.mxu0 %v3429
        %4093 = vmatprep.subr.bf16.mxu0 %v3434
        %4094 = vmatpush1.bf16.msra.mxu0 %v3433
        %4095 = vmatprep.subr.bf16.mxu0 %v3438
        %4096 = vmatpush1.bf16.msra.mxu0 %v3437
        %4097 = vmatprep.subr.bf16.mxu0 %v3442
        %4098 = vmatpush1.bf16.msra.mxu0 %v3441
        %4099 = vmatprep.subr.bf16.mxu0 %v3446
        %4100 = vmatpush1.bf16.msra.mxu0 %v3445
        %4101 = vmatprep.subr.bf16.mxu0 %v3450
        %4102 = vmatpush1.bf16.msra.mxu0 %v3449
        %4103 = vmatprep.mubr.bf16.mxu0 %v2589
        %4104 = vmatmul.mubr.bf16.gmra.mrb[0].mxu0 %v2588
        %v4105 = vpop.f32.mrb[0].mxu0
        %v4106 = vadd.f32 %v2610, %v4105
        %v4107 = vpop.f32.mrb[0].mxu0
        %v4108 = vadd.f32 %v2614, %v4107
        %v4109 = vpop.f32.mrb[0].mxu0
        %v4110 = vadd.f32 %v2610, %v4109
        %v4111 = vpop.f32.mrb[0].mxu0
        %v4112 = vadd.f32 %v2614, %v4111
        %4113 = vdwg.mxu0
        %4114 = vmatprep.subr.bf16.mxu0 %v3454
        %4115 = vmatpush1.bf16.msra.mxu0 %v3453
        %4116 = vmatprep.subr.bf16.mxu0 %v3458
        %4117 = vmatpush1.bf16.msra.mxu0 %v3457
        %4118 = vmatprep.subr.bf16.mxu0 %v3462
        %4119 = vmatpush1.bf16.msra.mxu0 %v3461
        %4120 = vmatprep.subr.bf16.mxu0 %v3466
        %4121 = vmatpush1.bf16.msra.mxu0 %v3465
        %4122 = vmatprep.subr.bf16.mxu0 %v3470
        %4123 = vmatpush1.bf16.msra.mxu0 %v3469
        %4124 = vmatprep.subr.bf16.mxu0 %v3474
        %4125 = vmatpush1.bf16.msra.mxu0 %v3473
        %4126 = vmatprep.subr.bf16.mxu0 %v3478
        %4127 = vmatpush1.bf16.msra.mxu0 %v3477
        %4128 = vmatprep.subr.bf16.mxu0 %v3482
        %4129 = vmatpush1.bf16.msra.mxu0 %v3481
        %4130 = vmatprep.subr.bf16.mxu0 %v3486
        %4131 = vmatpush1.bf16.msra.mxu0 %v3485
        %4132 = vmatprep.subr.bf16.mxu0 %v3490
        %4133 = vmatpush1.bf16.msra.mxu0 %v3489
        %4134 = vmatprep.subr.bf16.mxu0 %v3494
        %4135 = vmatpush1.bf16.msra.mxu0 %v3493
        %4136 = vmatprep.subr.bf16.mxu0 %v3498
        %4137 = vmatpush1.bf16.msra.mxu0 %v3497
        %4138 = vmatprep.subr.bf16.mxu0 %v3502
        %4139 = vmatpush1.bf16.msra.mxu0 %v3501
        %4140 = vmatprep.subr.bf16.mxu0 %v3506
        %4141 = vmatpush1.bf16.msra.mxu0 %v3505
        %4142 = vmatprep.subr.bf16.mxu0 %v3510
        %4143 = vmatpush1.bf16.msra.mxu0 %v3509
        %4144 = vmatprep.subr.bf16.mxu0 %v3514
        %4145 = vmatpush1.bf16.msra.mxu0 %v3513
        %4146 = vmatprep.mubr.bf16.mxu0 %v2591
        %4147 = vmatmul.mubr.bf16.gmra.mrb[0].mxu0 %v2590
        %v4148 = vpop.f32.mrb[0].mxu0
        %v4149 = vadd.f32 %v4106, %v4148
        %v4150 = vpop.f32.mrb[0].mxu0
        %v4151 = vadd.f32 %v4108, %v4150
        %v4152 = vpop.f32.mrb[0].mxu0
        %v4153 = vadd.f32 %v4110, %v4152
        %v4154 = vpop.f32.mrb[0].mxu0
        %v4155 = vadd.f32 %v4112, %v4154
        %4156 = vdwg.mxu0
        %4157 = vmatprep.subr.bf16.mxu0 %v3518
        %4158 = vmatpush1.bf16.msra.mxu0 %v3517
        %4159 = vmatprep.subr.bf16.mxu0 %v3522
        %4160 = vmatpush1.bf16.msra.mxu0 %v3521
        %4161 = vmatprep.subr.bf16.mxu0 %v3526
        %4162 = vmatpush1.bf16.msra.mxu0 %v3525
        %4163 = vmatprep.subr.bf16.mxu0 %v3530
        %4164 = vmatpush1.bf16.msra.mxu0 %v3529
        %4165 = vmatprep.subr.bf16.mxu0 %v3534
        %4166 = vmatpush1.bf16.msra.mxu0 %v3533
        %4167 = vmatprep.subr.bf16.mxu0 %v3538
        %4168 = vmatpush1.bf16.msra.mxu0 %v3537
        %4169 = vmatprep.subr.bf16.mxu0 %v3542
        %4170 = vmatpush1.bf16.msra.mxu0 %v3541
        %4171 = vmatprep.subr.bf16.mxu0 %v3546
        %4172 = vmatpush1.bf16.msra.mxu0 %v3545
        %4173 = vmatprep.subr.bf16.mxu0 %v3550
        %4174 = vmatpush1.bf16.msra.mxu0 %v3549
        %4175 = vmatprep.subr.bf16.mxu0 %v3554
        %4176 = vmatpush1.bf16.msra.mxu0 %v3553
        %4177 = vmatprep.subr.bf16.mxu0 %v3558
        %4178 = vmatpush1.bf16.msra.mxu0 %v3557
        %4179 = vmatprep.subr.bf16.mxu0 %v3562
        %4180 = vmatpush1.bf16.msra.mxu0 %v3561
        %4181 = vmatprep.subr.bf16.mxu0 %v3566
        %4182 = vmatpush1.bf16.msra.mxu0 %v3565
        %4183 = vmatprep.subr.bf16.mxu0 %v3570
        %4184 = vmatpush1.bf16.msra.mxu0 %v3569
        %4185 = vmatprep.subr.bf16.mxu0 %v3574
        %4186 = vmatpush1.bf16.msra.mxu0 %v3573
        %4187 = vmatprep.subr.bf16.mxu0 %v3578
        %4188 = vmatpush1.bf16.msra.mxu0 %v3577
        %4189 = vmatprep.mubr.bf16.mxu0 %v2593
        %4190 = vmatmul.mubr.bf16.gmra.mrb[0].mxu0 %v2592
        %v4191 = vpop.f32.mrb[0].mxu0
        %v4192 = vadd.f32 %v4149, %v4191
        %v4193 = vpop.f32.mrb[0].mxu0
        %v4194 = vadd.f32 %v4151, %v4193
        %v4195 = vpop.f32.mrb[0].mxu0
        %v4196 = vadd.f32 %v4153, %v4195
        %v4197 = vpop.f32.mrb[0].mxu0
        %v4198 = vadd.f32 %v4155, %v4197
        %4199 = vdwg.mxu0
        %4200 = vmatprep.subr.bf16.mxu0 %v3582
        %4201 = vmatpush1.bf16.msra.mxu0 %v3581
        %4202 = vmatprep.subr.bf16.mxu0 %v3586
        %4203 = vmatpush1.bf16.msra.mxu0 %v3585
        %4204 = vmatprep.subr.bf16.mxu0 %v3590
        %4205 = vmatpush1.bf16.msra.mxu0 %v3589
        %4206 = vmatprep.subr.bf16.mxu0 %v3594
        %4207 = vmatpush1.bf16.msra.mxu0 %v3593
        %4208 = vmatprep.subr.bf16.mxu0 %v3598
        %4209 = vmatpush1.bf16.msra.mxu0 %v3597
        %4210 = vmatprep.subr.bf16.mxu0 %v3602
        %4211 = vmatpush1.bf16.msra.mxu0 %v3601
        %4212 = vmatprep.subr.bf16.mxu0 %v3606
        %4213 = vmatpush1.bf16.msra.mxu0 %v3605
        %4214 = vmatprep.subr.bf16.mxu0 %v3610
        %4215 = vmatpush1.bf16.msra.mxu0 %v3609
        %4216 = vmatprep.subr.bf16.mxu0 %v3614
        %4217 = vmatpush1.bf16.msra.mxu0 %v3613
        %4218 = vmatprep.subr.bf16.mxu0 %v3618
        %4219 = vmatpush1.bf16.msra.mxu0 %v3617
        %4220 = vmatprep.subr.bf16.mxu0 %v3622
        %4221 = vmatpush1.bf16.msra.mxu0 %v3621
        %4222 = vmatprep.subr.bf16.mxu0 %v3626
        %4223 = vmatpush1.bf16.msra.mxu0 %v3625
        %4224 = vmatprep.subr.bf16.mxu0 %v3630
        %4225 = vmatpush1.bf16.msra.mxu0 %v3629
        %4226 = vmatprep.subr.bf16.mxu0 %v3634
        %4227 = vmatpush1.bf16.msra.mxu0 %v3633
        %4228 = vmatprep.subr.bf16.mxu0 %v3638
        %4229 = vmatpush1.bf16.msra.mxu0 %v3637
        %4230 = vmatprep.subr.bf16.mxu0 %v3642
        %4231 = vmatpush1.bf16.msra.mxu0 %v3641
        %4232 = vmatprep.mubr.bf16.mxu0 %v2595
        %4233 = vmatmul.mubr.bf16.gmra.mrb[0].mxu0 %v2594
        %v4234 = vpop.f32.mrb[0].mxu0
        %v4235 = vadd.f32 %v4192, %v4234
        %v4236 = vpop.f32.mrb[0].mxu0
        %v4237 = vadd.f32 %v4194, %v4236
        %v4238 = vpop.f32.mrb[0].mxu0
        %v4239 = vadd.f32 %v4196, %v4238
        %v4240 = vpop.f32.mrb[0].mxu0
        %v4241 = vadd.f32 %v4198, %v4240
        %4242 = vdwg.mxu0
        %v4243 = vmax.f32 %v4063, 0.0
        %v4244 = vmax.f32 %v4065, 0.0
        %v4245 = vmax.f32 %v4235, 0.0
        %v4246 = vmax.f32 %v4237, 0.0
        %v4247 = vmax.f32 %v4067, 0.0
        %v4248 = vmax.f32 %v4069, 0.0
        %v4249 = vmax.f32 %v4239, 0.0
        %v4250 = vmax.f32 %v4241, 0.0
        %v4251 = vld [vmem:[#allocation13] sm:$0xff]
        %v4252 = vld [vmem:[#allocation13 + $0x8] sm:$0xff]
        %v4253 = vld [vmem:[#allocation13 + $0x10] sm:$0xff]
        %v4254 = vld [vmem:[#allocation13 + $0x18] sm:$0xff]
        %v4255 = vld [vmem:[#allocation13 + $0x20] sm:$0xff]
        %v4256 = vld [vmem:[#allocation13 + $0x28] sm:$0xff]
        %v4257 = vld [vmem:[#allocation13 + $0x30] sm:$0xff]
        %v4258 = vld [vmem:[#allocation13 + $0x38] sm:$0xff]
        %v4259 = vld [vmem:[#allocation13 + $0x40] sm:$0xff]
        %v4260 = vld [vmem:[#allocation13 + $0x48] sm:$0xff]
        %v4261 = vld [vmem:[#allocation13 + $0x50] sm:$0xff]
        %v4262 = vld [vmem:[#allocation13 + $0x58] sm:$0xff]
        %v4263 = vld [vmem:[#allocation13 + $0x60] sm:$0xff]
        %v4264 = vld [vmem:[#allocation13 + $0x68] sm:$0xff]
        %v4265 = vld [vmem:[#allocation13 + $0x70] sm:$0xff]
        %v4266 = vld [vmem:[#allocation13 + $0x78] sm:$0xff]
        %v4267 = vld [vmem:[#allocation13 + $0x80] sm:$0xff]
        %v4268 = vld [vmem:[#allocation13 + $0x88] sm:$0xff]
        %v4269 = vld [vmem:[#allocation13 + $0x90] sm:$0xff]
        %v4270 = vld [vmem:[#allocation13 + $0x98] sm:$0xff]
        %v4271 = vld [vmem:[#allocation13 + $0xa0] sm:$0xff]
        %v4272 = vld [vmem:[#allocation13 + $0xa8] sm:$0xff]
        %v4273 = vld [vmem:[#allocation13 + $0xb0] sm:$0xff]
        %v4274 = vld [vmem:[#allocation13 + $0xb8] sm:$0xff]
        %v4275 = vld [vmem:[#allocation13 + $0xc0] sm:$0xff]
        %v4276 = vld [vmem:[#allocation13 + $0xc8] sm:$0xff]
        %v4277 = vld [vmem:[#allocation13 + $0xd0] sm:$0xff]
        %v4278 = vld [vmem:[#allocation13 + $0xd8] sm:$0xff]
        %v4279 = vld [vmem:[#allocation13 + $0xe0] sm:$0xff]
        %v4280 = vld [vmem:[#allocation13 + $0xe8] sm:$0xff]
        %v4281 = vld [vmem:[#allocation13 + $0xf0] sm:$0xff]
        %v4282 = vld [vmem:[#allocation13 + $0xf8] sm:$0xff]
        %v4283 = vld [vmem:[#allocation13 + $0x100] sm:$0xff]
        %v4284 = vld [vmem:[#allocation13 + $0x108] sm:$0xff]
        %v4285 = vld [vmem:[#allocation13 + $0x110] sm:$0xff]
        %v4286 = vld [vmem:[#allocation13 + $0x118] sm:$0xff]
        %v4287 = vld [vmem:[#allocation13 + $0x120] sm:$0xff]
        %v4288 = vld [vmem:[#allocation13 + $0x128] sm:$0xff]
        %v4289 = vld [vmem:[#allocation13 + $0x130] sm:$0xff]
        %v4290 = vld [vmem:[#allocation13 + $0x138] sm:$0xff]
        %v4291 = vld [vmem:[#allocation13 + $0x140] sm:$0xff]
        %v4292 = vld [vmem:[#allocation13 + $0x148] sm:$0xff]
        %v4293 = vld [vmem:[#allocation13 + $0x150] sm:$0xff]
        %v4294 = vld [vmem:[#allocation13 + $0x158] sm:$0xff]
        %v4295 = vld [vmem:[#allocation13 + $0x160] sm:$0xff]
        %v4296 = vld [vmem:[#allocation13 + $0x168] sm:$0xff]
        %v4297 = vld [vmem:[#allocation13 + $0x170] sm:$0xff]
        %v4298 = vld [vmem:[#allocation13 + $0x178] sm:$0xff]
        %v4299 = vld [vmem:[#allocation13 + $0x180] sm:$0xff]
        %v4300 = vld [vmem:[#allocation13 + $0x188] sm:$0xff]
        %v4301 = vld [vmem:[#allocation13 + $0x190] sm:$0xff]
        %v4302 = vld [vmem:[#allocation13 + $0x198] sm:$0xff]
        %v4303 = vld [vmem:[#allocation13 + $0x1a0] sm:$0xff]
        %v4304 = vld [vmem:[#allocation13 + $0x1a8] sm:$0xff]
        %v4305 = vld [vmem:[#allocation13 + $0x1b0] sm:$0xff]
        %v4306 = vld [vmem:[#allocation13 + $0x1b8] sm:$0xff]
        %v4307 = vld [vmem:[#allocation13 + $0x1c0] sm:$0xff]
        %v4308 = vld [vmem:[#allocation13 + $0x1c8] sm:$0xff]
        %v4309 = vld [vmem:[#allocation13 + $0x1d0] sm:$0xff]
        %v4310 = vld [vmem:[#allocation13 + $0x1d8] sm:$0xff]
        %v4311 = vld [vmem:[#allocation13 + $0x1e0] sm:$0xff]
        %v4312 = vld [vmem:[#allocation13 + $0x1e8] sm:$0xff]
        %v4313 = vld [vmem:[#allocation13 + $0x1f0] sm:$0xff]
        %v4314 = vld [vmem:[#allocation13 + $0x1f8] sm:$0xff]
        %v4315 = vpack.c.bf16 %v4247, %v4243
        %v4316 = vpack.c.bf16 %v4248, %v4244
        %v4317 = vpack.c.bf16 %v4249, %v4245
        %v4318 = vpack.c.bf16 %v4250, %v4246
        %s4319 = scalar_lea.vmem [#allocation15], 65
        %v4320 = vld [vmem:[%s4319] ss:$8 sm:$0x3]
        %v4322 = vlaneseq
        %v4323 = vshrl.u32 %v4322, 7
        %v4324 = vsub.s32 0, %v4323
        %v4325 = vrot.slane %v4320, %v4324
        %v4326 = vlaneseq
        %v4327 = vshrl.u32 %v4326, 7
        %v4328 = vsub.s32 1, %v4327
        %v4329 = vrot.slane %v4320, %v4328
        %v4396 = vunpack.c.l.b16 %v4251
        %v4397 = vunpack.c.h.b16 %v4251
        %v4398 = vunpack.c.l.b16 %v4252
        %v4399 = vunpack.c.h.b16 %v4252
        %v4400 = vunpack.c.l.b16 %v4253
        %v4401 = vunpack.c.h.b16 %v4253
        %v4402 = vunpack.c.l.b16 %v4254
        %v4403 = vunpack.c.h.b16 %v4254
        %v4404 = vunpack.c.l.b16 %v4255
        %v4405 = vunpack.c.h.b16 %v4255
        %v4406 = vunpack.c.l.b16 %v4256
        %v4407 = vunpack.c.h.b16 %v4256
        %v4408 = vunpack.c.l.b16 %v4257
        %v4409 = vunpack.c.h.b16 %v4257
        %v4410 = vunpack.c.l.b16 %v4258
        %v4411 = vunpack.c.h.b16 %v4258
        %v4412 = vunpack.c.l.b16 %v4259
        %v4413 = vunpack.c.h.b16 %v4259
        %v4414 = vunpack.c.l.b16 %v4260
        %v4415 = vunpack.c.h.b16 %v4260
        %v4416 = vunpack.c.l.b16 %v4261
        %v4417 = vunpack.c.h.b16 %v4261
        %v4418 = vunpack.c.l.b16 %v4262
        %v4419 = vunpack.c.h.b16 %v4262
        %v4420 = vunpack.c.l.b16 %v4263
        %v4421 = vunpack.c.h.b16 %v4263
        %v4422 = vunpack.c.l.b16 %v4264
        %v4423 = vunpack.c.h.b16 %v4264
        %v4424 = vunpack.c.l.b16 %v4265
        %v4425 = vunpack.c.h.b16 %v4265
        %v4426 = vunpack.c.l.b16 %v4266
        %v4427 = vunpack.c.h.b16 %v4266
        %v4428 = vunpack.c.l.b16 %v4267
        %v4429 = vunpack.c.h.b16 %v4267
        %v4430 = vunpack.c.l.b16 %v4268
        %v4431 = vunpack.c.h.b16 %v4268
        %v4432 = vunpack.c.l.b16 %v4269
        %v4433 = vunpack.c.h.b16 %v4269
        %v4434 = vunpack.c.l.b16 %v4270
        %v4435 = vunpack.c.h.b16 %v4270
        %v4436 = vunpack.c.l.b16 %v4271
        %v4437 = vunpack.c.h.b16 %v4271
        %v4438 = vunpack.c.l.b16 %v4272
        %v4439 = vunpack.c.h.b16 %v4272
        %v4440 = vunpack.c.l.b16 %v4273
        %v4441 = vunpack.c.h.b16 %v4273
        %v4442 = vunpack.c.l.b16 %v4274
        %v4443 = vunpack.c.h.b16 %v4274
        %v4444 = vunpack.c.l.b16 %v4275
        %v4445 = vunpack.c.h.b16 %v4275
        %v4446 = vunpack.c.l.b16 %v4276
        %v4447 = vunpack.c.h.b16 %v4276
        %v4448 = vunpack.c.l.b16 %v4277
        %v4449 = vunpack.c.h.b16 %v4277
        %v4450 = vunpack.c.l.b16 %v4278
        %v4451 = vunpack.c.h.b16 %v4278
        %v4452 = vunpack.c.l.b16 %v4279
        %v4453 = vunpack.c.h.b16 %v4279
        %v4454 = vunpack.c.l.b16 %v4280
        %v4455 = vunpack.c.h.b16 %v4280
        %v4456 = vunpack.c.l.b16 %v4281
        %v4457 = vunpack.c.h.b16 %v4281
        %v4458 = vunpack.c.l.b16 %v4282
        %v4459 = vunpack.c.h.b16 %v4282
        %v4460 = vunpack.c.l.b16 %v4283
        %v4461 = vunpack.c.h.b16 %v4283
        %v4462 = vunpack.c.l.b16 %v4284
        %v4463 = vunpack.c.h.b16 %v4284
        %v4464 = vunpack.c.l.b16 %v4285
        %v4465 = vunpack.c.h.b16 %v4285
        %v4466 = vunpack.c.l.b16 %v4286
        %v4467 = vunpack.c.h.b16 %v4286
        %v4468 = vunpack.c.l.b16 %v4287
        %v4469 = vunpack.c.h.b16 %v4287
        %v4470 = vunpack.c.l.b16 %v4288
        %v4471 = vunpack.c.h.b16 %v4288
        %v4472 = vunpack.c.l.b16 %v4289
        %v4473 = vunpack.c.h.b16 %v4289
        %v4474 = vunpack.c.l.b16 %v4290
        %v4475 = vunpack.c.h.b16 %v4290
        %v4476 = vunpack.c.l.b16 %v4291
        %v4477 = vunpack.c.h.b16 %v4291
        %v4478 = vunpack.c.l.b16 %v4292
        %v4479 = vunpack.c.h.b16 %v4292
        %v4480 = vunpack.c.l.b16 %v4293
        %v4481 = vunpack.c.h.b16 %v4293
        %v4482 = vunpack.c.l.b16 %v4294
        %v4483 = vunpack.c.h.b16 %v4294
        %v4484 = vunpack.c.l.b16 %v4295
        %v4485 = vunpack.c.h.b16 %v4295
        %v4486 = vunpack.c.l.b16 %v4296
        %v4487 = vunpack.c.h.b16 %v4296
        %v4488 = vunpack.c.l.b16 %v4297
        %v4489 = vunpack.c.h.b16 %v4297
        %v4490 = vunpack.c.l.b16 %v4298
        %v4491 = vunpack.c.h.b16 %v4298
        %v4492 = vunpack.c.l.b16 %v4299
        %v4493 = vunpack.c.h.b16 %v4299
        %v4494 = vunpack.c.l.b16 %v4300
        %v4495 = vunpack.c.h.b16 %v4300
        %v4496 = vunpack.c.l.b16 %v4301
        %v4497 = vunpack.c.h.b16 %v4301
        %v4498 = vunpack.c.l.b16 %v4302
        %v4499 = vunpack.c.h.b16 %v4302
        %v4500 = vunpack.c.l.b16 %v4303
        %v4501 = vunpack.c.h.b16 %v4303
        %v4502 = vunpack.c.l.b16 %v4304
        %v4503 = vunpack.c.h.b16 %v4304
        %v4504 = vunpack.c.l.b16 %v4305
        %v4505 = vunpack.c.h.b16 %v4305
        %v4506 = vunpack.c.l.b16 %v4306
        %v4507 = vunpack.c.h.b16 %v4306
        %v4508 = vunpack.c.l.b16 %v4307
        %v4509 = vunpack.c.h.b16 %v4307
        %v4510 = vunpack.c.l.b16 %v4308
        %v4511 = vunpack.c.h.b16 %v4308
        %v4512 = vunpack.c.l.b16 %v4309
        %v4513 = vunpack.c.h.b16 %v4309
        %v4514 = vunpack.c.l.b16 %v4310
        %v4515 = vunpack.c.h.b16 %v4310
        %v4516 = vunpack.c.l.b16 %v4311
        %v4517 = vunpack.c.h.b16 %v4311
        %v4518 = vunpack.c.l.b16 %v4312
        %v4519 = vunpack.c.h.b16 %v4312
        %v4520 = vunpack.c.l.b16 %v4313
        %v4521 = vunpack.c.h.b16 %v4313
        %v4522 = vunpack.c.l.b16 %v4314
        %v4523 = vunpack.c.h.b16 %v4314
        %v4524 = vpack.c.b16 %v4398, %v4396
        %v4525 = vpack.c.b16 %v4399, %v4397
        %v4526 = vpack.c.b16 %v4402, %v4400
        %v4527 = vpack.c.b16 %v4403, %v4401
        %v4528 = vpack.c.b16 %v4406, %v4404
        %v4529 = vpack.c.b16 %v4407, %v4405
        %v4530 = vpack.c.b16 %v4410, %v4408
        %v4531 = vpack.c.b16 %v4411, %v4409
        %v4532 = vpack.c.b16 %v4414, %v4412
        %v4533 = vpack.c.b16 %v4415, %v4413
        %v4534 = vpack.c.b16 %v4418, %v4416
        %v4535 = vpack.c.b16 %v4419, %v4417
        %v4536 = vpack.c.b16 %v4422, %v4420
        %v4537 = vpack.c.b16 %v4423, %v4421
        %v4538 = vpack.c.b16 %v4426, %v4424
        %v4539 = vpack.c.b16 %v4427, %v4425
        %v4540 = vpack.c.b16 %v4430, %v4428
        %v4541 = vpack.c.b16 %v4431, %v4429
        %v4542 = vpack.c.b16 %v4434, %v4432
        %v4543 = vpack.c.b16 %v4435, %v4433
        %v4544 = vpack.c.b16 %v4438, %v4436
        %v4545 = vpack.c.b16 %v4439, %v4437
        %v4546 = vpack.c.b16 %v4442, %v4440
        %v4547 = vpack.c.b16 %v4443, %v4441
        %v4548 = vpack.c.b16 %v4446, %v4444
        %v4549 = vpack.c.b16 %v4447, %v4445
        %v4550 = vpack.c.b16 %v4450, %v4448
        %v4551 = vpack.c.b16 %v4451, %v4449
        %v4552 = vpack.c.b16 %v4454, %v4452
        %v4553 = vpack.c.b16 %v4455, %v4453
        %v4554 = vpack.c.b16 %v4458, %v4456
        %v4555 = vpack.c.b16 %v4459, %v4457
        %v4556 = vpack.c.b16 %v4462, %v4460
        %v4557 = vpack.c.b16 %v4463, %v4461
        %v4558 = vpack.c.b16 %v4466, %v4464
        %v4559 = vpack.c.b16 %v4467, %v4465
        %v4560 = vpack.c.b16 %v4470, %v4468
        %v4561 = vpack.c.b16 %v4471, %v4469
        %v4562 = vpack.c.b16 %v4474, %v4472
        %v4563 = vpack.c.b16 %v4475, %v4473
        %v4564 = vpack.c.b16 %v4478, %v4476
        %v4565 = vpack.c.b16 %v4479, %v4477
        %v4566 = vpack.c.b16 %v4482, %v4480
        %v4567 = vpack.c.b16 %v4483, %v4481
        %v4568 = vpack.c.b16 %v4486, %v4484
        %v4569 = vpack.c.b16 %v4487, %v4485
        %v4570 = vpack.c.b16 %v4490, %v4488
        %v4571 = vpack.c.b16 %v4491, %v4489
        %v4572 = vpack.c.b16 %v4494, %v4492
        %v4573 = vpack.c.b16 %v4495, %v4493
        %v4574 = vpack.c.b16 %v4498, %v4496
        %v4575 = vpack.c.b16 %v4499, %v4497
        %v4576 = vpack.c.b16 %v4502, %v4500
        %v4577 = vpack.c.b16 %v4503, %v4501
        %v4578 = vpack.c.b16 %v4506, %v4504
        %v4579 = vpack.c.b16 %v4507, %v4505
        %v4580 = vpack.c.b16 %v4510, %v4508
        %v4581 = vpack.c.b16 %v4511, %v4509
        %v4582 = vpack.c.b16 %v4514, %v4512
        %v4583 = vpack.c.b16 %v4515, %v4513
        %v4584 = vpack.c.b16 %v4518, %v4516
        %v4585 = vpack.c.b16 %v4519, %v4517
        %v4586 = vpack.c.b16 %v4522, %v4520
        %v4587 = vpack.c.b16 %v4523, %v4521
        %4652 = vmatprep.subr.bf16.mxu0 %v4525
        %4653 = vmatpush1.bf16.msra.mxu0 %v4524
        %4654 = vmatprep.subr.bf16.mxu0 %v4527
        %4655 = vmatpush1.bf16.msra.mxu0 %v4526
        %4656 = vmatprep.subr.bf16.mxu0 %v4529
        %4657 = vmatpush1.bf16.msra.mxu0 %v4528
        %4658 = vmatprep.subr.bf16.mxu0 %v4531
        %4659 = vmatpush1.bf16.msra.mxu0 %v4530
        %4660 = vmatprep.subr.bf16.mxu0 %v4533
        %4661 = vmatpush1.bf16.msra.mxu0 %v4532
        %4662 = vmatprep.subr.bf16.mxu0 %v4535
        %4663 = vmatpush1.bf16.msra.mxu0 %v4534
        %4664 = vmatprep.subr.bf16.mxu0 %v4537
        %4665 = vmatpush1.bf16.msra.mxu0 %v4536
        %4666 = vmatprep.subr.bf16.mxu0 %v4539
        %4667 = vmatpush1.bf16.msra.mxu0 %v4538
        %4668 = vmatprep.subr.bf16.mxu0 %v4541
        %4669 = vmatpush1.bf16.msra.mxu0 %v4540
        %4670 = vmatprep.subr.bf16.mxu0 %v4543
        %4671 = vmatpush1.bf16.msra.mxu0 %v4542
        %4672 = vmatprep.subr.bf16.mxu0 %v4545
        %4673 = vmatpush1.bf16.msra.mxu0 %v4544
        %4674 = vmatprep.subr.bf16.mxu0 %v4547
        %4675 = vmatpush1.bf16.msra.mxu0 %v4546
        %4676 = vmatprep.subr.bf16.mxu0 %v4549
        %4677 = vmatpush1.bf16.msra.mxu0 %v4548
        %4678 = vmatprep.subr.bf16.mxu0 %v4551
        %4679 = vmatpush1.bf16.msra.mxu0 %v4550
        %4680 = vmatprep.subr.bf16.mxu0 %v4553
        %4681 = vmatpush1.bf16.msra.mxu0 %v4552
        %4682 = vmatprep.subr.bf16.mxu0 %v4555
        %4683 = vmatpush1.bf16.msra.mxu0 %v4554
        %4684 = vmatprep.mubr.bf16.mxu0 %v4316
        %4685 = vmatmul.mubr.bf16.gmra.mrb[0].mxu0 %v4315
        %v4686 = vpop.f32.mrb[0].mxu0
        %v4687 = vadd.f32 %v4325, %v4686
        %v4688 = vpop.f32.mrb[0].mxu0
        %v4689 = vadd.f32 %v4329, %v4688
        %v4690 = vpop.f32.mrb[0].mxu0
        %v4691 = vadd.f32 %v4325, %v4690
        %v4692 = vpop.f32.mrb[0].mxu0
        %v4693 = vadd.f32 %v4329, %v4692
        %4694 = vdwg.mxu0
        %4695 = vmatprep.subr.bf16.mxu0 %v4557
        %4696 = vmatpush1.bf16.msra.mxu0 %v4556
        %4697 = vmatprep.subr.bf16.mxu0 %v4559
        %4698 = vmatpush1.bf16.msra.mxu0 %v4558
        %4699 = vmatprep.subr.bf16.mxu0 %v4561
        %4700 = vmatpush1.bf16.msra.mxu0 %v4560
        %4701 = vmatprep.subr.bf16.mxu0 %v4563
        %4702 = vmatpush1.bf16.msra.mxu0 %v4562
        %4703 = vmatprep.subr.bf16.mxu0 %v4565
        %4704 = vmatpush1.bf16.msra.mxu0 %v4564
        %4705 = vmatprep.subr.bf16.mxu0 %v4567
        %4706 = vmatpush1.bf16.msra.mxu0 %v4566
        %4707 = vmatprep.subr.bf16.mxu0 %v4569
        %4708 = vmatpush1.bf16.msra.mxu0 %v4568
        %4709 = vmatprep.subr.bf16.mxu0 %v4571
        %4710 = vmatpush1.bf16.msra.mxu0 %v4570
        %4711 = vmatprep.subr.bf16.mxu0 %v4573
        %4712 = vmatpush1.bf16.msra.mxu0 %v4572
        %4713 = vmatprep.subr.bf16.mxu0 %v4575
        %4714 = vmatpush1.bf16.msra.mxu0 %v4574
        %4715 = vmatprep.subr.bf16.mxu0 %v4577
        %4716 = vmatpush1.bf16.msra.mxu0 %v4576
        %4717 = vmatprep.subr.bf16.mxu0 %v4579
        %4718 = vmatpush1.bf16.msra.mxu0 %v4578
        %4719 = vmatprep.subr.bf16.mxu0 %v4581
        %4720 = vmatpush1.bf16.msra.mxu0 %v4580
        %4721 = vmatprep.subr.bf16.mxu0 %v4583
        %4722 = vmatpush1.bf16.msra.mxu0 %v4582
        %4723 = vmatprep.subr.bf16.mxu0 %v4585
        %4724 = vmatpush1.bf16.msra.mxu0 %v4584
        %4725 = vmatprep.subr.bf16.mxu0 %v4587
        %4726 = vmatpush1.bf16.msra.mxu0 %v4586
        %4727 = vmatprep.mubr.bf16.mxu0 %v4318
        %4728 = vmatmul.mubr.bf16.gmra.mrb[0].mxu0 %v4317
        %v4729 = vpop.f32.mrb[0].mxu0
        %v4730 = vadd.f32 %v4687, %v4729
        %v4731 = vpop.f32.mrb[0].mxu0
        %v4732 = vadd.f32 %v4689, %v4731
        %v4733 = vpop.f32.mrb[0].mxu0
        %v4734 = vadd.f32 %v4691, %v4733
        %v4735 = vpop.f32.mrb[0].mxu0
        %v4736 = vadd.f32 %v4693, %v4735
        %4737 = vdwg.mxu0
        %v4738 = vmax.f32 %v4730, 0.0
        %v4739 = vmax.f32 %v4732, 0.0
        %v4740 = vmax.f32 %v4734, 0.0
        %v4741 = vmax.f32 %v4736, 0.0
        %v4742 = vld [vmem:[#allocation9 + $0x120] sm:$0xf]
        %v4743 = vld [vmem:[#allocation9 + $0x124] sm:$0xf]
        %v4744 = vld [vmem:[#allocation9 + $0x128] sm:$0xf]
        %v4745 = vld [vmem:[#allocation9 + $0x12c] sm:$0xf]
        %v4746 = vld [vmem:[#allocation9 + $0x130] sm:$0xf]
        %v4747 = vld [vmem:[#allocation9 + $0x134] sm:$0xf]
        %v4748 = vld [vmem:[#allocation9 + $0x138] sm:$0xf]
        %v4749 = vld [vmem:[#allocation9 + $0x13c] sm:$0xf]
        %v4750 = vld [vmem:[#allocation9 + $0x140] sm:$0xf]
        %v4751 = vld [vmem:[#allocation9 + $0x144] sm:$0xf]
        %v4752 = vld [vmem:[#allocation9 + $0x148] sm:$0xf]
        %v4753 = vld [vmem:[#allocation9 + $0x14c] sm:$0xf]
        %v4754 = vld [vmem:[#allocation9 + $0x150] sm:$0xf]
        %v4755 = vld [vmem:[#allocation9 + $0x154] sm:$0xf]
        %v4756 = vld [vmem:[#allocation9 + $0x158] sm:$0xf]
        %v4757 = vld [vmem:[#allocation9 + $0x15c] sm:$0xf]
        %v4758 = vld [vmem:[#allocation9 + $0x160] sm:$0xf]
        %v4759 = vld [vmem:[#allocation9 + $0x164] sm:$0xf]
        %v4760 = vld [vmem:[#allocation9 + $0x168] sm:$0xf]
        %v4761 = vld [vmem:[#allocation9 + $0x16c] sm:$0xf]
        %v4762 = vld [vmem:[#allocation9 + $0x170] sm:$0xf]
        %v4763 = vld [vmem:[#allocation9 + $0x174] sm:$0xf]
        %v4764 = vld [vmem:[#allocation9 + $0x178] sm:$0xf]
        %v4765 = vld [vmem:[#allocation9 + $0x17c] sm:$0xf]
        %v4766 = vld [vmem:[#allocation9 + $0x180] sm:$0xf]
        %v4767 = vld [vmem:[#allocation9 + $0x184] sm:$0xf]
        %v4768 = vld [vmem:[#allocation9 + $0x188] sm:$0xf]
        %v4769 = vld [vmem:[#allocation9 + $0x18c] sm:$0xf]
        %v4770 = vld [vmem:[#allocation9 + $0x190] sm:$0xf]
        %v4771 = vld [vmem:[#allocation9 + $0x194] sm:$0xf]
        %v4772 = vld [vmem:[#allocation9 + $0x198] sm:$0xf]
        %v4773 = vld [vmem:[#allocation9 + $0x19c] sm:$0xf]
        %v4774 = vpack.c.bf16 %v4740, %v4738
        %v4775 = vpack.c.bf16 %v4741, %v4739
        %v4776 = vld [vmem:[#allocation15 + $0x42] ss:$0 sm:$0xff]
        %v4809 = vunpack.c.l.b16 %v4742
        %v4810 = vunpack.c.l.b16 %v4743
        %v4811 = vunpack.c.l.b16 %v4744
        %v4812 = vunpack.c.l.b16 %v4745
        %v4813 = vunpack.c.l.b16 %v4746
        %v4814 = vunpack.c.l.b16 %v4747
        %v4815 = vunpack.c.l.b16 %v4748
        %v4816 = vunpack.c.l.b16 %v4749
        %v4817 = vunpack.c.l.b16 %v4750
        %v4818 = vunpack.c.l.b16 %v4751
        %v4819 = vunpack.c.l.b16 %v4752
        %v4820 = vunpack.c.l.b16 %v4753
        %v4821 = vunpack.c.l.b16 %v4754
        %v4822 = vunpack.c.l.b16 %v4755
        %v4823 = vunpack.c.l.b16 %v4756
        %v4824 = vunpack.c.l.b16 %v4757
        %v4825 = vunpack.c.l.b16 %v4758
        %v4826 = vunpack.c.l.b16 %v4759
        %v4827 = vunpack.c.l.b16 %v4760
        %v4828 = vunpack.c.l.b16 %v4761
        %v4829 = vunpack.c.l.b16 %v4762
        %v4830 = vunpack.c.l.b16 %v4763
        %v4831 = vunpack.c.l.b16 %v4764
        %v4832 = vunpack.c.l.b16 %v4765
        %v4833 = vunpack.c.l.b16 %v4766
        %v4834 = vunpack.c.l.b16 %v4767
        %v4835 = vunpack.c.l.b16 %v4768
        %v4836 = vunpack.c.l.b16 %v4769
        %v4837 = vunpack.c.l.b16 %v4770
        %v4838 = vunpack.c.l.b16 %v4771
        %v4839 = vunpack.c.l.b16 %v4772
        %v4840 = vunpack.c.l.b16 %v4773
        %v4841 = vpack.c.b16 %v4810, %v4809
        %v4842 = vpack.c.b16 %v4812, %v4811
        %v4843 = vpack.c.b16 %v4814, %v4813
        %v4844 = vpack.c.b16 %v4816, %v4815
        %v4845 = vpack.c.b16 %v4818, %v4817
        %v4846 = vpack.c.b16 %v4820, %v4819
        %v4847 = vpack.c.b16 %v4822, %v4821
        %v4848 = vpack.c.b16 %v4824, %v4823
        %v4849 = vpack.c.b16 %v4826, %v4825
        %v4850 = vpack.c.b16 %v4828, %v4827
        %v4851 = vpack.c.b16 %v4830, %v4829
        %v4852 = vpack.c.b16 %v4832, %v4831
        %v4853 = vpack.c.b16 %v4834, %v4833
        %v4854 = vpack.c.b16 %v4836, %v4835
        %v4855 = vpack.c.b16 %v4838, %v4837
        %v4856 = vpack.c.b16 %v4840, %v4839
        %4873 = vmatprep.subr.bf16.mxu0 0
        %4874 = vmatpush1.bf16.msra.mxu0 %v4841
        %4875 = vmatprep.subr.bf16.mxu0 0
        %4876 = vmatpush1.bf16.msra.mxu0 %v4842
        %4877 = vmatprep.subr.bf16.mxu0 0
        %4878 = vmatpush1.bf16.msra.mxu0 %v4843
        %4879 = vmatprep.subr.bf16.mxu0 0
        %4880 = vmatpush1.bf16.msra.mxu0 %v4844
        %4881 = vmatprep.subr.bf16.mxu0 0
        %4882 = vmatpush1.bf16.msra.mxu0 %v4845
        %4883 = vmatprep.subr.bf16.mxu0 0
        %4884 = vmatpush1.bf16.msra.mxu0 %v4846
        %4885 = vmatprep.subr.bf16.mxu0 0
        %4886 = vmatpush1.bf16.msra.mxu0 %v4847
        %4887 = vmatprep.subr.bf16.mxu0 0
        %4888 = vmatpush1.bf16.msra.mxu0 %v4848
        %4889 = vmatprep.subr.bf16.mxu0 0
        %4890 = vmatpush1.bf16.msra.mxu0 %v4849
        %4891 = vmatprep.subr.bf16.mxu0 0
        %4892 = vmatpush1.bf16.msra.mxu0 %v4850
        %4893 = vmatprep.subr.bf16.mxu0 0
        %4894 = vmatpush1.bf16.msra.mxu0 %v4851
        %4895 = vmatprep.subr.bf16.mxu0 0
        %4896 = vmatpush1.bf16.msra.mxu0 %v4852
        %4897 = vmatprep.subr.bf16.mxu0 0
        %4898 = vmatpush1.bf16.msra.mxu0 %v4853
        %4899 = vmatprep.subr.bf16.mxu0 0
        %4900 = vmatpush1.bf16.msra.mxu0 %v4854
        %4901 = vmatprep.subr.bf16.mxu0 0
        %4902 = vmatpush1.bf16.msra.mxu0 %v4855
        %4903 = vmatprep.subr.bf16.mxu0 0
        %4904 = vmatpush1.bf16.msra.mxu0 %v4856
        %4905 = vmatprep.mubr.bf16.mxu0 %v4775
        %4906 = vmatmul.mubr.bf16.gmra.mrb[0].mxu0 %v4774
        %v4907 = vpop.f32.mrb[0].mxu0
        %v4908 = vadd.f32 %v4776, %v4907
        %v4909 = vpop.f32.mrb[0].mxu0
        %v4910 = vpop.f32.mrb[0].mxu0
        %v4911 = vadd.f32 %v4776, %v4910
        %v4912 = vpop.f32.mrb[0].mxu0
        %4913 = vdwg.mxu0
        %4914 = vst [vmem:[%s554] sm:$0xff] %v4908
        %4915 = vst [vmem:[%s554 + $0x8] sm:$0xff] %v4911
        %s4916 = smul.u32 2, %s31
        %p4917 = scmp.lt.s32.totalorder %s4916, 3
        %s4918 = scalar_select %p4917, %s4916, 3
        %s4919 = smul.addr %s4918, 8
        %s4920 = scalar_lea.vmem %s9, %s4919
        // Predicated region
        $region93: #{run.1} parent=55 // pred_check
          %p4921 = pneg %p262
        $region94: #{run.1} parent=55 // pred_check_branch
          %4923 = sbr.rel (%p4921) target = $region96
        $region95: #{run.1} parent=55 // pred_region
          %s4924 = smul.u32 2, %s31
        $region96: #{run.1} parent=55 // pred_fallthru
          _
      $region56: #{run.1} parent=5 // pred_fallthru
        _
      %p4925 = scmp.le.s32.totalorder 2, %s26
      // Predicated region
      $region97: #{run.1} parent=5 // pred_check
        %p4926 = pneg %p4925
      $region98: #{run.1} parent=5 // pred_check_branch
        %4928 = sbr.rel (%p4926) target = $region100
      $region99: #{run.1} parent=5 // pred_region
        %s4929 = ssub.s32 %s26, 2
        // Predicated region
        $region101: #{run.1} parent=99 // pred_check
          %p4930 = pneg %p268
        $region102: #{run.1} parent=99 // pred_check_branch
          %4932 = sbr.rel (%p4930) target = $region104
        $region103: #{run.1} parent=99 // pred_region
          %s4933 = smul.u32 2, %s32
          %p4934 = scmp.lt.s32.totalorder %s4933, 3
          %s4935 = scalar_select %p4934, %s4933, 3
          %s4936 = smul.addr %s4935, 8
          %s4937 = scalar_lea.vmem %s9, %s4936
        $region104: #{run.1} parent=99 // pred_fallthru
          _
      $region100: #{run.1} parent=5 // pred_fallthru
        _
    $region6: #{run.1} parent=1 // loop_footer
      %s30 = sadd.s32 1, %s26
    $region7: #{run.1} parent=1 // loop_footer_branch
      %25 = sbr.rel target = $region3
    $region8: #{run.1} parent=1 // loop_exit
      _
    %4938 = vsyncpa [#allocation3], 1
    %s4939 = scalar_lea.sflag [#allocation3], 1
    %4940 = vsyncpa %s4939, 1
    %4941 = vsyncpa [#allocation5], 1
    %s4942 = scalar_lea.sflag [#allocation5], 1
    %4943 = vsyncpa %s4942, 1
    %4944 = vsyncpa [#allocation8], 1
    %s4945 = scalar_lea.sflag [#allocation8], 1
    %4946 = vsyncpa %s4945, 1
    %4947 = vsyncpa [#allocation11], 1
    %4948 = vsyncpa [#allocation14], 1

</llo_original>
